<compile_context>
chip_gen: v7x
topology: tpu7x:2x2x1
jax: 0.10.0
libtpu: 0.0.40
codegen_flags: <defaults>
</compile_context>

<pallas_src>
import functools

import jax
import jax.numpy as jnp
from jax import lax
from jax.experimental import pallas as pl
from jax.experimental.pallas import tpu as pltpu

LANE = 128
MXU_DTYPE = jnp.bfloat16           # operand dtype for all MXU matmuls (f32 accumulate)
Z_RESIDENT_CAP = 8 * 1024 * 1024   # keep Z fully VMEM-resident up to this many bytes


def _round_up(x, m):
    return ((x + m - 1) // m) * m


def _choose_tiles(n):
    """Return (n_pad, tm, tk): padded node count, row tile, reduction (K) tile."""
    n_pad = 256 if n <= 256 else _round_up(n, 512)
    # >= 2 row tiles so the "parallel" axis feeds both TensorCores on v7x.
    tm = min(512, max(128, n_pad // 2))
    tk = n_pad
    for cand in (2048, 1536, 1024, 512, 256, 128):
        if cand <= n_pad and n_pad % cand == 0:
            tk = cand
            break
    return n_pad, tm, tk


def _pad2d(a, rows, cols):
    r, c = a.shape
    return jnp.pad(a, ((0, rows - r), (0, cols - c)))


# ----------------------------------------------------------------------------
# Kernels
# ----------------------------------------------------------------------------
def project_kernel(x_ref, wl_ref, z_ref):
    """Per row tile: Z = X @ W_l (bf16 operands, f32 accumulate, bf16 out)."""
    z_ref[...] = jnp.dot(
        x_ref[...], wl_ref[...], preferred_element_type=jnp.float32
    ).astype(z_ref.dtype)


def sage_agg_kernel(*refs, post_project, z_resident, tk, f_out, epilogue):
    if post_project:
        a_ref, z_ref, x_ref, wr_ref, wl_ref, b_ref, inv_ref, out_ref, acc_ref = refs
    else:
        a_ref, z_ref, x_ref, wr_ref, b_ref, inv_ref, out_ref, acc_ref = refs
        wl_ref = None

    k = pl.program_id(1)

    @pl.when(k == 0)
    def _():
        acc_ref[...] = jnp.zeros_like(acc_ref)

    if z_resident:
        # Z is the full (n_pad, fz) array, resident in VMEM; slice the K window.
        start = pl.multiple_of(k * tk, 128)
        z = z_ref[pl.ds(start, tk), :]
    else:
        z = z_ref[...]

    # Dominant matmul: (TM, TK) @ (TK, F) on the MXU; bf16 operands, f32 accumulation.
    acc_ref[...] += jnp.dot(a_ref[...], z, preferred_element_type=jnp.float32)

    @pl.when(k == pl.num_programs(1) - 1)
    def _():
        # f32 epilogue: row normalization, skip term, bias, activation.
        agg = acc_ref[...] * inv_ref[...]                  # (tm, fz) * (tm, 1)
        if post_project:
            agg = jnp.dot(agg.astype(MXU_DTYPE), wl_ref[...],
                          preferred_element_type=jnp.float32)
        skip = jnp.dot(x_ref[...], wr_ref[...], preferred_element_type=jnp.float32)
        h = agg + skip + b_ref[...]
        if epilogue == "relu":
            h = jnp.maximum(h, 0.0)
        elif epilogue == "log_softmax":
            # Mask padded lanes (columns >= f_out) out of the reduction; stays f32.
            col = lax.broadcasted_iota(jnp.int32, h.shape, 1)
            hm = jnp.where(col < f_out, h, -1e30)
            m = jnp.max(hm, axis=1, keepdims=True)
            lse = m + jnp.log(jnp.sum(jnp.exp(hm - m), axis=1, keepdims=True))
            h = h - lse
        out_ref[...] = h.astype(out_ref.dtype)


# ----------------------------------------------------------------------------
# Wrappers
# ----------------------------------------------------------------------------
def _project(x_pad, wl, *, tm):
    n_pad, f_in_pad = x_pad.shape
    f_out_pad = wl.shape[1]
    grid_spec = pltpu.PrefetchScalarGridSpec(
        num_scalar_prefetch=0,
        grid=(n_pad // tm,),
        in_specs=[
            pl.BlockSpec((tm, f_in_pad), lambda i: (i, 0)),          # X row tile (bf16)
            pl.BlockSpec((f_in_pad, f_out_pad), lambda i: (0, 0)),   # W_l (resident)
        ],
        out_specs=pl.BlockSpec((tm, f_out_pad), lambda i: (i, 0)),   # Z (bf16)
    )
    return pl.pallas_call(
        project_kernel,
        grid_spec=grid_spec,
        out_shape=jax.ShapeDtypeStruct((n_pad, f_out_pad), MXU_DTYPE),
        compiler_params=pltpu.CompilerParams(dimension_semantics=("parallel",)),
    )(x_pad, wl)


def _aggregate(adj01, z, x_pad, wr, wl, b, inv_deg, *, post_project, f_out,
               epilogue, out_dtype, tm, tk):
    n_pad = adj01.shape[0]
    fz = z.shape[1]
    f_in_pad = x_pad.shape[1]
    f_out_pad = wr.shape[1]

    z_resident = n_pad * fz * z.dtype.itemsize <= Z_RESIDENT_CAP
    if z_resident:
        # Grid-invariant block: fetched once, stays in VMEM for the whole kernel.
        z_spec = pl.BlockSpec((n_pad, fz), lambda i, k: (0, 0))
    else:
        z_spec = pl.BlockSpec((tk, fz), lambda i, k: (k, 0))

    in_specs = [
        pl.BlockSpec((tm, tk), lambda i, k: (i, k)),              # A01 tile (dominant stream)
        z_spec,                                                    # aggregation operand
        pl.BlockSpec((tm, f_in_pad), lambda i, k: (i, 0)),         # X row tile (skip term)
        pl.BlockSpec((f_in_pad, f_out_pad), lambda i, k: (0, 0)),  # W_r (resident)
    ]
    args = [adj01, z, x_pad, wr]
    if post_project:
        in_specs.append(pl.BlockSpec((fz, f_out_pad), lambda i, k: (0, 0)))  # W_l
        args.append(wl)
    in_specs += [
        pl.BlockSpec((1, f_out_pad), lambda i, k: (0, 0)),         # bias (f32)
        pl.BlockSpec((tm, 1), lambda i, k: (i, 0)),                # 1/indeg (f32 row scale)
    ]
    args += [b, inv_deg]

    grid_spec = pltpu.PrefetchScalarGridSpec(
        num_scalar_prefetch=0,
        grid=(n_pad // tm, n_pad // tk),
        in_specs=in_specs,
        out_specs=pl.BlockSpec((tm, f_out_pad), lambda i, k: (i, 0)),
        scratch_shapes=[pltpu.VMEM((tm, fz), jnp.float32)],
    )
    kernel = functools.partial(
        sage_agg_kernel, post_project=post_project, z_resident=z_resident,
        tk=tk, f_out=f_out, epilogue=epilogue)
    return pl.pallas_call(
        kernel,
        grid_spec=grid_spec,
        out_shape=jax.ShapeDtypeStruct((n_pad, f_out_pad), out_dtype),
        compiler_params=pltpu.CompilerParams(
            dimension_semantics=("parallel", "arbitrary"),
            vmem_limit_bytes=48 * 1024 * 1024,   # headroom on v5e/v6e, safe on v7x (64 MiB)
        ),
    )(*args)


def sage_layer(adj01, inv_deg, x_pad, w_l, w_r, b, *, f_out, epilogue, out_dtype, tm, tk):
    """One SAGEConv layer (+ fused activation) on padded bf16 inputs."""
    n_pad, f_in_pad = x_pad.shape
    f_out_pad = _round_up(max(f_out, 1), LANE)
    wl = _pad2d(w_l.astype(jnp.float32), f_in_pad, f_out_pad).astype(MXU_DTYPE)
    wr = _pad2d(w_r.astype(jnp.float32), f_in_pad, f_out_pad).astype(MXU_DTYPE)
    bp = _pad2d(b.astype(jnp.float32), 1, f_out_pad)

    # Associativity decided on padded widths; prefer pre-projection on ties so the
    # aggregation kernel never needs W_l or the per-tile epilogue matmul.
    pre_project = f_out_pad <= f_in_pad
    if pre_project:
        z = _project(x_pad, wl, tm=tm)          # A @ (X @ W_l), Z is (n_pad, f_out_pad)
    else:
        z = x_pad                                # (A @ X) @ W_l, Z is X itself (no extra pass)
    return _aggregate(adj01, z, x_pad, wr, wl, bp, inv_deg,
                      post_project=not pre_project, f_out=f_out,
                      epilogue=epilogue, out_dtype=out_dtype, tm=tm, tk=tk)


def build_adj(edge_index, n_pad):
    """Exact 0/1 bf16 dense adjacency + f32 inverse in-degree column vector."""
    src, dst = edge_index[0], edge_index[1]
    a01 = jnp.zeros((n_pad, n_pad), jnp.float32).at[dst, src].add(1.0)
    deg = jnp.zeros((n_pad,), jnp.float32).at[dst].add(1.0)      # O(E), not O(N^2)
    inv_deg = (1.0 / jnp.maximum(deg, 1.0)).reshape(n_pad, 1)
    return a01.astype(MXU_DTYPE), inv_deg


def graphsage_forward(params, x, edge_index, return_embeddings=False):
    n, f_in = x.shape
    hidden = params["w1_l"].shape[1]
    f_out = params["w2_l"].shape[1]

    n_pad, tm, tk = _choose_tiles(n)
    f_in_pad = _round_up(f_in, LANE)
    x_pad = _pad2d(x.astype(jnp.float32), n_pad, f_in_pad).astype(MXU_DTYPE)
    adj01, inv_deg = build_adj(edge_index, n_pad)

    # Layer 1: hidden activations produced directly in bf16 (fed straight to layer 2).
    h = sage_layer(adj01, inv_deg, x_pad, params["w1_l"], params["w1_r"], params["b1"],
                   f_out=hidden, epilogue="relu", out_dtype=MXU_DTYPE, tm=tm, tk=tk)
    epi = "none" if return_embeddings else "log_softmax"
    out = sage_layer(adj01, inv_deg, h, params["w2_l"], params["w2_r"], params["b2"],
                     f_out=f_out, epilogue=epi, out_dtype=jnp.float32, tm=tm, tk=tk)
    return out[:n, :f_out]


# ----------------------------------------------------------------------------
# Deterministic parameter init (SAGEConv(in, hidden), SAGEConv(hidden, out))
# ----------------------------------------------------------------------------
def init_params(key, in_channels, hidden_channels, out_channels):
    k1, k2, k3, k4 = jax.random.split(key, 4)
    s1 = 1.0 / jnp.sqrt(in_channels)
    s2 = 1.0 / jnp.sqrt(hidden_channels)
    return {
        "w1_l": jax.random.normal(k1, (in_channels, hidden_channels), jnp.float32) * s1,
        "w1_r": jax.random.normal(k2, (in_channels, hidden_channels), jnp.float32) * s1,
        "b1": jnp.zeros((1, hidden_channels), jnp.float32),
        "w2_l": jax.random.normal(k3, (hidden_channels, out_channels), jnp.float32) * s2,
        "w2_r": jax.random.normal(k4, (hidden_channels, out_channels), jnp.float32) * s2,
        "b2": jnp.zeros((1, out_channels), jnp.float32),
    }


def _reference_forward(params, x, edge_index):
    """Pure-JAX f32 reference for numerical sanity."""
    n = x.shape[0]
    adj = jnp.zeros((n, n), jnp.float32).at[edge_index[1], edge_index[0]].add(1.0)
    adj = adj / jnp.maximum(adj.sum(1, keepdims=True), 1.0)
    h = jnp.maximum(adj @ x @ params["w1_l"] + x @ params["w1_r"] + params["b1"], 0.0)
    o = adj @ h @ params["w2_l"] + h @ params["w2_r"] + params["b2"]
    return jax.nn.log_softmax(o, axis=1)


if __name__ == "__main__":
    num_nodes = 300          # pads to 512 -> 2 row tiles ("parallel") x 1 K tile
    in_channels = 8
    hidden_channels = 32
    out_channels = 4

    key = jax.random.PRNGKey(0)
    k_x, k_p = jax.random.split(key)

    # Node features (N, F_in)
    x = jax.random.normal(k_x, (num_nodes, in_channels), jnp.float32)

    # Deterministic small graph: a directed ring plus a few extra edges.
    src = list(range(num_nodes)) + [0, 3, 7, 11, 50, 123]
    dst = [(i + 1) % num_nodes for i in range(num_nodes)] + [5, 9, 2, 14, 200, 250]
    edge_index = jnp.array([src, dst], dtype=jnp.int32)  # (2, E)

    params = init_params(k_p, in_channels, hidden_channels, out_channels)

    fwd = jax.jit(functools.partial(graphsage_forward, return_embeddings=False))
    out = jax.block_until_ready(fwd(params, x, edge_index))

    assert out.shape == (num_nodes, out_channels)
    # log_softmax rows should sum (in prob space) to ~1
    assert jnp.allclose(jnp.sum(jnp.exp(out), axis=1), 1.0, atol=1e-4)
    # Matches the f32 reference within bf16-operand tolerance.
    ref = _reference_forward(params, x, edge_index)
    assert jnp.allclose(out, ref, atol=2e-1), float(jnp.max(jnp.abs(out - ref)))

    print("KERNEL_OK")
</pallas_src>

<mosaic_0001>
module attributes {stable_mosaic.version = 11 : i64} {
  func.func @project_kernel(%arg0: i32, %arg1: memref<256x128xbf16, #tpu.memory_space<vmem>>, %arg2: memref<128x128xbf16, #tpu.memory_space<vmem>>, %arg3: memref<256x128xbf16, #tpu.memory_space<vmem>>) attributes {dimension_semantics = [#tpu.dimension_semantics<parallel>], iteration_bounds = array<i64: 2>, scalar_prefetch = 0 : i64, scratch_operands = 0 : i64, tpu.core_type = #tpu.core_type<tc>, window_params = [{transform_indices = @transform_0, window_bounds = array<i64: 256, 128>}, {pipeline_mode = #tpu.pipeline_mode<synchronous>, transform_indices = @transform_1, window_bounds = array<i64: 128, 128>}, {transform_indices = @transform_2, window_bounds = array<i64: 256, 128>}]} {
    %c0 = arith.constant 0 : index
    %c0_0 = arith.constant 0 : index
    %0 = vector.load %arg1[%c0, %c0_0] : memref<256x128xbf16, #tpu.memory_space<vmem>>, vector<256x128xbf16>
    %c0_1 = arith.constant 0 : index
    %c0_2 = arith.constant 0 : index
    %1 = vector.load %arg2[%c0_1, %c0_2] : memref<128x128xbf16, #tpu.memory_space<vmem>>, vector<128x128xbf16>
    %cst = arith.constant dense<0.000000e+00> : vector<256x128xf32>
    %2 = tpu.matmul %0, %1, %cst {dimension_numbers = #tpu.dot_dimension_numbers<[1], [0], [0], [1], [0, 0, 1, 1], [], []>} : vector<256x128xbf16>, vector<128x128xbf16>, vector<256x128xf32> -> vector<256x128xf32>
    %3 = arith.truncf %2 : vector<256x128xf32> to vector<256x128xbf16>
    %c0_3 = arith.constant 0 : index
    %c0_4 = arith.constant 0 : index
    %4 = vector.load %arg3[%c0_3, %c0_4] : memref<256x128xbf16, #tpu.memory_space<vmem>>, vector<256x128xbf16>
    tpu.vector_store %arg3[%c0_3, %c0_4], %3 {strides = array<i32>} : memref<256x128xbf16, #tpu.memory_space<vmem>>, vector<256x128xbf16>,
    return
  }
  func.func @transform_0(%arg0: i32) -> (i32, i32) {
    %c0_i32 = arith.constant 0 : i32
    %c0_i32_0 = arith.constant 0 : i32
    return %arg0, %c0_i32 : i32, i32
  }
  func.func @transform_1(%arg0: i32) -> (i32, i32) {
    %c0_i32 = arith.constant 0 : i32
    %c0_i32_0 = arith.constant 0 : i32
    %c0_i32_1 = arith.constant 0 : i32
    return %c0_i32, %c0_i32_0 : i32, i32
  }
  func.func @transform_2(%arg0: i32) -> (i32, i32) {
    %c0_i32 = arith.constant 0 : i32
    %c0_i32_0 = arith.constant 0 : i32
    return %arg0, %c0_i32 : i32, i32
  }
}

module attributes {stable_mosaic.version = 11 : i64} {
  func.func @sage_agg_kernel(%arg0: i32, %arg1: i32, %arg2: memref<256x512xbf16, #tpu.memory_space<vmem>>, %arg3: memref<512x128xbf16, #tpu.memory_space<vmem>>, %arg4: memref<256x128xbf16, #tpu.memory_space<vmem>>, %arg5: memref<128x128xbf16, #tpu.memory_space<vmem>>, %arg6: memref<1x128xf32, #tpu.memory_space<vmem>>, %arg7: memref<256x1xf32, #tpu.memory_space<vmem>>, %arg8: memref<256x128xbf16, #tpu.memory_space<vmem>>, %arg9: memref<256x128xf32, #tpu.memory_space<vmem>>) attributes {dimension_semantics = [#tpu.dimension_semantics<parallel>, #tpu.dimension_semantics<arbitrary>], iteration_bounds = array<i64: 2, 1>, scalar_prefetch = 0 : i64, scratch_operands = 1 : i64, tpu.core_type = #tpu.core_type<tc>, window_params = [{transform_indices = @transform_0, window_bounds = array<i64: 256, 512>}, {pipeline_mode = #tpu.pipeline_mode<synchronous>, transform_indices = @transform_1, window_bounds = array<i64: 512, 128>}, {transform_indices = @transform_2, window_bounds = array<i64: 256, 128>}, {pipeline_mode = #tpu.pipeline_mode<synchronous>, transform_indices = @transform_3, window_bounds = array<i64: 128, 128>}, {pipeline_mode = #tpu.pipeline_mode<synchronous>, transform_indices = @transform_4, window_bounds = array<i64: 1, 128>}, {transform_indices = @transform_5, window_bounds = array<i64: 256, 1>}, {transform_indices = @transform_6, window_bounds = array<i64: 256, 128>}]} {
    %c0_i32 = arith.constant 0 : i32
    %0 = arith.cmpi eq, %arg1, %c0_i32 : i32
    %1 = arith.extui %0 : i1 to i32
    %c0_i32_0 = arith.constant 0 : i32
    %2 = arith.cmpi ne, %1, %c0_i32_0 : i32
    scf.if %2 {
      %cst_9 = arith.constant 0.000000e+00 : f32
      %15 = vector.broadcast %cst_9 : f32 to vector<256x128xf32>
      %c0_10 = arith.constant 0 : index
      %c0_11 = arith.constant 0 : index
      %16 = vector.load %arg9[%c0_10, %c0_11] : memref<256x128xf32, #tpu.memory_space<vmem>>, vector<256x128xf32>
      tpu.vector_store %arg9[%c0_10, %c0_11], %15 {strides = array<i32>} : memref<256x128xf32, #tpu.memory_space<vmem>>, vector<256x128xf32>,
    } else {
    }
    %c512_i32 = arith.constant 512 : i32
    %3 = arith.muli %arg1, %c512_i32 : i32
    %4 = tpu.assume_multiple %3, 128 : i32
    %5 = arith.index_cast %4 : i32 to index
    %c0 = arith.constant 0 : index
    %6 = vector.load %arg3[%5, %c0] : memref<512x128xbf16, #tpu.memory_space<vmem>>, vector<512x128xbf16>
    %c0_1 = arith.constant 0 : index
    %c0_2 = arith.constant 0 : index
    %7 = vector.load %arg9[%c0_1, %c0_2] : memref<256x128xf32, #tpu.memory_space<vmem>>, vector<256x128xf32>
    %c0_3 = arith.constant 0 : index
    %c0_4 = arith.constant 0 : index
    %8 = vector.load %arg2[%c0_3, %c0_4] : memref<256x512xbf16, #tpu.memory_space<vmem>>, vector<256x512xbf16>
    %cst = arith.constant dense<0.000000e+00> : vector<256x128xf32>
    %9 = tpu.matmul %8, %6, %cst {dimension_numbers = #tpu.dot_dimension_numbers<[1], [0], [0], [1], [0, 0, 1, 1], [], []>} : vector<256x512xbf16>, vector<512x128xbf16>, vector<256x128xf32> -> vector<256x128xf32>
    %10 = arith.addf %7, %9 : vector<256x128xf32>
    %c0_5 = arith.constant 0 : index
    %c0_6 = arith.constant 0 : index
    %11 = vector.load %arg9[%c0_5, %c0_6] : memref<256x128xf32, #tpu.memory_space<vmem>>, vector<256x128xf32>
    tpu.vector_store %arg9[%c0_5, %c0_6], %10 {strides = array<i32>} : memref<256x128xf32, #tpu.memory_space<vmem>>, vector<256x128xf32>,
    %c0_i32_7 = arith.constant 0 : i32
    %12 = arith.cmpi eq, %arg1, %c0_i32_7 : i32
    %13 = arith.extui %12 : i1 to i32
    %c0_i32_8 = arith.constant 0 : i32
    %14 = arith.cmpi ne, %13, %c0_i32_8 : i32
    scf.if %14 {
      %c0_9 = arith.constant 0 : index
      %c0_10 = arith.constant 0 : index
      %15 = vector.load %arg9[%c0_9, %c0_10] : memref<256x128xf32, #tpu.memory_space<vmem>>, vector<256x128xf32>
      %c0_11 = arith.constant 0 : index
      %c0_12 = arith.constant 0 : index
      %16 = vector.load %arg7[%c0_11, %c0_12] : memref<256x1xf32, #tpu.memory_space<vmem>>, vector<256x1xf32>
      %17 = vector.broadcast %16 : vector<256x1xf32> to vector<256x128xf32>
      %18 = arith.mulf %15, %17 : vector<256x128xf32>
      %c0_13 = arith.constant 0 : index
      %c0_14 = arith.constant 0 : index
      %19 = vector.load %arg4[%c0_13, %c0_14] : memref<256x128xbf16, #tpu.memory_space<vmem>>, vector<256x128xbf16>
      %c0_15 = arith.constant 0 : index
      %c0_16 = arith.constant 0 : index
      %20 = vector.load %arg5[%c0_15, %c0_16] : memref<128x128xbf16, #tpu.memory_space<vmem>>, vector<128x128xbf16>
      %cst_17 = arith.constant dense<0.000000e+00> : vector<256x128xf32>
      %21 = tpu.matmul %19, %20, %cst_17 {dimension_numbers = #tpu.dot_dimension_numbers<[1], [0], [0], [1], [0, 0, 1, 1], [], []>} : vector<256x128xbf16>, vector<128x128xbf16>, vector<256x128xf32> -> vector<256x128xf32>
      %22 = arith.addf %18, %21 : vector<256x128xf32>
      %c0_18 = arith.constant 0 : index
      %c0_19 = arith.constant 0 : index
      %23 = vector.load %arg6[%c0_18, %c0_19] : memref<1x128xf32, #tpu.memory_space<vmem>>, vector<1x128xf32>
      %24 = vector.broadcast %23 : vector<1x128xf32> to vector<256x128xf32>
      %25 = arith.addf %22, %24 : vector<256x128xf32>
      %cst_20 = arith.constant 0.000000e+00 : f32
      %26 = vector.broadcast %cst_20 : f32 to vector<256x128xf32>
      %27 = arith.maximumf %25, %26 : vector<256x128xf32>
      %28 = arith.truncf %27 : vector<256x128xf32> to vector<256x128xbf16>
      %c0_21 = arith.constant 0 : index
      %c0_22 = arith.constant 0 : index
      %29 = vector.load %arg8[%c0_21, %c0_22] : memref<256x128xbf16, #tpu.memory_space<vmem>>, vector<256x128xbf16>
      tpu.vector_store %arg8[%c0_21, %c0_22], %28 {strides = array<i32>} : memref<256x128xbf16, #tpu.memory_space<vmem>>, vector<256x128xbf16>,
    } else {
    }
    return
  }
  func.func @transform_0(%arg0: i32, %arg1: i32) -> (i32, i32) {
    %c0_i32 = arith.constant 0 : i32
    return %arg0, %arg1 : i32, i32
  }
  func.func @transform_1(%arg0: i32, %arg1: i32) -> (i32, i32) {
    %c0_i32 = arith.constant 0 : i32
    %c0_i32_0 = arith.constant 0 : i32
    %c0_i32_1 = arith.constant 0 : i32
    return %c0_i32, %c0_i32_0 : i32, i32
  }
  func.func @transform_2(%arg0: i32, %arg1: i32) -> (i32, i32) {
    %c0_i32 = arith.constant 0 : i32
    %c0_i32_0 = arith.constant 0 : i32
    return %arg0, %c0_i32 : i32, i32
  }
  func.func @transform_3(%arg0: i32, %arg1: i32) -> (i32, i32) {
    %c0_i32 = arith.constant 0 : i32
    %c0_i32_0 = arith.constant 0 : i32
    %c0_i32_1 = arith.constant 0 : i32
    return %c0_i32, %c0_i32_0 : i32, i32
  }
  func.func @transform_4(%arg0: i32, %arg1: i32) -> (i32, i32) {
    %c0_i32 = arith.constant 0 : i32
    %c0_i32_0 = arith.constant 0 : i32
    %c0_i32_1 = arith.constant 0 : i32
    return %c0_i32, %c0_i32_0 : i32, i32
  }
  func.func @transform_5(%arg0: i32, %arg1: i32) -> (i32, i32) {
    %c0_i32 = arith.constant 0 : i32
    %c0_i32_0 = arith.constant 0 : i32
    return %arg0, %c0_i32 : i32, i32
  }
  func.func @transform_6(%arg0: i32, %arg1: i32) -> (i32, i32) {
    %c0_i32 = arith.constant 0 : i32
    %c0_i32_0 = arith.constant 0 : i32
    return %arg0, %c0_i32 : i32, i32
  }
}

module attributes {stable_mosaic.version = 11 : i64} {
  func.func @sage_agg_kernel(%arg0: i32, %arg1: i32, %arg2: memref<256x512xbf16, #tpu.memory_space<vmem>>, %arg3: memref<512x128xbf16, #tpu.memory_space<vmem>>, %arg4: memref<256x128xbf16, #tpu.memory_space<vmem>>, %arg5: memref<128x128xbf16, #tpu.memory_space<vmem>>, %arg6: memref<1x128xf32, #tpu.memory_space<vmem>>, %arg7: memref<256x1xf32, #tpu.memory_space<vmem>>, %arg8: memref<256x128xf32, #tpu.memory_space<vmem>>, %arg9: memref<256x128xf32, #tpu.memory_space<vmem>>) attributes {dimension_semantics = [#tpu.dimension_semantics<parallel>, #tpu.dimension_semantics<arbitrary>], iteration_bounds = array<i64: 2, 1>, scalar_prefetch = 0 : i64, scratch_operands = 1 : i64, tpu.core_type = #tpu.core_type<tc>, window_params = [{transform_indices = @transform_0, window_bounds = array<i64: 256, 512>}, {pipeline_mode = #tpu.pipeline_mode<synchronous>, transform_indices = @transform_1, window_bounds = array<i64: 512, 128>}, {transform_indices = @transform_2, window_bounds = array<i64: 256, 128>}, {pipeline_mode = #tpu.pipeline_mode<synchronous>, transform_indices = @transform_3, window_bounds = array<i64: 128, 128>}, {pipeline_mode = #tpu.pipeline_mode<synchronous>, transform_indices = @transform_4, window_bounds = array<i64: 1, 128>}, {transform_indices = @transform_5, window_bounds = array<i64: 256, 1>}, {transform_indices = @transform_6, window_bounds = array<i64: 256, 128>}]} {
    %c0_i32 = arith.constant 0 : i32
    %0 = arith.cmpi eq, %arg1, %c0_i32 : i32
    %1 = arith.extui %0 : i1 to i32
    %c0_i32_0 = arith.constant 0 : i32
    %2 = arith.cmpi ne, %1, %c0_i32_0 : i32
    scf.if %2 {
      %cst_9 = arith.constant 0.000000e+00 : f32
      %15 = vector.broadcast %cst_9 : f32 to vector<256x128xf32>
      %c0_10 = arith.constant 0 : index
      %c0_11 = arith.constant 0 : index
      %16 = vector.load %arg9[%c0_10, %c0_11] : memref<256x128xf32, #tpu.memory_space<vmem>>, vector<256x128xf32>
      tpu.vector_store %arg9[%c0_10, %c0_11], %15 {strides = array<i32>} : memref<256x128xf32, #tpu.memory_space<vmem>>, vector<256x128xf32>,
    } else {
    }
    %c512_i32 = arith.constant 512 : i32
    %3 = arith.muli %arg1, %c512_i32 : i32
    %4 = tpu.assume_multiple %3, 128 : i32
    %5 = arith.index_cast %4 : i32 to index
    %c0 = arith.constant 0 : index
    %6 = vector.load %arg3[%5, %c0] : memref<512x128xbf16, #tpu.memory_space<vmem>>, vector<512x128xbf16>
    %c0_1 = arith.constant 0 : index
    %c0_2 = arith.constant 0 : index
    %7 = vector.load %arg9[%c0_1, %c0_2] : memref<256x128xf32, #tpu.memory_space<vmem>>, vector<256x128xf32>
    %c0_3 = arith.constant 0 : index
    %c0_4 = arith.constant 0 : index
    %8 = vector.load %arg2[%c0_3, %c0_4] : memref<256x512xbf16, #tpu.memory_space<vmem>>, vector<256x512xbf16>
    %cst = arith.constant dense<0.000000e+00> : vector<256x128xf32>
    %9 = tpu.matmul %8, %6, %cst {dimension_numbers = #tpu.dot_dimension_numbers<[1], [0], [0], [1], [0, 0, 1, 1], [], []>} : vector<256x512xbf16>, vector<512x128xbf16>, vector<256x128xf32> -> vector<256x128xf32>
    %10 = arith.addf %7, %9 : vector<256x128xf32>
    %c0_5 = arith.constant 0 : index
    %c0_6 = arith.constant 0 : index
    %11 = vector.load %arg9[%c0_5, %c0_6] : memref<256x128xf32, #tpu.memory_space<vmem>>, vector<256x128xf32>
    tpu.vector_store %arg9[%c0_5, %c0_6], %10 {strides = array<i32>} : memref<256x128xf32, #tpu.memory_space<vmem>>, vector<256x128xf32>,
    %c0_i32_7 = arith.constant 0 : i32
    %12 = arith.cmpi eq, %arg1, %c0_i32_7 : i32
    %13 = arith.extui %12 : i1 to i32
    %c0_i32_8 = arith.constant 0 : i32
    %14 = arith.cmpi ne, %13, %c0_i32_8 : i32
    scf.if %14 {
      %c0_9 = arith.constant 0 : index
      %c0_10 = arith.constant 0 : index
      %15 = vector.load %arg9[%c0_9, %c0_10] : memref<256x128xf32, #tpu.memory_space<vmem>>, vector<256x128xf32>
      %c0_11 = arith.constant 0 : index
      %c0_12 = arith.constant 0 : index
      %16 = vector.load %arg7[%c0_11, %c0_12] : memref<256x1xf32, #tpu.memory_space<vmem>>, vector<256x1xf32>
      %17 = vector.broadcast %16 : vector<256x1xf32> to vector<256x128xf32>
      %18 = arith.mulf %15, %17 : vector<256x128xf32>
      %c0_13 = arith.constant 0 : index
      %c0_14 = arith.constant 0 : index
      %19 = vector.load %arg4[%c0_13, %c0_14] : memref<256x128xbf16, #tpu.memory_space<vmem>>, vector<256x128xbf16>
      %c0_15 = arith.constant 0 : index
      %c0_16 = arith.constant 0 : index
      %20 = vector.load %arg5[%c0_15, %c0_16] : memref<128x128xbf16, #tpu.memory_space<vmem>>, vector<128x128xbf16>
      %cst_17 = arith.constant dense<0.000000e+00> : vector<256x128xf32>
      %21 = tpu.matmul %19, %20, %cst_17 {dimension_numbers = #tpu.dot_dimension_numbers<[1], [0], [0], [1], [0, 0, 1, 1], [], []>} : vector<256x128xbf16>, vector<128x128xbf16>, vector<256x128xf32> -> vector<256x128xf32>
      %22 = arith.addf %18, %21 : vector<256x128xf32>
      %c0_18 = arith.constant 0 : index
      %c0_19 = arith.constant 0 : index
      %23 = vector.load %arg6[%c0_18, %c0_19] : memref<1x128xf32, #tpu.memory_space<vmem>>, vector<1x128xf32>
      %24 = vector.broadcast %23 : vector<1x128xf32> to vector<256x128xf32>
      %25 = arith.addf %22, %24 : vector<256x128xf32>
      %26 = tpu.iota {dimensions = array<i32: 1>} : vector<256x128xi32>
      %c4_i32 = arith.constant 4 : i32
      %27 = vector.broadcast %c4_i32 : i32 to vector<256x128xi32>
      %28 = arith.cmpi slt, %26, %27 : vector<256x128xi32>
      %cst_20 = arith.constant -1.000000e+30 : f32
      %29 = vector.broadcast %cst_20 : f32 to vector<256x128xf32>
      %30 = arith.select %28, %25, %29 : vector<256x128xi1>, vector<256x128xf32>
      %cst_21 = arith.constant dense<0xFF800000> : vector<256xf32>
      %31 = vector.multi_reduction <maximumf>, %30, %cst_21 [1] : vector<256x128xf32> to vector<256xf32>
      %32 = vector.shape_cast %31 : vector<256xf32> to vector<256x1xf32>
      %33 = vector.broadcast %32 : vector<256x1xf32> to vector<256x128xf32>
      %34 = arith.subf %30, %33 : vector<256x128xf32>
      %35 = math.exp %34 : vector<256x128xf32>
      %cst_22 = arith.constant dense<0.000000e+00> : vector<256xf32>
      %36 = vector.multi_reduction <add>, %35, %cst_22 [1] : vector<256x128xf32> to vector<256xf32>
      %37 = vector.shape_cast %36 : vector<256xf32> to vector<256x1xf32>
      %38 = math.log %37 : vector<256x1xf32>
      %39 = arith.addf %32, %38 : vector<256x1xf32>
      %40 = vector.broadcast %39 : vector<256x1xf32> to vector<256x128xf32>
      %41 = arith.subf %25, %40 : vector<256x128xf32>
      %c0_23 = arith.constant 0 : index
      %c0_24 = arith.constant 0 : index
      %42 = vector.load %arg8[%c0_23, %c0_24] : memref<256x128xf32, #tpu.memory_space<vmem>>, vector<256x128xf32>
      tpu.vector_store %arg8[%c0_23, %c0_24], %41 {strides = array<i32>} : memref<256x128xf32, #tpu.memory_space<vmem>>, vector<256x128xf32>,
    } else {
    }
    return
  }
  func.func @transform_0(%arg0: i32, %arg1: i32) -> (i32, i32) {
    %c0_i32 = arith.constant 0 : i32
    return %arg0, %arg1 : i32, i32
  }
  func.func @transform_1(%arg0: i32, %arg1: i32) -> (i32, i32) {
    %c0_i32 = arith.constant 0 : i32
    %c0_i32_0 = arith.constant 0 : i32
    %c0_i32_1 = arith.constant 0 : i32
    return %c0_i32, %c0_i32_0 : i32, i32
  }
  func.func @transform_2(%arg0: i32, %arg1: i32) -> (i32, i32) {
    %c0_i32 = arith.constant 0 : i32
    %c0_i32_0 = arith.constant 0 : i32
    return %arg0, %c0_i32 : i32, i32
  }
  func.func @transform_3(%arg0: i32, %arg1: i32) -> (i32, i32) {
    %c0_i32 = arith.constant 0 : i32
    %c0_i32_0 = arith.constant 0 : i32
    %c0_i32_1 = arith.constant 0 : i32
    return %c0_i32, %c0_i32_0 : i32, i32
  }
  func.func @transform_4(%arg0: i32, %arg1: i32) -> (i32, i32) {
    %c0_i32 = arith.constant 0 : i32
    %c0_i32_0 = arith.constant 0 : i32
    %c0_i32_1 = arith.constant 0 : i32
    return %c0_i32, %c0_i32_0 : i32, i32
  }
  func.func @transform_5(%arg0: i32, %arg1: i32) -> (i32, i32) {
    %c0_i32 = arith.constant 0 : i32
    %c0_i32_0 = arith.constant 0 : i32
    return %arg0, %c0_i32 : i32, i32
  }
  func.func @transform_6(%arg0: i32, %arg1: i32) -> (i32, i32) {
    %c0_i32 = arith.constant 0 : i32
    %c0_i32_0 = arith.constant 0 : i32
    return %arg0, %c0_i32 : i32, i32
  }
}

</mosaic_0001>

<llo_original>
// kernel: graphsage_forward.4
$region0: #{graphsage_forward.4}
  #allocation0 [shape = 'u32[]', space=smem, size = 0x4, offset = 0x4, fixed_abs, tag = 'smem constant byte address 0x4 - core index']
  #allocation1 [shape = 'u32[144,128]{1,0:T(1,128)}', space=vmem, size = 0x12000, scoped, tag = 'internal scratch']
  %s0 = inlined_call_operand.vmem [shape: bf16[512,128], index: 0, kind: input, shape index: {}]
  %s1 = inlined_call_operand.vmem [shape: bf16[128,128], index: 1, kind: input, shape index: {}]
  %s2 = inlined_call_operand.vmem [shape: bf16[512,128], index: 2, kind: output, shape index: {}]
  %s3 = sld [smem:[#allocation0]]
  $region41: #{graphsage_forward.4} parent=0
    _
  %s5 = ssub.s32 1, %s3
  %s6 = scalar_select 0, %s5, %s3
  loop: start=0, step=1, limit=4
  $region2: #{graphsage_forward.4} parent=0 // loop_pre_header
    _
  $region3: #{graphsage_forward.4} parent=0 // loop_header
    %s8 = sphi 0, %s12
    %p9 = scmp.ge.s32.totalorder %s8, 4
    %s18 = sphi 0, %s20
    %s21 = sphi 0, %s18
    %s22 = sphi 0, %s21
    %s38 = sphi 0, %s22
    %s42 = sphi 0, %s42
    %s44 = sphi 0, %s42
    %s45 = sphi 0, %s44
    %s59 = sphi 0, %s45
    %s65 = sphi 0, %s67
    %s68 = sphi 0, %s65
    %s69 = sphi 0, %s68
    %s85 = sphi 0, %s69
  $region4: #{graphsage_forward.4} parent=0 // loop_header_branch
    %11 = sbr.rel (%p9) target = $region8
  $region5: #{graphsage_forward.4} parent=0 // loop_body
    %s13 = ssub.s32 %s8, 1
    %s14 = ssub.s32 %s8, 2
    %s15 = sadd.s32 %s8, 1
    %s16 = ssub.s32 %s8, %s15
    %p17 = scmp.eq.s32.totalorder %s16, 0
    %s19 = sadd.s32 %s18, 1
    %s20 = scalar_select %p17, %s18, %s19
    %p23 = pneg %p17
    %p24 = scmp.eq.s32.totalorder %s8, 1
    %p25 = por %p23, %p24
    %p26 = scmp.ne.s32.totalorder %s18, %s21
    %p27 = scmp.eq.s32.totalorder %s8, 0
    %p28 = por %p26, %p27
    %p29 = scmp.ne.s32.totalorder %s18, %s21
    %p30 = scmp.eq.s32.totalorder %s13, 1
    %p31 = por %p29, %p30
    %p32 = scmp.ne.s32.totalorder %s21, %s22
    %p33 = scmp.eq.s32.totalorder %s13, 0
    %p34 = por %p32, %p33
    %p35 = scmp.ne.s32.totalorder %s21, %s22
    %p36 = scmp.eq.s32.totalorder %s14, 1
    %p37 = por %p35, %p36
    %p39 = scmp.ne.s32.totalorder %s22, %s38
    %p40 = scmp.eq.s32.totalorder %s14, 0
    %p41 = por %p39, %p40
    %s43 = sadd.s32 %s42, 1
    %p46 = scmp.eq.s32.totalorder %s8, 1
    %p47 = scmp.ne.s32.totalorder %s42, %s44
    %p48 = scmp.eq.s32.totalorder %s8, 0
    %p49 = por %p47, %p48
    %p50 = scmp.ne.s32.totalorder %s42, %s44
    %p51 = scmp.eq.s32.totalorder %s13, 1
    %p52 = por %p50, %p51
    %p53 = scmp.ne.s32.totalorder %s44, %s45
    %p54 = scmp.eq.s32.totalorder %s13, 0
    %p55 = por %p53, %p54
    %p56 = scmp.ne.s32.totalorder %s44, %s45
    %p57 = scmp.eq.s32.totalorder %s14, 1
    %p58 = por %p56, %p57
    %p60 = scmp.ne.s32.totalorder %s45, %s59
    %p61 = scmp.eq.s32.totalorder %s14, 0
    %p62 = por %p60, %p61
    %s63 = ssub.s32 %s8, %s15
    %p64 = scmp.eq.s32.totalorder %s63, 0
    %s66 = sadd.s32 %s65, 1
    %s67 = scalar_select %p64, %s65, %s66
    %p70 = pneg %p64
    %p71 = scmp.eq.s32.totalorder %s8, 1
    %p72 = por %p70, %p71
    %p73 = scmp.ne.s32.totalorder %s65, %s68
    %p74 = scmp.eq.s32.totalorder %s8, 0
    %p75 = por %p73, %p74
    %p76 = scmp.ne.s32.totalorder %s65, %s68
    %p77 = scmp.eq.s32.totalorder %s13, 1
    %p78 = por %p76, %p77
    %p79 = scmp.ne.s32.totalorder %s68, %s69
    %p80 = scmp.eq.s32.totalorder %s13, 0
    %p81 = por %p79, %p80
    %p82 = scmp.ne.s32.totalorder %s68, %s69
    %p83 = scmp.eq.s32.totalorder %s14, 1
    %p84 = por %p82, %p83
    %p86 = scmp.ne.s32.totalorder %s69, %s85
    %p87 = scmp.eq.s32.totalorder %s14, 0
    %p88 = por %p86, %p87
    %p89 = scmp.le.s32.totalorder 1, %s8
    %p90 = scmp.lt.s32.totalorder %s8, 3
    %p91 = pnand %p89, %p90
    %p92 = pneg %p91
    // Predicated region
    $region9: #{graphsage_forward.4} parent=5 // pred_check
      _
    $region10: #{graphsage_forward.4} parent=5 // pred_check_branch
      %94 = sbr.rel (%p91) target = $region12
    $region11: #{graphsage_forward.4} parent=5 // pred_region
      %s95 = ssub.s32 %s8, 1
      // Predicated region
      $region13: #{graphsage_forward.4} parent=11 // pred_check
        %p96 = pneg %p55
      $region14: #{graphsage_forward.4} parent=11 // pred_check_branch
        %98 = sbr.rel (%p96) target = $region16
      $region15: #{graphsage_forward.4} parent=11 // pred_region
        _
      $region16: #{graphsage_forward.4} parent=11 // pred_fallthru
        _
    $region12: #{graphsage_forward.4} parent=5 // pred_fallthru
      _
    %p99 = scmp.lt.s32.totalorder %s8, 2
    // Predicated region
    $region17: #{graphsage_forward.4} parent=5 // pred_check
      %p100 = pneg %p99
    $region18: #{graphsage_forward.4} parent=5 // pred_check_branch
      %102 = sbr.rel (%p100) target = $region20
    $region19: #{graphsage_forward.4} parent=5 // pred_region
      // Predicated region
      $region21: #{graphsage_forward.4} parent=19 // pred_check
        %p103 = pneg %p28
      $region22: #{graphsage_forward.4} parent=19 // pred_check_branch
        %105 = sbr.rel (%p103) target = $region24
      $region23: #{graphsage_forward.4} parent=19 // pred_region
        %s106 = smul.u32 32, %s8
        %p107 = scmp.lt.s32.totalorder %s106, 63
        %s108 = scalar_select %p107, %s106, 63
        %s109 = smul.addr %s108, 4
        %s110 = scalar_lea.vmem %s0, %s109
        %s111 = smul.u32 32, %s8
      $region24: #{graphsage_forward.4} parent=19 // pred_fallthru
        _
    $region20: #{graphsage_forward.4} parent=5 // pred_fallthru
      _
    %p112 = scmp.le.s32.totalorder 1, %s8
    %p113 = scmp.lt.s32.totalorder %s8, 3
    %p114 = pnand %p112, %p113
    %p115 = pneg %p114
    // Predicated region
    $region25: #{graphsage_forward.4} parent=5 // pred_check
      _
    $region26: #{graphsage_forward.4} parent=5 // pred_check_branch
      %117 = sbr.rel (%p114) target = $region28
    $region27: #{graphsage_forward.4} parent=5 // pred_region
      %s118 = ssub.s32 %s8, 1
      %s119 = smul.u32 32, %s13
      %p120 = scmp.lt.s32.totalorder %s119, 63
      %s121 = scalar_select %p120, %s119, 63
      %s122 = smul.addr %s121, 4
      %s123 = scalar_lea.vmem %s0, %s122
      %p124 = pneg %p34
      %p125 = pneg %p31
      %p126 = pneg %p55
      %p127 = pneg %p52
      %p128 = pneg %p81
      %p129 = pneg %p78
      %s130 = smul.u32 32, %s13
      %p131 = scmp.lt.s32.totalorder %s130, 63
      %s132 = scalar_select %p131, %s130, 63
      %s133 = smul.addr %s132, 4
      %s134 = scalar_lea.vmem %s2, %s133
      %s135 = smul.u32 32, %s13
      %p136 = scmp.lt.s32.totalorder %s135, 63
      %s137 = scalar_select %p136, %s135, 63
      %s138 = smul.addr %s137, 4
      %s139 = scalar_lea.vmem %s0, %s138
      %s140 = smul.u32 32, %s13
      %s141 = smul.u32 32, %s13
      %p142 = scmp.lt.s32.totalorder %s141, 63
      %s143 = scalar_select %p142, %s141, 63
      %s144 = smul.addr %s143, 4
      %s145 = scalar_lea.vmem %s2, %s144
      %s146 = smul.u32 32, %s13
      %v148 = vld [vmem:[%s139] sm:$0xf]
      %v149 = vld [vmem:[%s139 + $0x4] sm:$0xf]
      %v150 = vld [vmem:[%s139 + $0x8] sm:$0xf]
      %v151 = vld [vmem:[%s139 + $0xc] sm:$0xf]
      %v152 = vld [vmem:[%s139 + $0x10] sm:$0xf]
      %v153 = vld [vmem:[%s139 + $0x14] sm:$0xf]
      %v154 = vld [vmem:[%s139 + $0x18] sm:$0xf]
      %v155 = vld [vmem:[%s139 + $0x1c] sm:$0xf]
      %v156 = vld [vmem:[%s139 + $0x20] sm:$0xf]
      %v157 = vld [vmem:[%s139 + $0x24] sm:$0xf]
      %v158 = vld [vmem:[%s139 + $0x28] sm:$0xf]
      %v159 = vld [vmem:[%s139 + $0x2c] sm:$0xf]
      %v160 = vld [vmem:[%s139 + $0x30] sm:$0xf]
      %v161 = vld [vmem:[%s139 + $0x34] sm:$0xf]
      %v162 = vld [vmem:[%s139 + $0x38] sm:$0xf]
      %v163 = vld [vmem:[%s139 + $0x3c] sm:$0xf]
      %v164 = vld [vmem:[%s139 + $0x40] sm:$0xf]
      %v165 = vld [vmem:[%s139 + $0x44] sm:$0xf]
      %v166 = vld [vmem:[%s139 + $0x48] sm:$0xf]
      %v167 = vld [vmem:[%s139 + $0x4c] sm:$0xf]
      %v168 = vld [vmem:[%s139 + $0x50] sm:$0xf]
      %v169 = vld [vmem:[%s139 + $0x54] sm:$0xf]
      %v170 = vld [vmem:[%s139 + $0x58] sm:$0xf]
      %v171 = vld [vmem:[%s139 + $0x5c] sm:$0xf]
      %v172 = vld [vmem:[%s139 + $0x60] sm:$0xf]
      %v173 = vld [vmem:[%s139 + $0x64] sm:$0xf]
      %v174 = vld [vmem:[%s139 + $0x68] sm:$0xf]
      %v175 = vld [vmem:[%s139 + $0x6c] sm:$0xf]
      %v176 = vld [vmem:[%s139 + $0x70] sm:$0xf]
      %v177 = vld [vmem:[%s139 + $0x74] sm:$0xf]
      %v178 = vld [vmem:[%s139 + $0x78] sm:$0xf]
      %v179 = vld [vmem:[%s139 + $0x7c] sm:$0xf]
      %v180 = vld [vmem:[%s1] sm:$0xf]
      %v181 = vld [vmem:[%s1 + $0x4] sm:$0xf]
      %v182 = vld [vmem:[%s1 + $0x8] sm:$0xf]
      %v183 = vld [vmem:[%s1 + $0xc] sm:$0xf]
      %v184 = vld [vmem:[%s1 + $0x10] sm:$0xf]
      %v185 = vld [vmem:[%s1 + $0x14] sm:$0xf]
      %v186 = vld [vmem:[%s1 + $0x18] sm:$0xf]
      %v187 = vld [vmem:[%s1 + $0x1c] sm:$0xf]
      %v188 = vld [vmem:[%s1 + $0x20] sm:$0xf]
      %v189 = vld [vmem:[%s1 + $0x24] sm:$0xf]
      %v190 = vld [vmem:[%s1 + $0x28] sm:$0xf]
      %v191 = vld [vmem:[%s1 + $0x2c] sm:$0xf]
      %v192 = vld [vmem:[%s1 + $0x30] sm:$0xf]
      %v193 = vld [vmem:[%s1 + $0x34] sm:$0xf]
      %v194 = vld [vmem:[%s1 + $0x38] sm:$0xf]
      %v195 = vld [vmem:[%s1 + $0x3c] sm:$0xf]
      %v228 = vunpack.c.l.b16 %v148
      %v229 = vunpack.c.l.b16 %v149
      %v230 = vunpack.c.l.b16 %v150
      %v231 = vunpack.c.l.b16 %v151
      %v232 = vunpack.c.l.b16 %v152
      %v233 = vunpack.c.l.b16 %v153
      %v234 = vunpack.c.l.b16 %v154
      %v235 = vunpack.c.l.b16 %v155
      %v236 = vunpack.c.l.b16 %v156
      %v237 = vunpack.c.l.b16 %v157
      %v238 = vunpack.c.l.b16 %v158
      %v239 = vunpack.c.l.b16 %v159
      %v240 = vunpack.c.l.b16 %v160
      %v241 = vunpack.c.l.b16 %v161
      %v242 = vunpack.c.l.b16 %v162
      %v243 = vunpack.c.l.b16 %v163
      %v244 = vunpack.c.l.b16 %v164
      %v245 = vunpack.c.l.b16 %v165
      %v246 = vunpack.c.l.b16 %v166
      %v247 = vunpack.c.l.b16 %v167
      %v248 = vunpack.c.l.b16 %v168
      %v249 = vunpack.c.l.b16 %v169
      %v250 = vunpack.c.l.b16 %v170
      %v251 = vunpack.c.l.b16 %v171
      %v252 = vunpack.c.l.b16 %v172
      %v253 = vunpack.c.l.b16 %v173
      %v254 = vunpack.c.l.b16 %v174
      %v255 = vunpack.c.l.b16 %v175
      %v256 = vunpack.c.l.b16 %v176
      %v257 = vunpack.c.l.b16 %v177
      %v258 = vunpack.c.l.b16 %v178
      %v259 = vunpack.c.l.b16 %v179
      %v260 = vpack.c.b16 %v229, %v228
      %v261 = vpack.c.b16 %v231, %v230
      %v262 = vpack.c.b16 %v233, %v232
      %v263 = vpack.c.b16 %v235, %v234
      %v264 = vpack.c.b16 %v237, %v236
      %v265 = vpack.c.b16 %v239, %v238
      %v266 = vpack.c.b16 %v241, %v240
      %v267 = vpack.c.b16 %v243, %v242
      %v268 = vpack.c.b16 %v245, %v244
      %v269 = vpack.c.b16 %v247, %v246
      %v270 = vpack.c.b16 %v249, %v248
      %v271 = vpack.c.b16 %v251, %v250
      %v272 = vpack.c.b16 %v253, %v252
      %v273 = vpack.c.b16 %v255, %v254
      %v274 = vpack.c.b16 %v257, %v256
      %v275 = vpack.c.b16 %v259, %v258
      %v308 = vunpack.c.l.b16 %v180
      %v309 = vunpack.c.l.b16 %v181
      %v310 = vunpack.c.l.b16 %v182
      %v311 = vunpack.c.l.b16 %v183
      %v312 = vunpack.c.l.b16 %v184
      %v313 = vunpack.c.l.b16 %v185
      %v314 = vunpack.c.l.b16 %v186
      %v315 = vunpack.c.l.b16 %v187
      %v316 = vunpack.c.l.b16 %v188
      %v317 = vunpack.c.l.b16 %v189
      %v318 = vunpack.c.l.b16 %v190
      %v319 = vunpack.c.l.b16 %v191
      %v320 = vunpack.c.l.b16 %v192
      %v321 = vunpack.c.l.b16 %v193
      %v322 = vunpack.c.l.b16 %v194
      %v323 = vunpack.c.l.b16 %v195
      %v324 = vpack.c.b16 %v309, %v308
      %v325 = vpack.c.b16 %v311, %v310
      %v326 = vpack.c.b16 %v313, %v312
      %v327 = vpack.c.b16 %v315, %v314
      %v328 = vpack.c.b16 %v317, %v316
      %v329 = vpack.c.b16 %v319, %v318
      %v330 = vpack.c.b16 %v321, %v320
      %v331 = vpack.c.b16 %v323, %v322
      %340 = vmatprep.subr.bf16.mxu0 0
      %341 = vmatpush1.bf16.msra.mxu0 %v324
      %342 = vmatprep.subr.bf16.mxu0 0
      %343 = vmatpush1.bf16.msra.mxu0 %v325
      %344 = vmatprep.subr.bf16.mxu0 0
      %345 = vmatpush1.bf16.msra.mxu0 %v326
      %346 = vmatprep.subr.bf16.mxu0 0
      %347 = vmatpush1.bf16.msra.mxu0 %v327
      %348 = vmatprep.subr.bf16.mxu0 0
      %349 = vmatpush1.bf16.msra.mxu0 %v328
      %350 = vmatprep.subr.bf16.mxu0 0
      %351 = vmatpush1.bf16.msra.mxu0 %v329
      %352 = vmatprep.subr.bf16.mxu0 0
      %353 = vmatpush1.bf16.msra.mxu0 %v330
      %354 = vmatprep.subr.bf16.mxu0 0
      %355 = vmatpush1.bf16.msra.mxu0 %v331
      %356 = vmatprep.subr.bf16.mxu0 0
      %357 = vmatpush1.bf16.msra.mxu0 0
      %358 = vmatprep.subr.bf16.mxu0 0
      %359 = vmatpush1.bf16.msra.mxu0 0
      %360 = vmatprep.subr.bf16.mxu0 0
      %361 = vmatpush1.bf16.msra.mxu0 0
      %362 = vmatprep.subr.bf16.mxu0 0
      %363 = vmatpush1.bf16.msra.mxu0 0
      %364 = vmatprep.subr.bf16.mxu0 0
      %365 = vmatpush1.bf16.msra.mxu0 0
      %366 = vmatprep.subr.bf16.mxu0 0
      %367 = vmatpush1.bf16.msra.mxu0 0
      %368 = vmatprep.subr.bf16.mxu0 0
      %369 = vmatpush1.bf16.msra.mxu0 0
      %370 = vmatprep.subr.bf16.mxu0 0
      %371 = vmatpush1.bf16.msra.mxu0 0
      %372 = vmatprep.mubr.bf16.mxu0 0
      %373 = vmatmul.mubr.bf16.gmra.mrb[0].mxu0 %v260
      %v374 = vpop.f32.mrb[0].mxu0
      %v375 = vadd.f32 0.0, %v374
      %v376 = vpop.f32.mrb[0].mxu0
      %v377 = vpop.f32.mrb[0].mxu0
      %v378 = vadd.f32 0.0, %v377
      %v379 = vpop.f32.mrb[0].mxu0
      %380 = vmatprep.mubr.bf16.mxu0 0
      %381 = vmatmul.mubr.bf16.gmra.mrb[0].mxu0 %v261
      %v382 = vpop.f32.mrb[0].mxu0
      %v383 = vadd.f32 0.0, %v382
      %v384 = vpop.f32.mrb[0].mxu0
      %v385 = vpop.f32.mrb[0].mxu0
      %v386 = vadd.f32 0.0, %v385
      %v387 = vpop.f32.mrb[0].mxu0
      %388 = vmatprep.mubr.bf16.mxu0 0
      %389 = vmatmul.mubr.bf16.gmra.mrb[0].mxu0 %v262
      %v390 = vpop.f32.mrb[0].mxu0
      %v391 = vadd.f32 0.0, %v390
      %v392 = vpop.f32.mrb[0].mxu0
      %v393 = vpop.f32.mrb[0].mxu0
      %v394 = vadd.f32 0.0, %v393
      %v395 = vpop.f32.mrb[0].mxu0
      %396 = vmatprep.mubr.bf16.mxu0 0
      %397 = vmatmul.mubr.bf16.gmra.mrb[0].mxu0 %v263
      %v398 = vpop.f32.mrb[0].mxu0
      %v399 = vadd.f32 0.0, %v398
      %v400 = vpop.f32.mrb[0].mxu0
      %v401 = vpop.f32.mrb[0].mxu0
      %v402 = vadd.f32 0.0, %v401
      %v403 = vpop.f32.mrb[0].mxu0
      %404 = vmatprep.mubr.bf16.mxu0 0
      %405 = vmatmul.mubr.bf16.gmra.mrb[0].mxu0 %v264
      %v406 = vpop.f32.mrb[0].mxu0
      %v407 = vadd.f32 0.0, %v406
      %v408 = vpop.f32.mrb[0].mxu0
      %v409 = vpop.f32.mrb[0].mxu0
      %v410 = vadd.f32 0.0, %v409
      %v411 = vpop.f32.mrb[0].mxu0
      %412 = vmatprep.mubr.bf16.mxu0 0
      %413 = vmatmul.mubr.bf16.gmra.mrb[0].mxu0 %v265
      %v414 = vpop.f32.mrb[0].mxu0
      %v415 = vadd.f32 0.0, %v414
      %v416 = vpop.f32.mrb[0].mxu0
      %v417 = vpop.f32.mrb[0].mxu0
      %v418 = vadd.f32 0.0, %v417
      %v419 = vpop.f32.mrb[0].mxu0
      %420 = vmatprep.mubr.bf16.mxu0 0
      %421 = vmatmul.mubr.bf16.gmra.mrb[0].mxu0 %v266
      %v422 = vpop.f32.mrb[0].mxu0
      %v423 = vadd.f32 0.0, %v422
      %v424 = vpop.f32.mrb[0].mxu0
      %v425 = vpop.f32.mrb[0].mxu0
      %v426 = vadd.f32 0.0, %v425
      %v427 = vpop.f32.mrb[0].mxu0
      %428 = vmatprep.mubr.bf16.mxu0 0
      %429 = vmatmul.mubr.bf16.gmra.mrb[0].mxu0 %v267
      %v430 = vpop.f32.mrb[0].mxu0
      %v431 = vadd.f32 0.0, %v430
      %v432 = vpop.f32.mrb[0].mxu0
      %v433 = vpop.f32.mrb[0].mxu0
      %v434 = vadd.f32 0.0, %v433
      %v435 = vpop.f32.mrb[0].mxu0
      %436 = vmatprep.mubr.bf16.mxu0 0
      %437 = vmatmul.mubr.bf16.gmra.mrb[0].mxu0 %v268
      %v438 = vpop.f32.mrb[0].mxu0
      %v439 = vadd.f32 0.0, %v438
      %v440 = vpop.f32.mrb[0].mxu0
      %v441 = vpop.f32.mrb[0].mxu0
      %v442 = vadd.f32 0.0, %v441
      %v443 = vpop.f32.mrb[0].mxu0
      %444 = vmatprep.mubr.bf16.mxu0 0
      %445 = vmatmul.mubr.bf16.gmra.mrb[0].mxu0 %v269
      %v446 = vpop.f32.mrb[0].mxu0
      %v447 = vadd.f32 0.0, %v446
      %v448 = vpop.f32.mrb[0].mxu0
      %v449 = vpop.f32.mrb[0].mxu0
      %v450 = vadd.f32 0.0, %v449
      %v451 = vpop.f32.mrb[0].mxu0
      %452 = vmatprep.mubr.bf16.mxu0 0
      %453 = vmatmul.mubr.bf16.gmra.mrb[0].mxu0 %v270
      %v454 = vpop.f32.mrb[0].mxu0
      %v455 = vadd.f32 0.0, %v454
      %v456 = vpop.f32.mrb[0].mxu0
      %v457 = vpop.f32.mrb[0].mxu0
      %v458 = vadd.f32 0.0, %v457
      %v459 = vpop.f32.mrb[0].mxu0
      %460 = vmatprep.mubr.bf16.mxu0 0
      %461 = vmatmul.mubr.bf16.gmra.mrb[0].mxu0 %v271
      %v462 = vpop.f32.mrb[0].mxu0
      %v463 = vadd.f32 0.0, %v462
      %v464 = vpop.f32.mrb[0].mxu0
      %v465 = vpop.f32.mrb[0].mxu0
      %v466 = vadd.f32 0.0, %v465
      %v467 = vpop.f32.mrb[0].mxu0
      %468 = vmatprep.mubr.bf16.mxu0 0
      %469 = vmatmul.mubr.bf16.gmra.mrb[0].mxu0 %v272
      %v470 = vpop.f32.mrb[0].mxu0
      %v471 = vadd.f32 0.0, %v470
      %v472 = vpop.f32.mrb[0].mxu0
      %v473 = vpop.f32.mrb[0].mxu0
      %v474 = vadd.f32 0.0, %v473
      %v475 = vpop.f32.mrb[0].mxu0
      %476 = vmatprep.mubr.bf16.mxu0 0
      %477 = vmatmul.mubr.bf16.gmra.mrb[0].mxu0 %v273
      %v478 = vpop.f32.mrb[0].mxu0
      %v479 = vadd.f32 0.0, %v478
      %v480 = vpop.f32.mrb[0].mxu0
      %v481 = vpop.f32.mrb[0].mxu0
      %v482 = vadd.f32 0.0, %v481
      %v483 = vpop.f32.mrb[0].mxu0
      %484 = vmatprep.mubr.bf16.mxu0 0
      %485 = vmatmul.mubr.bf16.gmra.mrb[0].mxu0 %v274
      %v486 = vpop.f32.mrb[0].mxu0
      %v487 = vadd.f32 0.0, %v486
      %v488 = vpop.f32.mrb[0].mxu0
      %v489 = vpop.f32.mrb[0].mxu0
      %v490 = vadd.f32 0.0, %v489
      %v491 = vpop.f32.mrb[0].mxu0
      %492 = vmatprep.mubr.bf16.mxu0 0
      %493 = vmatmul.mubr.bf16.gmra.mrb[0].mxu0 %v275
      %v494 = vpop.f32.mrb[0].mxu0
      %v495 = vadd.f32 0.0, %v494
      %v496 = vpop.f32.mrb[0].mxu0
      %v497 = vpop.f32.mrb[0].mxu0
      %v498 = vadd.f32 0.0, %v497
      %v499 = vpop.f32.mrb[0].mxu0
      %500 = vdwg.mxu0
      %v501 = vpack.c.bf16 %v378, %v375
      %v502 = vpack.c.bf16 %v386, %v383
      %v503 = vpack.c.bf16 %v394, %v391
      %v504 = vpack.c.bf16 %v402, %v399
      %v505 = vpack.c.bf16 %v410, %v407
      %v506 = vpack.c.bf16 %v418, %v415
      %v507 = vpack.c.bf16 %v426, %v423
      %v508 = vpack.c.bf16 %v434, %v431
      %v509 = vpack.c.bf16 %v442, %v439
      %v510 = vpack.c.bf16 %v450, %v447
      %v511 = vpack.c.bf16 %v458, %v455
      %v512 = vpack.c.bf16 %v466, %v463
      %v513 = vpack.c.bf16 %v474, %v471
      %v514 = vpack.c.bf16 %v482, %v479
      %v515 = vpack.c.bf16 %v490, %v487
      %v516 = vpack.c.bf16 %v498, %v495
      %v533 = vunpack.c.l.b16 %v501
      %v534 = vunpack.c.h.b16 %v501
      %v535 = vunpack.c.l.b16 %v502
      %v536 = vunpack.c.h.b16 %v502
      %v537 = vunpack.c.l.b16 %v503
      %v538 = vunpack.c.h.b16 %v503
      %v539 = vunpack.c.l.b16 %v504
      %v540 = vunpack.c.h.b16 %v504
      %v541 = vunpack.c.l.b16 %v505
      %v542 = vunpack.c.h.b16 %v505
      %v543 = vunpack.c.l.b16 %v506
      %v544 = vunpack.c.h.b16 %v506
      %v545 = vunpack.c.l.b16 %v507
      %v546 = vunpack.c.h.b16 %v507
      %v547 = vunpack.c.l.b16 %v508
      %v548 = vunpack.c.h.b16 %v508
      %v549 = vunpack.c.l.b16 %v509
      %v550 = vunpack.c.h.b16 %v509
      %v551 = vunpack.c.l.b16 %v510
      %v552 = vunpack.c.h.b16 %v510
      %v553 = vunpack.c.l.b16 %v511
      %v554 = vunpack.c.h.b16 %v511
      %v555 = vunpack.c.l.b16 %v512
      %v556 = vunpack.c.h.b16 %v512
      %v557 = vunpack.c.l.b16 %v513
      %v558 = vunpack.c.h.b16 %v513
      %v559 = vunpack.c.l.b16 %v514
      %v560 = vunpack.c.h.b16 %v514
      %v561 = vunpack.c.l.b16 %v515
      %v562 = vunpack.c.h.b16 %v515
      %v563 = vunpack.c.l.b16 %v516
      %v564 = vunpack.c.h.b16 %v516
      %v565 = vpack.c.b16 %v533, %v533
      %v566 = vpack.c.b16 %v534, %v534
      %v567 = vpack.c.b16 %v535, %v535
      %v568 = vpack.c.b16 %v536, %v536
      %v569 = vpack.c.b16 %v537, %v537
      %v570 = vpack.c.b16 %v538, %v538
      %v571 = vpack.c.b16 %v539, %v539
      %v572 = vpack.c.b16 %v540, %v540
      %v573 = vpack.c.b16 %v541, %v541
      %v574 = vpack.c.b16 %v542, %v542
      %v575 = vpack.c.b16 %v543, %v543
      %v576 = vpack.c.b16 %v544, %v544
      %v577 = vpack.c.b16 %v545, %v545
      %v578 = vpack.c.b16 %v546, %v546
      %v579 = vpack.c.b16 %v547, %v547
      %v580 = vpack.c.b16 %v548, %v548
      %v581 = vpack.c.b16 %v549, %v549
      %v582 = vpack.c.b16 %v550, %v550
      %v583 = vpack.c.b16 %v551, %v551
      %v584 = vpack.c.b16 %v552, %v552
      %v585 = vpack.c.b16 %v553, %v553
      %v586 = vpack.c.b16 %v554, %v554
      %v587 = vpack.c.b16 %v555, %v555
      %v588 = vpack.c.b16 %v556, %v556
      %v589 = vpack.c.b16 %v557, %v557
      %v590 = vpack.c.b16 %v558, %v558
      %v591 = vpack.c.b16 %v559, %v559
      %v592 = vpack.c.b16 %v560, %v560
      %v593 = vpack.c.b16 %v561, %v561
      %v594 = vpack.c.b16 %v562, %v562
      %v595 = vpack.c.b16 %v563, %v563
      %v596 = vpack.c.b16 %v564, %v564
      %629 = vst [vmem:[%s145] sm:$0xf] %v565
      %630 = vst [vmem:[%s145 + $0x4] sm:$0xf] %v566
      %631 = vst [vmem:[%s145 + $0x8] sm:$0xf] %v567
      %632 = vst [vmem:[%s145 + $0xc] sm:$0xf] %v568
      %633 = vst [vmem:[%s145 + $0x10] sm:$0xf] %v569
      %634 = vst [vmem:[%s145 + $0x14] sm:$0xf] %v570
      %635 = vst [vmem:[%s145 + $0x18] sm:$0xf] %v571
      %636 = vst [vmem:[%s145 + $0x1c] sm:$0xf] %v572
      %637 = vst [vmem:[%s145 + $0x20] sm:$0xf] %v573
      %638 = vst [vmem:[%s145 + $0x24] sm:$0xf] %v574
      %639 = vst [vmem:[%s145 + $0x28] sm:$0xf] %v575
      %640 = vst [vmem:[%s145 + $0x2c] sm:$0xf] %v576
      %641 = vst [vmem:[%s145 + $0x30] sm:$0xf] %v577
      %642 = vst [vmem:[%s145 + $0x34] sm:$0xf] %v578
      %643 = vst [vmem:[%s145 + $0x38] sm:$0xf] %v579
      %644 = vst [vmem:[%s145 + $0x3c] sm:$0xf] %v580
      %645 = vst [vmem:[%s145 + $0x40] sm:$0xf] %v581
      %646 = vst [vmem:[%s145 + $0x44] sm:$0xf] %v582
      %647 = vst [vmem:[%s145 + $0x48] sm:$0xf] %v583
      %648 = vst [vmem:[%s145 + $0x4c] sm:$0xf] %v584
      %649 = vst [vmem:[%s145 + $0x50] sm:$0xf] %v585
      %650 = vst [vmem:[%s145 + $0x54] sm:$0xf] %v586
      %651 = vst [vmem:[%s145 + $0x58] sm:$0xf] %v587
      %652 = vst [vmem:[%s145 + $0x5c] sm:$0xf] %v588
      %653 = vst [vmem:[%s145 + $0x60] sm:$0xf] %v589
      %654 = vst [vmem:[%s145 + $0x64] sm:$0xf] %v590
      %655 = vst [vmem:[%s145 + $0x68] sm:$0xf] %v591
      %656 = vst [vmem:[%s145 + $0x6c] sm:$0xf] %v592
      %657 = vst [vmem:[%s145 + $0x70] sm:$0xf] %v593
      %658 = vst [vmem:[%s145 + $0x74] sm:$0xf] %v594
      %659 = vst [vmem:[%s145 + $0x78] sm:$0xf] %v595
      %660 = vst [vmem:[%s145 + $0x7c] sm:$0xf] %v596
      %s661 = smul.u32 32, %s13
      %p662 = scmp.lt.s32.totalorder %s661, 63
      %s663 = scalar_select %p662, %s661, 63
      %s664 = smul.addr %s663, 4
      %s665 = scalar_lea.vmem %s2, %s664
      // Predicated region
      $region29: #{graphsage_forward.4} parent=27 // pred_check
        %p666 = pneg %p78
      $region30: #{graphsage_forward.4} parent=27 // pred_check_branch
        %668 = sbr.rel (%p666) target = $region32
      $region31: #{graphsage_forward.4} parent=27 // pred_region
        %s669 = smul.u32 32, %s13
      $region32: #{graphsage_forward.4} parent=27 // pred_fallthru
        _
    $region28: #{graphsage_forward.4} parent=5 // pred_fallthru
      _
    %p670 = scmp.le.s32.totalorder 2, %s8
    // Predicated region
    $region33: #{graphsage_forward.4} parent=5 // pred_check
      %p671 = pneg %p670
    $region34: #{graphsage_forward.4} parent=5 // pred_check_branch
      %673 = sbr.rel (%p671) target = $region36
    $region35: #{graphsage_forward.4} parent=5 // pred_region
      %s674 = ssub.s32 %s8, 2
      // Predicated region
      $region37: #{graphsage_forward.4} parent=35 // pred_check
        %p675 = pneg %p84
      $region38: #{graphsage_forward.4} parent=35 // pred_check_branch
        %677 = sbr.rel (%p675) target = $region40
      $region39: #{graphsage_forward.4} parent=35 // pred_region
        %s678 = smul.u32 32, %s14
        %p679 = scmp.lt.s32.totalorder %s678, 63
        %s680 = scalar_select %p679, %s678, 63
        %s681 = smul.addr %s680, 4
        %s682 = scalar_lea.vmem %s2, %s681
      $region40: #{graphsage_forward.4} parent=35 // pred_fallthru
        _
    $region36: #{graphsage_forward.4} parent=5 // pred_fallthru
      _
  $region6: #{graphsage_forward.4} parent=0 // loop_footer
    %s12 = sadd.s32 1, %s8
  $region7: #{graphsage_forward.4} parent=0 // loop_footer_branch
    %7 = sbr.rel target = $region3
  $region8: #{graphsage_forward.4} parent=0 // loop_exit
    _

// kernel: graphsage_forward.5
$region0: #{graphsage_forward.5}
  #allocation0 [shape = 'u32[]', space=smem, size = 0x4, offset = 0x4, fixed_abs, tag = 'smem constant byte address 0x4 - core index']
  #allocation1 [shape = 'u32[144,128]{1,0:T(1,128)}', space=vmem, size = 0x12000, scoped, tag = 'internal scratch']
  #allocation2 [shape = 'f32[256,128]{1,0:T(8,128)}', space=vmem, size = 0x20000, scoped, tag = 'scratch operand']
  %s0 = inlined_call_operand.vmem [shape: bf16[512,512], index: 0, kind: input, shape index: {}]
  %s1 = inlined_call_operand.vmem [shape: bf16[512,128], index: 1, kind: input, shape index: {}]
  %s2 = inlined_call_operand.vmem [shape: bf16[512,128], index: 2, kind: input, shape index: {}]
  %s3 = inlined_call_operand.vmem [shape: bf16[128,128], index: 3, kind: input, shape index: {}]
  %s4 = inlined_call_operand.vmem [shape: f32[1,128], index: 4, kind: input, shape index: {}]
  %s5 = inlined_call_operand.vmem [shape: f32[512,1], index: 5, kind: input, shape index: {}]
  %s6 = inlined_call_operand.vmem [shape: bf16[512,128], index: 6, kind: output, shape index: {}]
  %s7 = sld [smem:[#allocation0]]
  $region65: #{graphsage_forward.5} parent=0
    _
  %s9 = ssub.s32 1, %s7
  %s10 = scalar_select 0, %s9, %s7
  loop: start=0, step=1, limit=4
  $region2: #{graphsage_forward.5} parent=0 // loop_pre_header
    _
  $region3: #{graphsage_forward.5} parent=0 // loop_header
    %s12 = sphi 0, %s16
    %p13 = scmp.ge.s32.totalorder %s12, 4
    %s19 = sphi 0, %s31
    %s20 = sphi 0, %s27
    %s21 = sphi 0, %s19
    %s22 = sphi 0, %s20
    %s23 = sphi 0, %s21
    %s24 = sphi 0, %s22
    %s36 = sphi 0, %s38
    %s39 = sphi 0, %s36
    %s40 = sphi 0, %s39
    %s56 = sphi 0, %s40
    %s60 = sphi 0, %s60
    %s62 = sphi 0, %s60
    %s63 = sphi 0, %s62
    %s77 = sphi 0, %s63
    %s83 = sphi 0, %s85
    %s86 = sphi 0, %s83
    %s87 = sphi 0, %s86
    %s103 = sphi 0, %s87
    %s107 = sphi 0, %s107
    %s109 = sphi 0, %s107
    %s110 = sphi 0, %s109
    %s124 = sphi 0, %s110
    %s128 = sphi 0, %s128
    %s130 = sphi 0, %s128
    %s131 = sphi 0, %s130
    %s145 = sphi 0, %s131
    %s151 = sphi 0, %s153
    %s154 = sphi 0, %s151
    %s155 = sphi 0, %s154
    %s171 = sphi 0, %s155
    %s177 = sphi 0, %s179
    %s180 = sphi 0, %s177
    %s181 = sphi 0, %s180
    %s197 = sphi 0, %s181
  $region4: #{graphsage_forward.5} parent=0 // loop_header_branch
    %15 = sbr.rel (%p13) target = $region8
  $region5: #{graphsage_forward.5} parent=0 // loop_body
    %s17 = ssub.s32 %s12, 1
    %s18 = ssub.s32 %s12, 2
    %s25 = sadd.s32 1, %s20
    %p26 = scmp.ge.s32.totalorder %s25, 1
    %s27 = scalar_select %p26, 0, %s25
    %s28 = sadd.s32 1, %s19
    %s29 = scalar_select %p26, %s28, %s19
    %p30 = scmp.ge.s32.totalorder %s29, 2
    %s31 = scalar_select %p30, 0, %s29
    %s32 = ssub.s32 %s19, %s31
    %s33 = ssub.s32 %s20, %s27
    %s34 = sor.u32 %s32, %s33
    %p35 = scmp.eq.s32.totalorder %s34, 0
    %s37 = sadd.s32 %s36, 1
    %s38 = scalar_select %p35, %s36, %s37
    %p41 = pneg %p35
    %p42 = scmp.eq.s32.totalorder %s12, 1
    %p43 = por %p41, %p42
    %p44 = scmp.ne.s32.totalorder %s36, %s39
    %p45 = scmp.eq.s32.totalorder %s12, 0
    %p46 = por %p44, %p45
    %p47 = scmp.ne.s32.totalorder %s36, %s39
    %p48 = scmp.eq.s32.totalorder %s17, 1
    %p49 = por %p47, %p48
    %p50 = scmp.ne.s32.totalorder %s39, %s40
    %p51 = scmp.eq.s32.totalorder %s17, 0
    %p52 = por %p50, %p51
    %p53 = scmp.ne.s32.totalorder %s39, %s40
    %p54 = scmp.eq.s32.totalorder %s18, 1
    %p55 = por %p53, %p54
    %p57 = scmp.ne.s32.totalorder %s40, %s56
    %p58 = scmp.eq.s32.totalorder %s18, 0
    %p59 = por %p57, %p58
    %s61 = sadd.s32 %s60, 1
    %p64 = scmp.eq.s32.totalorder %s12, 1
    %p65 = scmp.ne.s32.totalorder %s60, %s62
    %p66 = scmp.eq.s32.totalorder %s12, 0
    %p67 = por %p65, %p66
    %p68 = scmp.ne.s32.totalorder %s60, %s62
    %p69 = scmp.eq.s32.totalorder %s17, 1
    %p70 = por %p68, %p69
    %p71 = scmp.ne.s32.totalorder %s62, %s63
    %p72 = scmp.eq.s32.totalorder %s17, 0
    %p73 = por %p71, %p72
    %p74 = scmp.ne.s32.totalorder %s62, %s63
    %p75 = scmp.eq.s32.totalorder %s18, 1
    %p76 = por %p74, %p75
    %p78 = scmp.ne.s32.totalorder %s63, %s77
    %p79 = scmp.eq.s32.totalorder %s18, 0
    %p80 = por %p78, %p79
    %s81 = ssub.s32 %s19, %s31
    %p82 = scmp.eq.s32.totalorder %s81, 0
    %s84 = sadd.s32 %s83, 1
    %s85 = scalar_select %p82, %s83, %s84
    %p88 = pneg %p82
    %p89 = scmp.eq.s32.totalorder %s12, 1
    %p90 = por %p88, %p89
    %p91 = scmp.ne.s32.totalorder %s83, %s86
    %p92 = scmp.eq.s32.totalorder %s12, 0
    %p93 = por %p91, %p92
    %p94 = scmp.ne.s32.totalorder %s83, %s86
    %p95 = scmp.eq.s32.totalorder %s17, 1
    %p96 = por %p94, %p95
    %p97 = scmp.ne.s32.totalorder %s86, %s87
    %p98 = scmp.eq.s32.totalorder %s17, 0
    %p99 = por %p97, %p98
    %p100 = scmp.ne.s32.totalorder %s86, %s87
    %p101 = scmp.eq.s32.totalorder %s18, 1
    %p102 = por %p100, %p101
    %p104 = scmp.ne.s32.totalorder %s87, %s103
    %p105 = scmp.eq.s32.totalorder %s18, 0
    %p106 = por %p104, %p105
    %s108 = sadd.s32 %s107, 1
    %p111 = scmp.eq.s32.totalorder %s12, 1
    %p112 = scmp.ne.s32.totalorder %s107, %s109
    %p113 = scmp.eq.s32.totalorder %s12, 0
    %p114 = por %p112, %p113
    %p115 = scmp.ne.s32.totalorder %s107, %s109
    %p116 = scmp.eq.s32.totalorder %s17, 1
    %p117 = por %p115, %p116
    %p118 = scmp.ne.s32.totalorder %s109, %s110
    %p119 = scmp.eq.s32.totalorder %s17, 0
    %p120 = por %p118, %p119
    %p121 = scmp.ne.s32.totalorder %s109, %s110
    %p122 = scmp.eq.s32.totalorder %s18, 1
    %p123 = por %p121, %p122
    %p125 = scmp.ne.s32.totalorder %s110, %s124
    %p126 = scmp.eq.s32.totalorder %s18, 0
    %p127 = por %p125, %p126
    %s129 = sadd.s32 %s128, 1
    %p132 = scmp.eq.s32.totalorder %s12, 1
    %p133 = scmp.ne.s32.totalorder %s128, %s130
    %p134 = scmp.eq.s32.totalorder %s12, 0
    %p135 = por %p133, %p134
    %p136 = scmp.ne.s32.totalorder %s128, %s130
    %p137 = scmp.eq.s32.totalorder %s17, 1
    %p138 = por %p136, %p137
    %p139 = scmp.ne.s32.totalorder %s130, %s131
    %p140 = scmp.eq.s32.totalorder %s17, 0
    %p141 = por %p139, %p140
    %p142 = scmp.ne.s32.totalorder %s130, %s131
    %p143 = scmp.eq.s32.totalorder %s18, 1
    %p144 = por %p142, %p143
    %p146 = scmp.ne.s32.totalorder %s131, %s145
    %p147 = scmp.eq.s32.totalorder %s18, 0
    %p148 = por %p146, %p147
    %s149 = ssub.s32 %s19, %s31
    %p150 = scmp.eq.s32.totalorder %s149, 0
    %s152 = sadd.s32 %s151, 1
    %s153 = scalar_select %p150, %s151, %s152
    %p156 = pneg %p150
    %p157 = scmp.eq.s32.totalorder %s12, 1
    %p158 = por %p156, %p157
    %p159 = scmp.ne.s32.totalorder %s151, %s154
    %p160 = scmp.eq.s32.totalorder %s12, 0
    %p161 = por %p159, %p160
    %p162 = scmp.ne.s32.totalorder %s151, %s154
    %p163 = scmp.eq.s32.totalorder %s17, 1
    %p164 = por %p162, %p163
    %p165 = scmp.ne.s32.totalorder %s154, %s155
    %p166 = scmp.eq.s32.totalorder %s17, 0
    %p167 = por %p165, %p166
    %p168 = scmp.ne.s32.totalorder %s154, %s155
    %p169 = scmp.eq.s32.totalorder %s18, 1
    %p170 = por %p168, %p169
    %p172 = scmp.ne.s32.totalorder %s155, %s171
    %p173 = scmp.eq.s32.totalorder %s18, 0
    %p174 = por %p172, %p173
    %s175 = ssub.s32 %s19, %s31
    %p176 = scmp.eq.s32.totalorder %s175, 0
    %s178 = sadd.s32 %s177, 1
    %s179 = scalar_select %p176, %s177, %s178
    %p182 = pneg %p176
    %p183 = scmp.eq.s32.totalorder %s12, 1
    %p184 = por %p182, %p183
    %p185 = scmp.ne.s32.totalorder %s177, %s180
    %p186 = scmp.eq.s32.totalorder %s12, 0
    %p187 = por %p185, %p186
    %p188 = scmp.ne.s32.totalorder %s177, %s180
    %p189 = scmp.eq.s32.totalorder %s17, 1
    %p190 = por %p188, %p189
    %p191 = scmp.ne.s32.totalorder %s180, %s181
    %p192 = scmp.eq.s32.totalorder %s17, 0
    %p193 = por %p191, %p192
    %p194 = scmp.ne.s32.totalorder %s180, %s181
    %p195 = scmp.eq.s32.totalorder %s18, 1
    %p196 = por %p194, %p195
    %p198 = scmp.ne.s32.totalorder %s181, %s197
    %p199 = scmp.eq.s32.totalorder %s18, 0
    %p200 = por %p198, %p199
    %p201 = scmp.le.s32.totalorder 1, %s12
    %p202 = scmp.lt.s32.totalorder %s12, 3
    %p203 = pnand %p201, %p202
    %p204 = pneg %p203
    // Predicated region
    $region9: #{graphsage_forward.5} parent=5 // pred_check
      _
    $region10: #{graphsage_forward.5} parent=5 // pred_check_branch
      %206 = sbr.rel (%p203) target = $region12
    $region11: #{graphsage_forward.5} parent=5 // pred_region
      %s207 = ssub.s32 %s12, 1
      // Predicated region
      $region13: #{graphsage_forward.5} parent=11 // pred_check
        %p208 = pneg %p73
      $region14: #{graphsage_forward.5} parent=11 // pred_check_branch
        %210 = sbr.rel (%p208) target = $region16
      $region15: #{graphsage_forward.5} parent=11 // pred_region
        _
      $region16: #{graphsage_forward.5} parent=11 // pred_fallthru
        _
      // Predicated region
      $region17: #{graphsage_forward.5} parent=11 // pred_check
        %p211 = pneg %p120
      $region18: #{graphsage_forward.5} parent=11 // pred_check_branch
        %213 = sbr.rel (%p211) target = $region20
      $region19: #{graphsage_forward.5} parent=11 // pred_region
        _
      $region20: #{graphsage_forward.5} parent=11 // pred_fallthru
        _
      // Predicated region
      $region21: #{graphsage_forward.5} parent=11 // pred_check
        %p214 = pneg %p141
      $region22: #{graphsage_forward.5} parent=11 // pred_check_branch
        %216 = sbr.rel (%p214) target = $region24
      $region23: #{graphsage_forward.5} parent=11 // pred_region
        _
      $region24: #{graphsage_forward.5} parent=11 // pred_fallthru
        _
    $region12: #{graphsage_forward.5} parent=5 // pred_fallthru
      _
    %p217 = scmp.lt.s32.totalorder %s12, 2
    // Predicated region
    $region25: #{graphsage_forward.5} parent=5 // pred_check
      %p218 = pneg %p217
    $region26: #{graphsage_forward.5} parent=5 // pred_check_branch
      %220 = sbr.rel (%p218) target = $region28
    $region27: #{graphsage_forward.5} parent=5 // pred_region
      // Predicated region
      $region29: #{graphsage_forward.5} parent=27 // pred_check
        %p221 = pneg %p46
      $region30: #{graphsage_forward.5} parent=27 // pred_check_branch
        %223 = sbr.rel (%p221) target = $region32
      $region31: #{graphsage_forward.5} parent=27 // pred_region
        %s224 = smul.u32 32, %s19
        %s225 = smul.u32 4, %s20
        %p226 = scmp.lt.s32.totalorder %s224, 63
        %s227 = scalar_select %p226, %s224, 63
        %p228 = scmp.lt.s32.totalorder %s225, 3
        %s229 = scalar_select %p228, %s225, 3
        %s230 = smul.addr %s227, 4
        %s231 = sadd.s32 %s229, %s230
        %s232 = smul.addr %s231, 4
        %s233 = scalar_lea.vmem %s0, %s232
        %s234 = smul.u32 32, %s19
        %s235 = smul.u32 4, %s20
      $region32: #{graphsage_forward.5} parent=27 // pred_fallthru
        _
      // Predicated region
      $region33: #{graphsage_forward.5} parent=27 // pred_check
        %p236 = pneg %p93
      $region34: #{graphsage_forward.5} parent=27 // pred_check_branch
        %238 = sbr.rel (%p236) target = $region36
      $region35: #{graphsage_forward.5} parent=27 // pred_region
        %s239 = smul.u32 32, %s19
        %p240 = scmp.lt.s32.totalorder %s239, 63
        %s241 = scalar_select %p240, %s239, 63
        %s242 = smul.addr %s241, 4
        %s243 = scalar_lea.vmem %s2, %s242
        %s244 = smul.u32 32, %s19
      $region36: #{graphsage_forward.5} parent=27 // pred_fallthru
        _
      // Predicated region
      $region37: #{graphsage_forward.5} parent=27 // pred_check
        %p245 = pneg %p161
      $region38: #{graphsage_forward.5} parent=27 // pred_check_branch
        %247 = sbr.rel (%p245) target = $region40
      $region39: #{graphsage_forward.5} parent=27 // pred_region
        %s248 = smul.u32 32, %s19
        %p249 = scmp.lt.s32.totalorder %s248, 63
        %s250 = scalar_select %p249, %s248, 63
        %s251 = smul.addr %s250, 8
        %s252 = scalar_lea.vmem %s5, %s251
        %s253 = smul.u32 32, %s19
      $region40: #{graphsage_forward.5} parent=27 // pred_fallthru
        _
    $region28: #{graphsage_forward.5} parent=5 // pred_fallthru
      _
    %p254 = scmp.le.s32.totalorder 1, %s12
    %p255 = scmp.lt.s32.totalorder %s12, 3
    %p256 = pnand %p254, %p255
    %p257 = pneg %p256
    // Predicated region
    $region41: #{graphsage_forward.5} parent=5 // pred_check
      _
    $region42: #{graphsage_forward.5} parent=5 // pred_check_branch
      %259 = sbr.rel (%p256) target = $region44
    $region43: #{graphsage_forward.5} parent=5 // pred_region
      %s260 = ssub.s32 %s12, 1
      %s261 = smul.u32 32, %s21
      %s262 = smul.u32 4, %s22
      %p263 = scmp.lt.s32.totalorder %s261, 63
      %s264 = scalar_select %p263, %s261, 63
      %p265 = scmp.lt.s32.totalorder %s262, 3
      %s266 = scalar_select %p265, %s262, 3
      %s267 = smul.addr %s264, 4
      %s268 = sadd.s32 %s266, %s267
      %s269 = smul.addr %s268, 4
      %s270 = scalar_lea.vmem %s0, %s269
      %p271 = pneg %p52
      %p272 = pneg %p49
      %p273 = pneg %p73
      %p274 = pneg %p70
      %s275 = smul.u32 32, %s21
      %p276 = scmp.lt.s32.totalorder %s275, 63
      %s277 = scalar_select %p276, %s275, 63
      %s278 = smul.addr %s277, 4
      %s279 = scalar_lea.vmem %s2, %s278
      %p280 = pneg %p99
      %p281 = pneg %p96
      %p282 = pneg %p120
      %p283 = pneg %p117
      %p284 = pneg %p141
      %p285 = pneg %p138
      %s286 = smul.u32 32, %s21
      %p287 = scmp.lt.s32.totalorder %s286, 63
      %s288 = scalar_select %p287, %s286, 63
      %s289 = smul.addr %s288, 8
      %s290 = scalar_lea.vmem %s5, %s289
      %p291 = pneg %p167
      %p292 = pneg %p164
      %p293 = pneg %p193
      %p294 = pneg %p190
      %s295 = smul.u32 32, %s21
      %p296 = scmp.lt.s32.totalorder %s295, 63
      %s297 = scalar_select %p296, %s295, 63
      %s298 = smul.addr %s297, 4
      %s299 = scalar_lea.vmem %s6, %s298
      %s300 = smul.u32 32, %s21
      %s301 = smul.u32 4, %s22
      %p302 = scmp.lt.s32.totalorder %s300, 63
      %s303 = scalar_select %p302, %s300, 63
      %p304 = scmp.lt.s32.totalorder %s301, 3
      %s305 = scalar_select %p304, %s301, 3
      %s306 = smul.addr %s303, 4
      %s307 = sadd.s32 %s305, %s306
      %s308 = smul.addr %s307, 4
      %s309 = scalar_lea.vmem %s0, %s308
      %s310 = smul.u32 32, %s21
      %s311 = smul.u32 4, %s22
      %s312 = smul.u32 32, %s21
      %p313 = scmp.lt.s32.totalorder %s312, 63
      %s314 = scalar_select %p313, %s312, 63
      %s315 = smul.addr %s314, 4
      %s316 = scalar_lea.vmem %s2, %s315
      %s317 = smul.u32 32, %s21
      %s318 = smul.u32 32, %s21
      %p319 = scmp.lt.s32.totalorder %s318, 63
      %s320 = scalar_select %p319, %s318, 63
      %s321 = smul.addr %s320, 8
      %s322 = scalar_lea.vmem %s5, %s321
      %s323 = smul.u32 32, %s21
      %s324 = smul.u32 32, %s21
      %p325 = scmp.lt.s32.totalorder %s324, 63
      %s326 = scalar_select %p325, %s324, 63
      %s327 = smul.addr %s326, 4
      %s328 = scalar_lea.vmem %s6, %s327
      %s329 = smul.u32 32, %s21
      %p331 = scmp.eq.s32.totalorder %s22, 0
      // Predicated region
      $region45: #{graphsage_forward.5} parent=43 // pred_check
        %p332 = pneg %p331
      $region46: #{graphsage_forward.5} parent=43 // pred_check_branch
        %334 = sbr.rel (%p332) target = $region48
      $region47: #{graphsage_forward.5} parent=43 // pred_region
        %335 = vst [vmem:[#allocation2] sm:$0xff] 0.0
        %336 = vst [vmem:[#allocation2 + $0x8] sm:$0xff] 0.0
        %337 = vst [vmem:[#allocation2 + $0x10] sm:$0xff] 0.0
        %338 = vst [vmem:[#allocation2 + $0x18] sm:$0xff] 0.0
        %339 = vst [vmem:[#allocation2 + $0x20] sm:$0xff] 0.0
        %340 = vst [vmem:[#allocation2 + $0x28] sm:$0xff] 0.0
        %341 = vst [vmem:[#allocation2 + $0x30] sm:$0xff] 0.0
        %342 = vst [vmem:[#allocation2 + $0x38] sm:$0xff] 0.0
        %343 = vst [vmem:[#allocation2 + $0x40] sm:$0xff] 0.0
        %344 = vst [vmem:[#allocation2 + $0x48] sm:$0xff] 0.0
        %345 = vst [vmem:[#allocation2 + $0x50] sm:$0xff] 0.0
        %346 = vst [vmem:[#allocation2 + $0x58] sm:$0xff] 0.0
        %347 = vst [vmem:[#allocation2 + $0x60] sm:$0xff] 0.0
        %348 = vst [vmem:[#allocation2 + $0x68] sm:$0xff] 0.0
        %349 = vst [vmem:[#allocation2 + $0x70] sm:$0xff] 0.0
        %350 = vst [vmem:[#allocation2 + $0x78] sm:$0xff] 0.0
        %351 = vst [vmem:[#allocation2 + $0x80] sm:$0xff] 0.0
        %352 = vst [vmem:[#allocation2 + $0x88] sm:$0xff] 0.0
        %353 = vst [vmem:[#allocation2 + $0x90] sm:$0xff] 0.0
        %354 = vst [vmem:[#allocation2 + $0x98] sm:$0xff] 0.0
        %355 = vst [vmem:[#allocation2 + $0xa0] sm:$0xff] 0.0
        %356 = vst [vmem:[#allocation2 + $0xa8] sm:$0xff] 0.0
        %357 = vst [vmem:[#allocation2 + $0xb0] sm:$0xff] 0.0
        %358 = vst [vmem:[#allocation2 + $0xb8] sm:$0xff] 0.0
        %359 = vst [vmem:[#allocation2 + $0xc0] sm:$0xff] 0.0
        %360 = vst [vmem:[#allocation2 + $0xc8] sm:$0xff] 0.0
        %361 = vst [vmem:[#allocation2 + $0xd0] sm:$0xff] 0.0
        %362 = vst [vmem:[#allocation2 + $0xd8] sm:$0xff] 0.0
        %363 = vst [vmem:[#allocation2 + $0xe0] sm:$0xff] 0.0
        %364 = vst [vmem:[#allocation2 + $0xe8] sm:$0xff] 0.0
        %365 = vst [vmem:[#allocation2 + $0xf0] sm:$0xff] 0.0
        %366 = vst [vmem:[#allocation2 + $0xf8] sm:$0xff] 0.0
      $region48: #{graphsage_forward.5} parent=43 // pred_fallthru
        _
      %s367 = smul.u32 %s22, 512
      %s368 = sshra.s32 %s367, 3
      %s369 = sand.u32 %s367, 7
      %s370 = smul.addr %s368, 4
      %s371 = scalar_lea.vmem %s1, %s370
      %v372 = vld [vmem:[%s371] sm:$0xf]
      %v373 = vld [vmem:[%s371 + $0x4] sm:$0xf]
      %v374 = vld [vmem:[%s371 + $0x8] sm:$0xf]
      %v375 = vld [vmem:[%s371 + $0xc] sm:$0xf]
      %v376 = vld [vmem:[%s371 + $0x10] sm:$0xf]
      %v377 = vld [vmem:[%s371 + $0x14] sm:$0xf]
      %v378 = vld [vmem:[%s371 + $0x18] sm:$0xf]
      %v379 = vld [vmem:[%s371 + $0x1c] sm:$0xf]
      %v380 = vld [vmem:[%s371 + $0x20] sm:$0xf]
      %v381 = vld [vmem:[%s371 + $0x24] sm:$0xf]
      %v382 = vld [vmem:[%s371 + $0x28] sm:$0xf]
      %v383 = vld [vmem:[%s371 + $0x2c] sm:$0xf]
      %v384 = vld [vmem:[%s371 + $0x30] sm:$0xf]
      %v385 = vld [vmem:[%s371 + $0x34] sm:$0xf]
      %v386 = vld [vmem:[%s371 + $0x38] sm:$0xf]
      %v387 = vld [vmem:[%s371 + $0x3c] sm:$0xf]
      %v388 = vld [vmem:[%s371 + $0x40] sm:$0xf]
      %v389 = vld [vmem:[%s371 + $0x44] sm:$0xf]
      %v390 = vld [vmem:[%s371 + $0x48] sm:$0xf]
      %v391 = vld [vmem:[%s371 + $0x4c] sm:$0xf]
      %v392 = vld [vmem:[%s371 + $0x50] sm:$0xf]
      %v393 = vld [vmem:[%s371 + $0x54] sm:$0xf]
      %v394 = vld [vmem:[%s371 + $0x58] sm:$0xf]
      %v395 = vld [vmem:[%s371 + $0x5c] sm:$0xf]
      %v396 = vld [vmem:[%s371 + $0x60] sm:$0xf]
      %v397 = vld [vmem:[%s371 + $0x64] sm:$0xf]
      %v398 = vld [vmem:[%s371 + $0x68] sm:$0xf]
      %v399 = vld [vmem:[%s371 + $0x6c] sm:$0xf]
      %v400 = vld [vmem:[%s371 + $0x70] sm:$0xf]
      %v401 = vld [vmem:[%s371 + $0x74] sm:$0xf]
      %v402 = vld [vmem:[%s371 + $0x78] sm:$0xf]
      %v403 = vld [vmem:[%s371 + $0x7c] sm:$0xf]
      %v404 = vld [vmem:[%s371 + $0x80] sm:$0xf]
      %v405 = vld [vmem:[%s371 + $0x84] sm:$0xf]
      %v406 = vld [vmem:[%s371 + $0x88] sm:$0xf]
      %v407 = vld [vmem:[%s371 + $0x8c] sm:$0xf]
      %v408 = vld [vmem:[%s371 + $0x90] sm:$0xf]
      %v409 = vld [vmem:[%s371 + $0x94] sm:$0xf]
      %v410 = vld [vmem:[%s371 + $0x98] sm:$0xf]
      %v411 = vld [vmem:[%s371 + $0x9c] sm:$0xf]
      %v412 = vld [vmem:[%s371 + $0xa0] sm:$0xf]
      %v413 = vld [vmem:[%s371 + $0xa4] sm:$0xf]
      %v414 = vld [vmem:[%s371 + $0xa8] sm:$0xf]
      %v415 = vld [vmem:[%s371 + $0xac] sm:$0xf]
      %v416 = vld [vmem:[%s371 + $0xb0] sm:$0xf]
      %v417 = vld [vmem:[%s371 + $0xb4] sm:$0xf]
      %v418 = vld [vmem:[%s371 + $0xb8] sm:$0xf]
      %v419 = vld [vmem:[%s371 + $0xbc] sm:$0xf]
      %v420 = vld [vmem:[%s371 + $0xc0] sm:$0xf]
      %v421 = vld [vmem:[%s371 + $0xc4] sm:$0xf]
      %v422 = vld [vmem:[%s371 + $0xc8] sm:$0xf]
      %v423 = vld [vmem:[%s371 + $0xcc] sm:$0xf]
      %v424 = vld [vmem:[%s371 + $0xd0] sm:$0xf]
      %v425 = vld [vmem:[%s371 + $0xd4] sm:$0xf]
      %v426 = vld [vmem:[%s371 + $0xd8] sm:$0xf]
      %v427 = vld [vmem:[%s371 + $0xdc] sm:$0xf]
      %v428 = vld [vmem:[%s371 + $0xe0] sm:$0xf]
      %v429 = vld [vmem:[%s371 + $0xe4] sm:$0xf]
      %v430 = vld [vmem:[%s371 + $0xe8] sm:$0xf]
      %v431 = vld [vmem:[%s371 + $0xec] sm:$0xf]
      %v432 = vld [vmem:[%s371 + $0xf0] sm:$0xf]
      %v433 = vld [vmem:[%s371 + $0xf4] sm:$0xf]
      %v434 = vld [vmem:[%s371 + $0xf8] sm:$0xf]
      %v435 = vld [vmem:[%s371 + $0xfc] sm:$0xf]
      %v436 = vld [vmem:[#allocation2] sm:$0xff]
      %v437 = vld [vmem:[#allocation2 + $0x8] sm:$0xff]
      %v438 = vld [vmem:[#allocation2 + $0x10] sm:$0xff]
      %v439 = vld [vmem:[#allocation2 + $0x18] sm:$0xff]
      %v440 = vld [vmem:[#allocation2 + $0x20] sm:$0xff]
      %v441 = vld [vmem:[#allocation2 + $0x28] sm:$0xff]
      %v442 = vld [vmem:[#allocation2 + $0x30] sm:$0xff]
      %v443 = vld [vmem:[#allocation2 + $0x38] sm:$0xff]
      %v444 = vld [vmem:[#allocation2 + $0x40] sm:$0xff]
      %v445 = vld [vmem:[#allocation2 + $0x48] sm:$0xff]
      %v446 = vld [vmem:[#allocation2 + $0x50] sm:$0xff]
      %v447 = vld [vmem:[#allocation2 + $0x58] sm:$0xff]
      %v448 = vld [vmem:[#allocation2 + $0x60] sm:$0xff]
      %v449 = vld [vmem:[#allocation2 + $0x68] sm:$0xff]
      %v450 = vld [vmem:[#allocation2 + $0x70] sm:$0xff]
      %v451 = vld [vmem:[#allocation2 + $0x78] sm:$0xff]
      %v452 = vld [vmem:[#allocation2 + $0x80] sm:$0xff]
      %v453 = vld [vmem:[#allocation2 + $0x88] sm:$0xff]
      %v454 = vld [vmem:[#allocation2 + $0x90] sm:$0xff]
      %v455 = vld [vmem:[#allocation2 + $0x98] sm:$0xff]
      %v456 = vld [vmem:[#allocation2 + $0xa0] sm:$0xff]
      %v457 = vld [vmem:[#allocation2 + $0xa8] sm:$0xff]
      %v458 = vld [vmem:[#allocation2 + $0xb0] sm:$0xff]
      %v459 = vld [vmem:[#allocation2 + $0xb8] sm:$0xff]
      %v460 = vld [vmem:[#allocation2 + $0xc0] sm:$0xff]
      %v461 = vld [vmem:[#allocation2 + $0xc8] sm:$0xff]
      %v462 = vld [vmem:[#allocation2 + $0xd0] sm:$0xff]
      %v463 = vld [vmem:[#allocation2 + $0xd8] sm:$0xff]
      %v464 = vld [vmem:[#allocation2 + $0xe0] sm:$0xff]
      %v465 = vld [vmem:[#allocation2 + $0xe8] sm:$0xff]
      %v466 = vld [vmem:[#allocation2 + $0xf0] sm:$0xff]
      %v467 = vld [vmem:[#allocation2 + $0xf8] sm:$0xff]
      %v468 = vld [vmem:[%s309] sm:$0xff]
      %v469 = vld [vmem:[%s309 + $0x8] sm:$0xff]
      %v470 = vld [vmem:[%s309 + $0x10] sm:$0xff]
      %v471 = vld [vmem:[%s309 + $0x18] sm:$0xff]
      %v472 = vld [vmem:[%s309 + $0x20] sm:$0xff]
      %v473 = vld [vmem:[%s309 + $0x28] sm:$0xff]
      %v474 = vld [vmem:[%s309 + $0x30] sm:$0xff]
      %v475 = vld [vmem:[%s309 + $0x38] sm:$0xff]
      %v476 = vld [vmem:[%s309 + $0x40] sm:$0xff]
      %v477 = vld [vmem:[%s309 + $0x48] sm:$0xff]
      %v478 = vld [vmem:[%s309 + $0x50] sm:$0xff]
      %v479 = vld [vmem:[%s309 + $0x58] sm:$0xff]
      %v480 = vld [vmem:[%s309 + $0x60] sm:$0xff]
      %v481 = vld [vmem:[%s309 + $0x68] sm:$0xff]
      %v482 = vld [vmem:[%s309 + $0x70] sm:$0xff]
      %v483 = vld [vmem:[%s309 + $0x78] sm:$0xff]
      %v484 = vld [vmem:[%s309 + $0x80] sm:$0xff]
      %v485 = vld [vmem:[%s309 + $0x88] sm:$0xff]
      %v486 = vld [vmem:[%s309 + $0x90] sm:$0xff]
      %v487 = vld [vmem:[%s309 + $0x98] sm:$0xff]
      %v488 = vld [vmem:[%s309 + $0xa0] sm:$0xff]
      %v489 = vld [vmem:[%s309 + $0xa8] sm:$0xff]
      %v490 = vld [vmem:[%s309 + $0xb0] sm:$0xff]
      %v491 = vld [vmem:[%s309 + $0xb8] sm:$0xff]
      %v492 = vld [vmem:[%s309 + $0xc0] sm:$0xff]
      %v493 = vld [vmem:[%s309 + $0xc8] sm:$0xff]
      %v494 = vld [vmem:[%s309 + $0xd0] sm:$0xff]
      %v495 = vld [vmem:[%s309 + $0xd8] sm:$0xff]
      %v496 = vld [vmem:[%s309 + $0xe0] sm:$0xff]
      %v497 = vld [vmem:[%s309 + $0xe8] sm:$0xff]
      %v498 = vld [vmem:[%s309 + $0xf0] sm:$0xff]
      %v499 = vld [vmem:[%s309 + $0xf8] sm:$0xff]
      %v500 = vld [vmem:[%s309 + $0x100] sm:$0xff]
      %v501 = vld [vmem:[%s309 + $0x108] sm:$0xff]
      %v502 = vld [vmem:[%s309 + $0x110] sm:$0xff]
      %v503 = vld [vmem:[%s309 + $0x118] sm:$0xff]
      %v504 = vld [vmem:[%s309 + $0x120] sm:$0xff]
      %v505 = vld [vmem:[%s309 + $0x128] sm:$0xff]
      %v506 = vld [vmem:[%s309 + $0x130] sm:$0xff]
      %v507 = vld [vmem:[%s309 + $0x138] sm:$0xff]
      %v508 = vld [vmem:[%s309 + $0x140] sm:$0xff]
      %v509 = vld [vmem:[%s309 + $0x148] sm:$0xff]
      %v510 = vld [vmem:[%s309 + $0x150] sm:$0xff]
      %v511 = vld [vmem:[%s309 + $0x158] sm:$0xff]
      %v512 = vld [vmem:[%s309 + $0x160] sm:$0xff]
      %v513 = vld [vmem:[%s309 + $0x168] sm:$0xff]
      %v514 = vld [vmem:[%s309 + $0x170] sm:$0xff]
      %v515 = vld [vmem:[%s309 + $0x178] sm:$0xff]
      %v516 = vld [vmem:[%s309 + $0x180] sm:$0xff]
      %v517 = vld [vmem:[%s309 + $0x188] sm:$0xff]
      %v518 = vld [vmem:[%s309 + $0x190] sm:$0xff]
      %v519 = vld [vmem:[%s309 + $0x198] sm:$0xff]
      %v520 = vld [vmem:[%s309 + $0x1a0] sm:$0xff]
      %v521 = vld [vmem:[%s309 + $0x1a8] sm:$0xff]
      %v522 = vld [vmem:[%s309 + $0x1b0] sm:$0xff]
      %v523 = vld [vmem:[%s309 + $0x1b8] sm:$0xff]
      %v524 = vld [vmem:[%s309 + $0x1c0] sm:$0xff]
      %v525 = vld [vmem:[%s309 + $0x1c8] sm:$0xff]
      %v526 = vld [vmem:[%s309 + $0x1d0] sm:$0xff]
      %v527 = vld [vmem:[%s309 + $0x1d8] sm:$0xff]
      %v528 = vld [vmem:[%s309 + $0x1e0] sm:$0xff]
      %v529 = vld [vmem:[%s309 + $0x1e8] sm:$0xff]
      %v530 = vld [vmem:[%s309 + $0x1f0] sm:$0xff]
      %v531 = vld [vmem:[%s309 + $0x1f8] sm:$0xff]
      %v596 = vunpack.c.l.b16 %v468
      %v597 = vunpack.c.h.b16 %v468
      %v598 = vunpack.c.l.b16 %v469
      %v599 = vunpack.c.h.b16 %v469
      %v600 = vunpack.c.l.b16 %v470
      %v601 = vunpack.c.h.b16 %v470
      %v602 = vunpack.c.l.b16 %v471
      %v603 = vunpack.c.h.b16 %v471
      %v604 = vunpack.c.l.b16 %v472
      %v605 = vunpack.c.h.b16 %v472
      %v606 = vunpack.c.l.b16 %v473
      %v607 = vunpack.c.h.b16 %v473
      %v608 = vunpack.c.l.b16 %v474
      %v609 = vunpack.c.h.b16 %v474
      %v610 = vunpack.c.l.b16 %v475
      %v611 = vunpack.c.h.b16 %v475
      %v612 = vunpack.c.l.b16 %v476
      %v613 = vunpack.c.h.b16 %v476
      %v614 = vunpack.c.l.b16 %v477
      %v615 = vunpack.c.h.b16 %v477
      %v616 = vunpack.c.l.b16 %v478
      %v617 = vunpack.c.h.b16 %v478
      %v618 = vunpack.c.l.b16 %v479
      %v619 = vunpack.c.h.b16 %v479
      %v620 = vunpack.c.l.b16 %v480
      %v621 = vunpack.c.h.b16 %v480
      %v622 = vunpack.c.l.b16 %v481
      %v623 = vunpack.c.h.b16 %v481
      %v624 = vunpack.c.l.b16 %v482
      %v625 = vunpack.c.h.b16 %v482
      %v626 = vunpack.c.l.b16 %v483
      %v627 = vunpack.c.h.b16 %v483
      %v628 = vunpack.c.l.b16 %v484
      %v629 = vunpack.c.h.b16 %v484
      %v630 = vunpack.c.l.b16 %v485
      %v631 = vunpack.c.h.b16 %v485
      %v632 = vunpack.c.l.b16 %v486
      %v633 = vunpack.c.h.b16 %v486
      %v634 = vunpack.c.l.b16 %v487
      %v635 = vunpack.c.h.b16 %v487
      %v636 = vunpack.c.l.b16 %v488
      %v637 = vunpack.c.h.b16 %v488
      %v638 = vunpack.c.l.b16 %v489
      %v639 = vunpack.c.h.b16 %v489
      %v640 = vunpack.c.l.b16 %v490
      %v641 = vunpack.c.h.b16 %v490
      %v642 = vunpack.c.l.b16 %v491
      %v643 = vunpack.c.h.b16 %v491
      %v644 = vunpack.c.l.b16 %v492
      %v645 = vunpack.c.h.b16 %v492
      %v646 = vunpack.c.l.b16 %v493
      %v647 = vunpack.c.h.b16 %v493
      %v648 = vunpack.c.l.b16 %v494
      %v649 = vunpack.c.h.b16 %v494
      %v650 = vunpack.c.l.b16 %v495
      %v651 = vunpack.c.h.b16 %v495
      %v652 = vunpack.c.l.b16 %v496
      %v653 = vunpack.c.h.b16 %v496
      %v654 = vunpack.c.l.b16 %v497
      %v655 = vunpack.c.h.b16 %v497
      %v656 = vunpack.c.l.b16 %v498
      %v657 = vunpack.c.h.b16 %v498
      %v658 = vunpack.c.l.b16 %v499
      %v659 = vunpack.c.h.b16 %v499
      %v660 = vunpack.c.l.b16 %v500
      %v661 = vunpack.c.h.b16 %v500
      %v662 = vunpack.c.l.b16 %v501
      %v663 = vunpack.c.h.b16 %v501
      %v664 = vunpack.c.l.b16 %v502
      %v665 = vunpack.c.h.b16 %v502
      %v666 = vunpack.c.l.b16 %v503
      %v667 = vunpack.c.h.b16 %v503
      %v668 = vunpack.c.l.b16 %v504
      %v669 = vunpack.c.h.b16 %v504
      %v670 = vunpack.c.l.b16 %v505
      %v671 = vunpack.c.h.b16 %v505
      %v672 = vunpack.c.l.b16 %v506
      %v673 = vunpack.c.h.b16 %v506
      %v674 = vunpack.c.l.b16 %v507
      %v675 = vunpack.c.h.b16 %v507
      %v676 = vunpack.c.l.b16 %v508
      %v677 = vunpack.c.h.b16 %v508
      %v678 = vunpack.c.l.b16 %v509
      %v679 = vunpack.c.h.b16 %v509
      %v680 = vunpack.c.l.b16 %v510
      %v681 = vunpack.c.h.b16 %v510
      %v682 = vunpack.c.l.b16 %v511
      %v683 = vunpack.c.h.b16 %v511
      %v684 = vunpack.c.l.b16 %v512
      %v685 = vunpack.c.h.b16 %v512
      %v686 = vunpack.c.l.b16 %v513
      %v687 = vunpack.c.h.b16 %v513
      %v688 = vunpack.c.l.b16 %v514
      %v689 = vunpack.c.h.b16 %v514
      %v690 = vunpack.c.l.b16 %v515
      %v691 = vunpack.c.h.b16 %v515
      %v692 = vunpack.c.l.b16 %v516
      %v693 = vunpack.c.h.b16 %v516
      %v694 = vunpack.c.l.b16 %v517
      %v695 = vunpack.c.h.b16 %v517
      %v696 = vunpack.c.l.b16 %v518
      %v697 = vunpack.c.h.b16 %v518
      %v698 = vunpack.c.l.b16 %v519
      %v699 = vunpack.c.h.b16 %v519
      %v700 = vunpack.c.l.b16 %v520
      %v701 = vunpack.c.h.b16 %v520
      %v702 = vunpack.c.l.b16 %v521
      %v703 = vunpack.c.h.b16 %v521
      %v704 = vunpack.c.l.b16 %v522
      %v705 = vunpack.c.h.b16 %v522
      %v706 = vunpack.c.l.b16 %v523
      %v707 = vunpack.c.h.b16 %v523
      %v708 = vunpack.c.l.b16 %v524
      %v709 = vunpack.c.h.b16 %v524
      %v710 = vunpack.c.l.b16 %v525
      %v711 = vunpack.c.h.b16 %v525
      %v712 = vunpack.c.l.b16 %v526
      %v713 = vunpack.c.h.b16 %v526
      %v714 = vunpack.c.l.b16 %v527
      %v715 = vunpack.c.h.b16 %v527
      %v716 = vunpack.c.l.b16 %v528
      %v717 = vunpack.c.h.b16 %v528
      %v718 = vunpack.c.l.b16 %v529
      %v719 = vunpack.c.h.b16 %v529
      %v720 = vunpack.c.l.b16 %v530
      %v721 = vunpack.c.h.b16 %v530
      %v722 = vunpack.c.l.b16 %v531
      %v723 = vunpack.c.h.b16 %v531
      %v724 = vpack.c.b16 %v600, %v596
      %v725 = vpack.c.b16 %v601, %v597
      %v726 = vpack.c.b16 %v602, %v598
      %v727 = vpack.c.b16 %v603, %v599
      %v728 = vpack.c.b16 %v608, %v604
      %v729 = vpack.c.b16 %v609, %v605
      %v730 = vpack.c.b16 %v610, %v606
      %v731 = vpack.c.b16 %v611, %v607
      %v732 = vpack.c.b16 %v616, %v612
      %v733 = vpack.c.b16 %v617, %v613
      %v734 = vpack.c.b16 %v618, %v614
      %v735 = vpack.c.b16 %v619, %v615
      %v736 = vpack.c.b16 %v624, %v620
      %v737 = vpack.c.b16 %v625, %v621
      %v738 = vpack.c.b16 %v626, %v622
      %v739 = vpack.c.b16 %v627, %v623
      %v740 = vpack.c.b16 %v632, %v628
      %v741 = vpack.c.b16 %v633, %v629
      %v742 = vpack.c.b16 %v634, %v630
      %v743 = vpack.c.b16 %v635, %v631
      %v744 = vpack.c.b16 %v640, %v636
      %v745 = vpack.c.b16 %v641, %v637
      %v746 = vpack.c.b16 %v642, %v638
      %v747 = vpack.c.b16 %v643, %v639
      %v748 = vpack.c.b16 %v648, %v644
      %v749 = vpack.c.b16 %v649, %v645
      %v750 = vpack.c.b16 %v650, %v646
      %v751 = vpack.c.b16 %v651, %v647
      %v752 = vpack.c.b16 %v656, %v652
      %v753 = vpack.c.b16 %v657, %v653
      %v754 = vpack.c.b16 %v658, %v654
      %v755 = vpack.c.b16 %v659, %v655
      %v756 = vpack.c.b16 %v664, %v660
      %v757 = vpack.c.b16 %v665, %v661
      %v758 = vpack.c.b16 %v666, %v662
      %v759 = vpack.c.b16 %v667, %v663
      %v760 = vpack.c.b16 %v672, %v668
      %v761 = vpack.c.b16 %v673, %v669
      %v762 = vpack.c.b16 %v674, %v670
      %v763 = vpack.c.b16 %v675, %v671
      %v764 = vpack.c.b16 %v680, %v676
      %v765 = vpack.c.b16 %v681, %v677
      %v766 = vpack.c.b16 %v682, %v678
      %v767 = vpack.c.b16 %v683, %v679
      %v768 = vpack.c.b16 %v688, %v684
      %v769 = vpack.c.b16 %v689, %v685
      %v770 = vpack.c.b16 %v690, %v686
      %v771 = vpack.c.b16 %v691, %v687
      %v772 = vpack.c.b16 %v696, %v692
      %v773 = vpack.c.b16 %v697, %v693
      %v774 = vpack.c.b16 %v698, %v694
      %v775 = vpack.c.b16 %v699, %v695
      %v776 = vpack.c.b16 %v704, %v700
      %v777 = vpack.c.b16 %v705, %v701
      %v778 = vpack.c.b16 %v706, %v702
      %v779 = vpack.c.b16 %v707, %v703
      %v780 = vpack.c.b16 %v712, %v708
      %v781 = vpack.c.b16 %v713, %v709
      %v782 = vpack.c.b16 %v714, %v710
      %v783 = vpack.c.b16 %v715, %v711
      %v784 = vpack.c.b16 %v720, %v716
      %v785 = vpack.c.b16 %v721, %v717
      %v786 = vpack.c.b16 %v722, %v718
      %v787 = vpack.c.b16 %v723, %v719
      %v916 = vunpack.c.l.b16 %v372
      %v917 = vunpack.c.l.b16 %v373
      %v918 = vunpack.c.l.b16 %v374
      %v919 = vunpack.c.l.b16 %v375
      %v920 = vunpack.c.l.b16 %v376
      %v921 = vunpack.c.l.b16 %v377
      %v922 = vunpack.c.l.b16 %v378
      %v923 = vunpack.c.l.b16 %v379
      %v924 = vunpack.c.l.b16 %v380
      %v925 = vunpack.c.l.b16 %v381
      %v926 = vunpack.c.l.b16 %v382
      %v927 = vunpack.c.l.b16 %v383
      %v928 = vunpack.c.l.b16 %v384
      %v929 = vunpack.c.l.b16 %v385
      %v930 = vunpack.c.l.b16 %v386
      %v931 = vunpack.c.l.b16 %v387
      %v932 = vunpack.c.l.b16 %v388
      %v933 = vunpack.c.l.b16 %v389
      %v934 = vunpack.c.l.b16 %v390
      %v935 = vunpack.c.l.b16 %v391
      %v936 = vunpack.c.l.b16 %v392
      %v937 = vunpack.c.l.b16 %v393
      %v938 = vunpack.c.l.b16 %v394
      %v939 = vunpack.c.l.b16 %v395
      %v940 = vunpack.c.l.b16 %v396
      %v941 = vunpack.c.l.b16 %v397
      %v942 = vunpack.c.l.b16 %v398
      %v943 = vunpack.c.l.b16 %v399
      %v944 = vunpack.c.l.b16 %v400
      %v945 = vunpack.c.l.b16 %v401
      %v946 = vunpack.c.l.b16 %v402
      %v947 = vunpack.c.l.b16 %v403
      %v948 = vunpack.c.l.b16 %v404
      %v949 = vunpack.c.l.b16 %v405
      %v950 = vunpack.c.l.b16 %v406
      %v951 = vunpack.c.l.b16 %v407
      %v952 = vunpack.c.l.b16 %v408
      %v953 = vunpack.c.l.b16 %v409
      %v954 = vunpack.c.l.b16 %v410
      %v955 = vunpack.c.l.b16 %v411
      %v956 = vunpack.c.l.b16 %v412
      %v957 = vunpack.c.l.b16 %v413
      %v958 = vunpack.c.l.b16 %v414
      %v959 = vunpack.c.l.b16 %v415
      %v960 = vunpack.c.l.b16 %v416
      %v961 = vunpack.c.l.b16 %v417
      %v962 = vunpack.c.l.b16 %v418
      %v963 = vunpack.c.l.b16 %v419
      %v964 = vunpack.c.l.b16 %v420
      %v965 = vunpack.c.l.b16 %v421
      %v966 = vunpack.c.l.b16 %v422
      %v967 = vunpack.c.l.b16 %v423
      %v968 = vunpack.c.l.b16 %v424
      %v969 = vunpack.c.l.b16 %v425
      %v970 = vunpack.c.l.b16 %v426
      %v971 = vunpack.c.l.b16 %v427
      %v972 = vunpack.c.l.b16 %v428
      %v973 = vunpack.c.l.b16 %v429
      %v974 = vunpack.c.l.b16 %v430
      %v975 = vunpack.c.l.b16 %v431
      %v976 = vunpack.c.l.b16 %v432
      %v977 = vunpack.c.l.b16 %v433
      %v978 = vunpack.c.l.b16 %v434
      %v979 = vunpack.c.l.b16 %v435
      %v980 = vpack.c.b16 %v917, %v916
      %v981 = vpack.c.b16 %v919, %v918
      %v982 = vpack.c.b16 %v921, %v920
      %v983 = vpack.c.b16 %v923, %v922
      %v984 = vpack.c.b16 %v925, %v924
      %v985 = vpack.c.b16 %v927, %v926
      %v986 = vpack.c.b16 %v929, %v928
      %v987 = vpack.c.b16 %v931, %v930
      %v988 = vpack.c.b16 %v933, %v932
      %v989 = vpack.c.b16 %v935, %v934
      %v990 = vpack.c.b16 %v937, %v936
      %v991 = vpack.c.b16 %v939, %v938
      %v992 = vpack.c.b16 %v941, %v940
      %v993 = vpack.c.b16 %v943, %v942
      %v994 = vpack.c.b16 %v945, %v944
      %v995 = vpack.c.b16 %v947, %v946
      %v996 = vpack.c.b16 %v949, %v948
      %v997 = vpack.c.b16 %v951, %v950
      %v998 = vpack.c.b16 %v953, %v952
      %v999 = vpack.c.b16 %v955, %v954
      %v1000 = vpack.c.b16 %v957, %v956
      %v1001 = vpack.c.b16 %v959, %v958
      %v1002 = vpack.c.b16 %v961, %v960
      %v1003 = vpack.c.b16 %v963, %v962
      %v1004 = vpack.c.b16 %v965, %v964
      %v1005 = vpack.c.b16 %v967, %v966
      %v1006 = vpack.c.b16 %v969, %v968
      %v1007 = vpack.c.b16 %v971, %v970
      %v1008 = vpack.c.b16 %v973, %v972
      %v1009 = vpack.c.b16 %v975, %v974
      %v1010 = vpack.c.b16 %v977, %v976
      %v1011 = vpack.c.b16 %v979, %v978
      %1044 = vmatprep.subr.bf16.mxu0 0
      %1045 = vmatpush1.bf16.msra.mxu0 %v980
      %1046 = vmatprep.subr.bf16.mxu0 0
      %1047 = vmatpush1.bf16.msra.mxu0 %v981
      %1048 = vmatprep.subr.bf16.mxu0 0
      %1049 = vmatpush1.bf16.msra.mxu0 %v982
      %1050 = vmatprep.subr.bf16.mxu0 0
      %1051 = vmatpush1.bf16.msra.mxu0 %v983
      %1052 = vmatprep.subr.bf16.mxu0 0
      %1053 = vmatpush1.bf16.msra.mxu0 %v984
      %1054 = vmatprep.subr.bf16.mxu0 0
      %1055 = vmatpush1.bf16.msra.mxu0 %v985
      %1056 = vmatprep.subr.bf16.mxu0 0
      %1057 = vmatpush1.bf16.msra.mxu0 %v986
      %1058 = vmatprep.subr.bf16.mxu0 0
      %1059 = vmatpush1.bf16.msra.mxu0 %v987
      %1060 = vmatprep.subr.bf16.mxu0 0
      %1061 = vmatpush1.bf16.msra.mxu0 %v988
      %1062 = vmatprep.subr.bf16.mxu0 0
      %1063 = vmatpush1.bf16.msra.mxu0 %v989
      %1064 = vmatprep.subr.bf16.mxu0 0
      %1065 = vmatpush1.bf16.msra.mxu0 %v990
      %1066 = vmatprep.subr.bf16.mxu0 0
      %1067 = vmatpush1.bf16.msra.mxu0 %v991
      %1068 = vmatprep.subr.bf16.mxu0 0
      %1069 = vmatpush1.bf16.msra.mxu0 %v992
      %1070 = vmatprep.subr.bf16.mxu0 0
      %1071 = vmatpush1.bf16.msra.mxu0 %v993
      %1072 = vmatprep.subr.bf16.mxu0 0
      %1073 = vmatpush1.bf16.msra.mxu0 %v994
      %1074 = vmatprep.subr.bf16.mxu0 0
      %1075 = vmatpush1.bf16.msra.mxu0 %v995
      %1076 = vmatprep.mubr.bf16.mxu0 %v725
      %1077 = vmatmul.mubr.bf16.gmra.mrb[0].mxu0 %v724
      %v1078 = vpop.f32.mrb[0].mxu0
      %v1079 = vadd.f32 0.0, %v1078
      %v1080 = vpop.f32.mrb[0].mxu0
      %v1081 = vpop.f32.mrb[0].mxu0
      %v1082 = vadd.f32 0.0, %v1081
      %v1083 = vpop.f32.mrb[0].mxu0
      %1084 = vmatprep.mubr.bf16.mxu0 %v729
      %1085 = vmatmul.mubr.bf16.gmra.mrb[0].mxu0 %v728
      %v1086 = vpop.f32.mrb[0].mxu0
      %v1087 = vadd.f32 0.0, %v1086
      %v1088 = vpop.f32.mrb[0].mxu0
      %v1089 = vpop.f32.mrb[0].mxu0
      %v1090 = vadd.f32 0.0, %v1089
      %v1091 = vpop.f32.mrb[0].mxu0
      %1092 = vmatprep.mubr.bf16.mxu0 %v733
      %1093 = vmatmul.mubr.bf16.gmra.mrb[0].mxu0 %v732
      %v1094 = vpop.f32.mrb[0].mxu0
      %v1095 = vadd.f32 0.0, %v1094
      %v1096 = vpop.f32.mrb[0].mxu0
      %v1097 = vpop.f32.mrb[0].mxu0
      %v1098 = vadd.f32 0.0, %v1097
      %v1099 = vpop.f32.mrb[0].mxu0
      %1100 = vmatprep.mubr.bf16.mxu0 %v737
      %1101 = vmatmul.mubr.bf16.gmra.mrb[0].mxu0 %v736
      %v1102 = vpop.f32.mrb[0].mxu0
      %v1103 = vadd.f32 0.0, %v1102
      %v1104 = vpop.f32.mrb[0].mxu0
      %v1105 = vpop.f32.mrb[0].mxu0
      %v1106 = vadd.f32 0.0, %v1105
      %v1107 = vpop.f32.mrb[0].mxu0
      %1108 = vmatprep.mubr.bf16.mxu0 %v741
      %1109 = vmatmul.mubr.bf16.gmra.mrb[0].mxu0 %v740
      %v1110 = vpop.f32.mrb[0].mxu0
      %v1111 = vadd.f32 0.0, %v1110
      %v1112 = vpop.f32.mrb[0].mxu0
      %v1113 = vpop.f32.mrb[0].mxu0
      %v1114 = vadd.f32 0.0, %v1113
      %v1115 = vpop.f32.mrb[0].mxu0
      %1116 = vmatprep.mubr.bf16.mxu0 %v745
      %1117 = vmatmul.mubr.bf16.gmra.mrb[0].mxu0 %v744
      %v1118 = vpop.f32.mrb[0].mxu0
      %v1119 = vadd.f32 0.0, %v1118
      %v1120 = vpop.f32.mrb[0].mxu0
      %v1121 = vpop.f32.mrb[0].mxu0
      %v1122 = vadd.f32 0.0, %v1121
      %v1123 = vpop.f32.mrb[0].mxu0
      %1124 = vmatprep.mubr.bf16.mxu0 %v749
      %1125 = vmatmul.mubr.bf16.gmra.mrb[0].mxu0 %v748
      %v1126 = vpop.f32.mrb[0].mxu0
      %v1127 = vadd.f32 0.0, %v1126
      %v1128 = vpop.f32.mrb[0].mxu0
      %v1129 = vpop.f32.mrb[0].mxu0
      %v1130 = vadd.f32 0.0, %v1129
      %v1131 = vpop.f32.mrb[0].mxu0
      %1132 = vmatprep.mubr.bf16.mxu0 %v753
      %1133 = vmatmul.mubr.bf16.gmra.mrb[0].mxu0 %v752
      %v1134 = vpop.f32.mrb[0].mxu0
      %v1135 = vadd.f32 0.0, %v1134
      %v1136 = vpop.f32.mrb[0].mxu0
      %v1137 = vpop.f32.mrb[0].mxu0
      %v1138 = vadd.f32 0.0, %v1137
      %v1139 = vpop.f32.mrb[0].mxu0
      %1140 = vmatprep.mubr.bf16.mxu0 %v757
      %1141 = vmatmul.mubr.bf16.gmra.mrb[0].mxu0 %v756
      %v1142 = vpop.f32.mrb[0].mxu0
      %v1143 = vadd.f32 0.0, %v1142
      %v1144 = vpop.f32.mrb[0].mxu0
      %v1145 = vpop.f32.mrb[0].mxu0
      %v1146 = vadd.f32 0.0, %v1145
      %v1147 = vpop.f32.mrb[0].mxu0
      %1148 = vmatprep.mubr.bf16.mxu0 %v761
      %1149 = vmatmul.mubr.bf16.gmra.mrb[0].mxu0 %v760
      %v1150 = vpop.f32.mrb[0].mxu0
      %v1151 = vadd.f32 0.0, %v1150
      %v1152 = vpop.f32.mrb[0].mxu0
      %v1153 = vpop.f32.mrb[0].mxu0
      %v1154 = vadd.f32 0.0, %v1153
      %v1155 = vpop.f32.mrb[0].mxu0
      %1156 = vmatprep.mubr.bf16.mxu0 %v765
      %1157 = vmatmul.mubr.bf16.gmra.mrb[0].mxu0 %v764
      %v1158 = vpop.f32.mrb[0].mxu0
      %v1159 = vadd.f32 0.0, %v1158
      %v1160 = vpop.f32.mrb[0].mxu0
      %v1161 = vpop.f32.mrb[0].mxu0
      %v1162 = vadd.f32 0.0, %v1161
      %v1163 = vpop.f32.mrb[0].mxu0
      %1164 = vmatprep.mubr.bf16.mxu0 %v769
      %1165 = vmatmul.mubr.bf16.gmra.mrb[0].mxu0 %v768
      %v1166 = vpop.f32.mrb[0].mxu0
      %v1167 = vadd.f32 0.0, %v1166
      %v1168 = vpop.f32.mrb[0].mxu0
      %v1169 = vpop.f32.mrb[0].mxu0
      %v1170 = vadd.f32 0.0, %v1169
      %v1171 = vpop.f32.mrb[0].mxu0
      %1172 = vmatprep.mubr.bf16.mxu0 %v773
      %1173 = vmatmul.mubr.bf16.gmra.mrb[0].mxu0 %v772
      %v1174 = vpop.f32.mrb[0].mxu0
      %v1175 = vadd.f32 0.0, %v1174
      %v1176 = vpop.f32.mrb[0].mxu0
      %v1177 = vpop.f32.mrb[0].mxu0
      %v1178 = vadd.f32 0.0, %v1177
      %v1179 = vpop.f32.mrb[0].mxu0
      %1180 = vmatprep.mubr.bf16.mxu0 %v777
      %1181 = vmatmul.mubr.bf16.gmra.mrb[0].mxu0 %v776
      %v1182 = vpop.f32.mrb[0].mxu0
      %v1183 = vadd.f32 0.0, %v1182
      %v1184 = vpop.f32.mrb[0].mxu0
      %v1185 = vpop.f32.mrb[0].mxu0
      %v1186 = vadd.f32 0.0, %v1185
      %v1187 = vpop.f32.mrb[0].mxu0
      %1188 = vmatprep.mubr.bf16.mxu0 %v781
      %1189 = vmatmul.mubr.bf16.gmra.mrb[0].mxu0 %v780
      %v1190 = vpop.f32.mrb[0].mxu0
      %v1191 = vadd.f32 0.0, %v1190
      %v1192 = vpop.f32.mrb[0].mxu0
      %v1193 = vpop.f32.mrb[0].mxu0
      %v1194 = vadd.f32 0.0, %v1193
      %v1195 = vpop.f32.mrb[0].mxu0
      %1196 = vmatprep.mubr.bf16.mxu0 %v785
      %1197 = vmatmul.mubr.bf16.gmra.mrb[0].mxu0 %v784
      %v1198 = vpop.f32.mrb[0].mxu0
      %v1199 = vadd.f32 0.0, %v1198
      %v1200 = vpop.f32.mrb[0].mxu0
      %v1201 = vpop.f32.mrb[0].mxu0
      %v1202 = vadd.f32 0.0, %v1201
      %v1203 = vpop.f32.mrb[0].mxu0
      %1204 = vdwg.mxu0
      %1205 = vmatprep.subr.bf16.mxu0 0
      %1206 = vmatpush1.bf16.msra.mxu0 %v996
      %1207 = vmatprep.subr.bf16.mxu0 0
      %1208 = vmatpush1.bf16.msra.mxu0 %v997
      %1209 = vmatprep.subr.bf16.mxu0 0
      %1210 = vmatpush1.bf16.msra.mxu0 %v998
      %1211 = vmatprep.subr.bf16.mxu0 0
      %1212 = vmatpush1.bf16.msra.mxu0 %v999
      %1213 = vmatprep.subr.bf16.mxu0 0
      %1214 = vmatpush1.bf16.msra.mxu0 %v1000
      %1215 = vmatprep.subr.bf16.mxu0 0
      %1216 = vmatpush1.bf16.msra.mxu0 %v1001
      %1217 = vmatprep.subr.bf16.mxu0 0
      %1218 = vmatpush1.bf16.msra.mxu0 %v1002
      %1219 = vmatprep.subr.bf16.mxu0 0
      %1220 = vmatpush1.bf16.msra.mxu0 %v1003
      %1221 = vmatprep.subr.bf16.mxu0 0
      %1222 = vmatpush1.bf16.msra.mxu0 %v1004
      %1223 = vmatprep.subr.bf16.mxu0 0
      %1224 = vmatpush1.bf16.msra.mxu0 %v1005
      %1225 = vmatprep.subr.bf16.mxu0 0
      %1226 = vmatpush1.bf16.msra.mxu0 %v1006
      %1227 = vmatprep.subr.bf16.mxu0 0
      %1228 = vmatpush1.bf16.msra.mxu0 %v1007
      %1229 = vmatprep.subr.bf16.mxu0 0
      %1230 = vmatpush1.bf16.msra.mxu0 %v1008
      %1231 = vmatprep.subr.bf16.mxu0 0
      %1232 = vmatpush1.bf16.msra.mxu0 %v1009
      %1233 = vmatprep.subr.bf16.mxu0 0
      %1234 = vmatpush1.bf16.msra.mxu0 %v1010
      %1235 = vmatprep.subr.bf16.mxu0 0
      %1236 = vmatpush1.bf16.msra.mxu0 %v1011
      %1237 = vmatprep.mubr.bf16.mxu0 %v727
      %1238 = vmatmul.mubr.bf16.gmra.mrb[0].mxu0 %v726
      %v1239 = vpop.f32.mrb[0].mxu0
      %v1240 = vadd.f32 %v1079, %v1239
      %v1241 = vpop.f32.mrb[0].mxu0
      %v1242 = vpop.f32.mrb[0].mxu0
      %v1243 = vadd.f32 %v1082, %v1242
      %v1244 = vpop.f32.mrb[0].mxu0
      %1245 = vmatprep.mubr.bf16.mxu0 %v731
      %1246 = vmatmul.mubr.bf16.gmra.mrb[0].mxu0 %v730
      %v1247 = vpop.f32.mrb[0].mxu0
      %v1248 = vadd.f32 %v1087, %v1247
      %v1249 = vpop.f32.mrb[0].mxu0
      %v1250 = vpop.f32.mrb[0].mxu0
      %v1251 = vadd.f32 %v1090, %v1250
      %v1252 = vpop.f32.mrb[0].mxu0
      %1253 = vmatprep.mubr.bf16.mxu0 %v735
      %1254 = vmatmul.mubr.bf16.gmra.mrb[0].mxu0 %v734
      %v1255 = vpop.f32.mrb[0].mxu0
      %v1256 = vadd.f32 %v1095, %v1255
      %v1257 = vpop.f32.mrb[0].mxu0
      %v1258 = vpop.f32.mrb[0].mxu0
      %v1259 = vadd.f32 %v1098, %v1258
      %v1260 = vpop.f32.mrb[0].mxu0
      %1261 = vmatprep.mubr.bf16.mxu0 %v739
      %1262 = vmatmul.mubr.bf16.gmra.mrb[0].mxu0 %v738
      %v1263 = vpop.f32.mrb[0].mxu0
      %v1264 = vadd.f32 %v1103, %v1263
      %v1265 = vpop.f32.mrb[0].mxu0
      %v1266 = vpop.f32.mrb[0].mxu0
      %v1267 = vadd.f32 %v1106, %v1266
      %v1268 = vpop.f32.mrb[0].mxu0
      %1269 = vmatprep.mubr.bf16.mxu0 %v743
      %1270 = vmatmul.mubr.bf16.gmra.mrb[0].mxu0 %v742
      %v1271 = vpop.f32.mrb[0].mxu0
      %v1272 = vadd.f32 %v1111, %v1271
      %v1273 = vpop.f32.mrb[0].mxu0
      %v1274 = vpop.f32.mrb[0].mxu0
      %v1275 = vadd.f32 %v1114, %v1274
      %v1276 = vpop.f32.mrb[0].mxu0
      %1277 = vmatprep.mubr.bf16.mxu0 %v747
      %1278 = vmatmul.mubr.bf16.gmra.mrb[0].mxu0 %v746
      %v1279 = vpop.f32.mrb[0].mxu0
      %v1280 = vadd.f32 %v1119, %v1279
      %v1281 = vpop.f32.mrb[0].mxu0
      %v1282 = vpop.f32.mrb[0].mxu0
      %v1283 = vadd.f32 %v1122, %v1282
      %v1284 = vpop.f32.mrb[0].mxu0
      %1285 = vmatprep.mubr.bf16.mxu0 %v751
      %1286 = vmatmul.mubr.bf16.gmra.mrb[0].mxu0 %v750
      %v1287 = vpop.f32.mrb[0].mxu0
      %v1288 = vadd.f32 %v1127, %v1287
      %v1289 = vpop.f32.mrb[0].mxu0
      %v1290 = vpop.f32.mrb[0].mxu0
      %v1291 = vadd.f32 %v1130, %v1290
      %v1292 = vpop.f32.mrb[0].mxu0
      %1293 = vmatprep.mubr.bf16.mxu0 %v755
      %1294 = vmatmul.mubr.bf16.gmra.mrb[0].mxu0 %v754
      %v1295 = vpop.f32.mrb[0].mxu0
      %v1296 = vadd.f32 %v1135, %v1295
      %v1297 = vpop.f32.mrb[0].mxu0
      %v1298 = vpop.f32.mrb[0].mxu0
      %v1299 = vadd.f32 %v1138, %v1298
      %v1300 = vpop.f32.mrb[0].mxu0
      %1301 = vmatprep.mubr.bf16.mxu0 %v759
      %1302 = vmatmul.mubr.bf16.gmra.mrb[0].mxu0 %v758
      %v1303 = vpop.f32.mrb[0].mxu0
      %v1304 = vadd.f32 %v1143, %v1303
      %v1305 = vpop.f32.mrb[0].mxu0
      %v1306 = vpop.f32.mrb[0].mxu0
      %v1307 = vadd.f32 %v1146, %v1306
      %v1308 = vpop.f32.mrb[0].mxu0
      %1309 = vmatprep.mubr.bf16.mxu0 %v763
      %1310 = vmatmul.mubr.bf16.gmra.mrb[0].mxu0 %v762
      %v1311 = vpop.f32.mrb[0].mxu0
      %v1312 = vadd.f32 %v1151, %v1311
      %v1313 = vpop.f32.mrb[0].mxu0
      %v1314 = vpop.f32.mrb[0].mxu0
      %v1315 = vadd.f32 %v1154, %v1314
      %v1316 = vpop.f32.mrb[0].mxu0
      %1317 = vmatprep.mubr.bf16.mxu0 %v767
      %1318 = vmatmul.mubr.bf16.gmra.mrb[0].mxu0 %v766
      %v1319 = vpop.f32.mrb[0].mxu0
      %v1320 = vadd.f32 %v1159, %v1319
      %v1321 = vpop.f32.mrb[0].mxu0
      %v1322 = vpop.f32.mrb[0].mxu0
      %v1323 = vadd.f32 %v1162, %v1322
      %v1324 = vpop.f32.mrb[0].mxu0
      %1325 = vmatprep.mubr.bf16.mxu0 %v771
      %1326 = vmatmul.mubr.bf16.gmra.mrb[0].mxu0 %v770
      %v1327 = vpop.f32.mrb[0].mxu0
      %v1328 = vadd.f32 %v1167, %v1327
      %v1329 = vpop.f32.mrb[0].mxu0
      %v1330 = vpop.f32.mrb[0].mxu0
      %v1331 = vadd.f32 %v1170, %v1330
      %v1332 = vpop.f32.mrb[0].mxu0
      %1333 = vmatprep.mubr.bf16.mxu0 %v775
      %1334 = vmatmul.mubr.bf16.gmra.mrb[0].mxu0 %v774
      %v1335 = vpop.f32.mrb[0].mxu0
      %v1336 = vadd.f32 %v1175, %v1335
      %v1337 = vpop.f32.mrb[0].mxu0
      %v1338 = vpop.f32.mrb[0].mxu0
      %v1339 = vadd.f32 %v1178, %v1338
      %v1340 = vpop.f32.mrb[0].mxu0
      %1341 = vmatprep.mubr.bf16.mxu0 %v779
      %1342 = vmatmul.mubr.bf16.gmra.mrb[0].mxu0 %v778
      %v1343 = vpop.f32.mrb[0].mxu0
      %v1344 = vadd.f32 %v1183, %v1343
      %v1345 = vpop.f32.mrb[0].mxu0
      %v1346 = vpop.f32.mrb[0].mxu0
      %v1347 = vadd.f32 %v1186, %v1346
      %v1348 = vpop.f32.mrb[0].mxu0
      %1349 = vmatprep.mubr.bf16.mxu0 %v783
      %1350 = vmatmul.mubr.bf16.gmra.mrb[0].mxu0 %v782
      %v1351 = vpop.f32.mrb[0].mxu0
      %v1352 = vadd.f32 %v1191, %v1351
      %v1353 = vpop.f32.mrb[0].mxu0
      %v1354 = vpop.f32.mrb[0].mxu0
      %v1355 = vadd.f32 %v1194, %v1354
      %v1356 = vpop.f32.mrb[0].mxu0
      %1357 = vmatprep.mubr.bf16.mxu0 %v787
      %1358 = vmatmul.mubr.bf16.gmra.mrb[0].mxu0 %v786
      %v1359 = vpop.f32.mrb[0].mxu0
      %v1360 = vadd.f32 %v1199, %v1359
      %v1361 = vpop.f32.mrb[0].mxu0
      %v1362 = vpop.f32.mrb[0].mxu0
      %v1363 = vadd.f32 %v1202, %v1362
      %v1364 = vpop.f32.mrb[0].mxu0
      %1365 = vdwg.mxu0
      %v1366 = vadd.f32 %v436, %v1240
      %v1367 = vadd.f32 %v437, %v1243
      %v1368 = vadd.f32 %v438, %v1248
      %v1369 = vadd.f32 %v439, %v1251
      %v1370 = vadd.f32 %v440, %v1256
      %v1371 = vadd.f32 %v441, %v1259
      %v1372 = vadd.f32 %v442, %v1264
      %v1373 = vadd.f32 %v443, %v1267
      %v1374 = vadd.f32 %v444, %v1272
      %v1375 = vadd.f32 %v445, %v1275
      %v1376 = vadd.f32 %v446, %v1280
      %v1377 = vadd.f32 %v447, %v1283
      %v1378 = vadd.f32 %v448, %v1288
      %v1379 = vadd.f32 %v449, %v1291
      %v1380 = vadd.f32 %v450, %v1296
      %v1381 = vadd.f32 %v451, %v1299
      %v1382 = vadd.f32 %v452, %v1304
      %v1383 = vadd.f32 %v453, %v1307
      %v1384 = vadd.f32 %v454, %v1312
      %v1385 = vadd.f32 %v455, %v1315
      %v1386 = vadd.f32 %v456, %v1320
      %v1387 = vadd.f32 %v457, %v1323
      %v1388 = vadd.f32 %v458, %v1328
      %v1389 = vadd.f32 %v459, %v1331
      %v1390 = vadd.f32 %v460, %v1336
      %v1391 = vadd.f32 %v461, %v1339
      %v1392 = vadd.f32 %v462, %v1344
      %v1393 = vadd.f32 %v463, %v1347
      %v1394 = vadd.f32 %v464, %v1352
      %v1395 = vadd.f32 %v465, %v1355
      %v1396 = vadd.f32 %v466, %v1360
      %v1397 = vadd.f32 %v467, %v1363
      %1398 = vst [vmem:[#allocation2] sm:$0xff] %v1366
      %1399 = vst [vmem:[#allocation2 + $0x8] sm:$0xff] %v1367
      %1400 = vst [vmem:[#allocation2 + $0x10] sm:$0xff] %v1368
      %1401 = vst [vmem:[#allocation2 + $0x18] sm:$0xff] %v1369
      %1402 = vst [vmem:[#allocation2 + $0x20] sm:$0xff] %v1370
      %1403 = vst [vmem:[#allocation2 + $0x28] sm:$0xff] %v1371
      %1404 = vst [vmem:[#allocation2 + $0x30] sm:$0xff] %v1372
      %1405 = vst [vmem:[#allocation2 + $0x38] sm:$0xff] %v1373
      %1406 = vst [vmem:[#allocation2 + $0x40] sm:$0xff] %v1374
      %1407 = vst [vmem:[#allocation2 + $0x48] sm:$0xff] %v1375
      %1408 = vst [vmem:[#allocation2 + $0x50] sm:$0xff] %v1376
      %1409 = vst [vmem:[#allocation2 + $0x58] sm:$0xff] %v1377
      %1410 = vst [vmem:[#allocation2 + $0x60] sm:$0xff] %v1378
      %1411 = vst [vmem:[#allocation2 + $0x68] sm:$0xff] %v1379
      %1412 = vst [vmem:[#allocation2 + $0x70] sm:$0xff] %v1380
      %1413 = vst [vmem:[#allocation2 + $0x78] sm:$0xff] %v1381
      %1414 = vst [vmem:[#allocation2 + $0x80] sm:$0xff] %v1382
      %1415 = vst [vmem:[#allocation2 + $0x88] sm:$0xff] %v1383
      %1416 = vst [vmem:[#allocation2 + $0x90] sm:$0xff] %v1384
      %1417 = vst [vmem:[#allocation2 + $0x98] sm:$0xff] %v1385
      %1418 = vst [vmem:[#allocation2 + $0xa0] sm:$0xff] %v1386
      %1419 = vst [vmem:[#allocation2 + $0xa8] sm:$0xff] %v1387
      %1420 = vst [vmem:[#allocation2 + $0xb0] sm:$0xff] %v1388
      %1421 = vst [vmem:[#allocation2 + $0xb8] sm:$0xff] %v1389
      %1422 = vst [vmem:[#allocation2 + $0xc0] sm:$0xff] %v1390
      %1423 = vst [vmem:[#allocation2 + $0xc8] sm:$0xff] %v1391
      %1424 = vst [vmem:[#allocation2 + $0xd0] sm:$0xff] %v1392
      %1425 = vst [vmem:[#allocation2 + $0xd8] sm:$0xff] %v1393
      %1426 = vst [vmem:[#allocation2 + $0xe0] sm:$0xff] %v1394
      %1427 = vst [vmem:[#allocation2 + $0xe8] sm:$0xff] %v1395
      %1428 = vst [vmem:[#allocation2 + $0xf0] sm:$0xff] %v1396
      %1429 = vst [vmem:[#allocation2 + $0xf8] sm:$0xff] %v1397
      // Predicated region
      $region49: #{graphsage_forward.5} parent=43 // pred_check
        %p1430 = pneg %p331
      $region50: #{graphsage_forward.5} parent=43 // pred_check_branch
        %1432 = sbr.rel (%p1430) target = $region52
      $region51: #{graphsage_forward.5} parent=43 // pred_region
        %v1433 = vld [vmem:[#allocation2] sm:$0xff]
        %v1434 = vld [vmem:[#allocation2 + $0x8] sm:$0xff]
        %v1435 = vld [vmem:[#allocation2 + $0x10] sm:$0xff]
        %v1436 = vld [vmem:[#allocation2 + $0x18] sm:$0xff]
        %v1437 = vld [vmem:[#allocation2 + $0x20] sm:$0xff]
        %v1438 = vld [vmem:[#allocation2 + $0x28] sm:$0xff]
        %v1439 = vld [vmem:[#allocation2 + $0x30] sm:$0xff]
        %v1440 = vld [vmem:[#allocation2 + $0x38] sm:$0xff]
        %v1441 = vld [vmem:[#allocation2 + $0x40] sm:$0xff]
        %v1442 = vld [vmem:[#allocation2 + $0x48] sm:$0xff]
        %v1443 = vld [vmem:[#allocation2 + $0x50] sm:$0xff]
        %v1444 = vld [vmem:[#allocation2 + $0x58] sm:$0xff]
        %v1445 = vld [vmem:[#allocation2 + $0x60] sm:$0xff]
        %v1446 = vld [vmem:[#allocation2 + $0x68] sm:$0xff]
        %v1447 = vld [vmem:[#allocation2 + $0x70] sm:$0xff]
        %v1448 = vld [vmem:[#allocation2 + $0x78] sm:$0xff]
        %v1449 = vld [vmem:[#allocation2 + $0x80] sm:$0xff]
        %v1450 = vld [vmem:[#allocation2 + $0x88] sm:$0xff]
        %v1451 = vld [vmem:[#allocation2 + $0x90] sm:$0xff]
        %v1452 = vld [vmem:[#allocation2 + $0x98] sm:$0xff]
        %v1453 = vld [vmem:[#allocation2 + $0xa0] sm:$0xff]
        %v1454 = vld [vmem:[#allocation2 + $0xa8] sm:$0xff]
        %v1455 = vld [vmem:[#allocation2 + $0xb0] sm:$0xff]
        %v1456 = vld [vmem:[#allocation2 + $0xb8] sm:$0xff]
        %v1457 = vld [vmem:[#allocation2 + $0xc0] sm:$0xff]
        %v1458 = vld [vmem:[#allocation2 + $0xc8] sm:$0xff]
        %v1459 = vld [vmem:[#allocation2 + $0xd0] sm:$0xff]
        %v1460 = vld [vmem:[#allocation2 + $0xd8] sm:$0xff]
        %v1461 = vld [vmem:[#allocation2 + $0xe0] sm:$0xff]
        %v1462 = vld [vmem:[#allocation2 + $0xe8] sm:$0xff]
        %v1463 = vld [vmem:[#allocation2 + $0xf0] sm:$0xff]
        %v1464 = vld [vmem:[#allocation2 + $0xf8] sm:$0xff]
        %v1465 = vld [vmem:[%s322] sm:$0xff]
        %v1466 = vld [vmem:[%s322 + $0x8] sm:$0xff]
        %v1467 = vld [vmem:[%s322 + $0x10] sm:$0xff]
        %v1468 = vld [vmem:[%s322 + $0x18] sm:$0xff]
        %v1469 = vld [vmem:[%s322 + $0x20] sm:$0xff]
        %v1470 = vld [vmem:[%s322 + $0x28] sm:$0xff]
        %v1471 = vld [vmem:[%s322 + $0x30] sm:$0xff]
        %v1472 = vld [vmem:[%s322 + $0x38] sm:$0xff]
        %v1473 = vld [vmem:[%s322 + $0x40] sm:$0xff]
        %v1474 = vld [vmem:[%s322 + $0x48] sm:$0xff]
        %v1475 = vld [vmem:[%s322 + $0x50] sm:$0xff]
        %v1476 = vld [vmem:[%s322 + $0x58] sm:$0xff]
        %v1477 = vld [vmem:[%s322 + $0x60] sm:$0xff]
        %v1478 = vld [vmem:[%s322 + $0x68] sm:$0xff]
        %v1479 = vld [vmem:[%s322 + $0x70] sm:$0xff]
        %v1480 = vld [vmem:[%s322 + $0x78] sm:$0xff]
        %v1481 = vld [vmem:[%s322 + $0x80] sm:$0xff]
        %v1482 = vld [vmem:[%s322 + $0x88] sm:$0xff]
        %v1483 = vld [vmem:[%s322 + $0x90] sm:$0xff]
        %v1484 = vld [vmem:[%s322 + $0x98] sm:$0xff]
        %v1485 = vld [vmem:[%s322 + $0xa0] sm:$0xff]
        %v1486 = vld [vmem:[%s322 + $0xa8] sm:$0xff]
        %v1487 = vld [vmem:[%s322 + $0xb0] sm:$0xff]
        %v1488 = vld [vmem:[%s322 + $0xb8] sm:$0xff]
        %v1489 = vld [vmem:[%s322 + $0xc0] sm:$0xff]
        %v1490 = vld [vmem:[%s322 + $0xc8] sm:$0xff]
        %v1491 = vld [vmem:[%s322 + $0xd0] sm:$0xff]
        %v1492 = vld [vmem:[%s322 + $0xd8] sm:$0xff]
        %v1493 = vld [vmem:[%s322 + $0xe0] sm:$0xff]
        %v1494 = vld [vmem:[%s322 + $0xe8] sm:$0xff]
        %v1495 = vld [vmem:[%s322 + $0xf0] sm:$0xff]
        %v1496 = vld [vmem:[%s322 + $0xf8] sm:$0xff]
        %1498 = vset.pattern.permute.xlu0 0
        %1499 = vperm.xlu0 %1498, %v1465
        %v1500 = vpop.permute.xlu0 %1499
        %1503 = vset.pattern.permute.xlu0 0
        %1504 = vperm.xlu0 %1503, %v1466
        %v1505 = vpop.permute.xlu0 %1504
        %1508 = vset.pattern.permute.xlu0 0
        %1509 = vperm.xlu0 %1508, %v1467
        %v1510 = vpop.permute.xlu0 %1509
        %1513 = vset.pattern.permute.xlu0 0
        %1514 = vperm.xlu0 %1513, %v1468
        %v1515 = vpop.permute.xlu0 %1514
        %1518 = vset.pattern.permute.xlu0 0
        %1519 = vperm.xlu0 %1518, %v1469
        %v1520 = vpop.permute.xlu0 %1519
        %1523 = vset.pattern.permute.xlu0 0
        %1524 = vperm.xlu0 %1523, %v1470
        %v1525 = vpop.permute.xlu0 %1524
        %1528 = vset.pattern.permute.xlu0 0
        %1529 = vperm.xlu0 %1528, %v1471
        %v1530 = vpop.permute.xlu0 %1529
        %1533 = vset.pattern.permute.xlu0 0
        %1534 = vperm.xlu0 %1533, %v1472
        %v1535 = vpop.permute.xlu0 %1534
        %1538 = vset.pattern.permute.xlu0 0
        %1539 = vperm.xlu0 %1538, %v1473
        %v1540 = vpop.permute.xlu0 %1539
        %1543 = vset.pattern.permute.xlu0 0
        %1544 = vperm.xlu0 %1543, %v1474
        %v1545 = vpop.permute.xlu0 %1544
        %1548 = vset.pattern.permute.xlu0 0
        %1549 = vperm.xlu0 %1548, %v1475
        %v1550 = vpop.permute.xlu0 %1549
        %1553 = vset.pattern.permute.xlu0 0
        %1554 = vperm.xlu0 %1553, %v1476
        %v1555 = vpop.permute.xlu0 %1554
        %1558 = vset.pattern.permute.xlu0 0
        %1559 = vperm.xlu0 %1558, %v1477
        %v1560 = vpop.permute.xlu0 %1559
        %1563 = vset.pattern.permute.xlu0 0
        %1564 = vperm.xlu0 %1563, %v1478
        %v1565 = vpop.permute.xlu0 %1564
        %1568 = vset.pattern.permute.xlu0 0
        %1569 = vperm.xlu0 %1568, %v1479
        %v1570 = vpop.permute.xlu0 %1569
        %1573 = vset.pattern.permute.xlu0 0
        %1574 = vperm.xlu0 %1573, %v1480
        %v1575 = vpop.permute.xlu0 %1574
        %1578 = vset.pattern.permute.xlu0 0
        %1579 = vperm.xlu0 %1578, %v1481
        %v1580 = vpop.permute.xlu0 %1579
        %1583 = vset.pattern.permute.xlu0 0
        %1584 = vperm.xlu0 %1583, %v1482
        %v1585 = vpop.permute.xlu0 %1584
        %1588 = vset.pattern.permute.xlu0 0
        %1589 = vperm.xlu0 %1588, %v1483
        %v1590 = vpop.permute.xlu0 %1589
        %1593 = vset.pattern.permute.xlu0 0
        %1594 = vperm.xlu0 %1593, %v1484
        %v1595 = vpop.permute.xlu0 %1594
        %1598 = vset.pattern.permute.xlu0 0
        %1599 = vperm.xlu0 %1598, %v1485
        %v1600 = vpop.permute.xlu0 %1599
        %1603 = vset.pattern.permute.xlu0 0
        %1604 = vperm.xlu0 %1603, %v1486
        %v1605 = vpop.permute.xlu0 %1604
        %1608 = vset.pattern.permute.xlu0 0
        %1609 = vperm.xlu0 %1608, %v1487
        %v1610 = vpop.permute.xlu0 %1609
        %1613 = vset.pattern.permute.xlu0 0
        %1614 = vperm.xlu0 %1613, %v1488
        %v1615 = vpop.permute.xlu0 %1614
        %1618 = vset.pattern.permute.xlu0 0
        %1619 = vperm.xlu0 %1618, %v1489
        %v1620 = vpop.permute.xlu0 %1619
        %1623 = vset.pattern.permute.xlu0 0
        %1624 = vperm.xlu0 %1623, %v1490
        %v1625 = vpop.permute.xlu0 %1624
        %1628 = vset.pattern.permute.xlu0 0
        %1629 = vperm.xlu0 %1628, %v1491
        %v1630 = vpop.permute.xlu0 %1629
        %1633 = vset.pattern.permute.xlu0 0
        %1634 = vperm.xlu0 %1633, %v1492
        %v1635 = vpop.permute.xlu0 %1634
        %1638 = vset.pattern.permute.xlu0 0
        %1639 = vperm.xlu0 %1638, %v1493
        %v1640 = vpop.permute.xlu0 %1639
        %1643 = vset.pattern.permute.xlu0 0
        %1644 = vperm.xlu0 %1643, %v1494
        %v1645 = vpop.permute.xlu0 %1644
        %1648 = vset.pattern.permute.xlu0 0
        %1649 = vperm.xlu0 %1648, %v1495
        %v1650 = vpop.permute.xlu0 %1649
        %1653 = vset.pattern.permute.xlu0 0
        %1654 = vperm.xlu0 %1653, %v1496
        %v1655 = vpop.permute.xlu0 %1654
        %v1657 = vmul.f32 %v1433, %v1500
        %v1658 = vmul.f32 %v1434, %v1505
        %v1659 = vmul.f32 %v1435, %v1510
        %v1660 = vmul.f32 %v1436, %v1515
        %v1661 = vmul.f32 %v1437, %v1520
        %v1662 = vmul.f32 %v1438, %v1525
        %v1663 = vmul.f32 %v1439, %v1530
        %v1664 = vmul.f32 %v1440, %v1535
        %v1665 = vmul.f32 %v1441, %v1540
        %v1666 = vmul.f32 %v1442, %v1545
        %v1667 = vmul.f32 %v1443, %v1550
        %v1668 = vmul.f32 %v1444, %v1555
        %v1669 = vmul.f32 %v1445, %v1560
        %v1670 = vmul.f32 %v1446, %v1565
        %v1671 = vmul.f32 %v1447, %v1570
        %v1672 = vmul.f32 %v1448, %v1575
        %v1673 = vmul.f32 %v1449, %v1580
        %v1674 = vmul.f32 %v1450, %v1585
        %v1675 = vmul.f32 %v1451, %v1590
        %v1676 = vmul.f32 %v1452, %v1595
        %v1677 = vmul.f32 %v1453, %v1600
        %v1678 = vmul.f32 %v1454, %v1605
        %v1679 = vmul.f32 %v1455, %v1610
        %v1680 = vmul.f32 %v1456, %v1615
        %v1681 = vmul.f32 %v1457, %v1620
        %v1682 = vmul.f32 %v1458, %v1625
        %v1683 = vmul.f32 %v1459, %v1630
        %v1684 = vmul.f32 %v1460, %v1635
        %v1685 = vmul.f32 %v1461, %v1640
        %v1686 = vmul.f32 %v1462, %v1645
        %v1687 = vmul.f32 %v1463, %v1650
        %v1688 = vmul.f32 %v1464, %v1655
        %v1689 = vld [vmem:[%s316] sm:$0xf]
        %v1690 = vld [vmem:[%s316 + $0x4] sm:$0xf]
        %v1691 = vld [vmem:[%s316 + $0x8] sm:$0xf]
        %v1692 = vld [vmem:[%s316 + $0xc] sm:$0xf]
        %v1693 = vld [vmem:[%s316 + $0x10] sm:$0xf]
        %v1694 = vld [vmem:[%s316 + $0x14] sm:$0xf]
        %v1695 = vld [vmem:[%s316 + $0x18] sm:$0xf]
        %v1696 = vld [vmem:[%s316 + $0x1c] sm:$0xf]
        %v1697 = vld [vmem:[%s316 + $0x20] sm:$0xf]
        %v1698 = vld [vmem:[%s316 + $0x24] sm:$0xf]
        %v1699 = vld [vmem:[%s316 + $0x28] sm:$0xf]
        %v1700 = vld [vmem:[%s316 + $0x2c] sm:$0xf]
        %v1701 = vld [vmem:[%s316 + $0x30] sm:$0xf]
        %v1702 = vld [vmem:[%s316 + $0x34] sm:$0xf]
        %v1703 = vld [vmem:[%s316 + $0x38] sm:$0xf]
        %v1704 = vld [vmem:[%s316 + $0x3c] sm:$0xf]
        %v1705 = vld [vmem:[%s316 + $0x40] sm:$0xf]
        %v1706 = vld [vmem:[%s316 + $0x44] sm:$0xf]
        %v1707 = vld [vmem:[%s316 + $0x48] sm:$0xf]
        %v1708 = vld [vmem:[%s316 + $0x4c] sm:$0xf]
        %v1709 = vld [vmem:[%s316 + $0x50] sm:$0xf]
        %v1710 = vld [vmem:[%s316 + $0x54] sm:$0xf]
        %v1711 = vld [vmem:[%s316 + $0x58] sm:$0xf]
        %v1712 = vld [vmem:[%s316 + $0x5c] sm:$0xf]
        %v1713 = vld [vmem:[%s316 + $0x60] sm:$0xf]
        %v1714 = vld [vmem:[%s316 + $0x64] sm:$0xf]
        %v1715 = vld [vmem:[%s316 + $0x68] sm:$0xf]
        %v1716 = vld [vmem:[%s316 + $0x6c] sm:$0xf]
        %v1717 = vld [vmem:[%s316 + $0x70] sm:$0xf]
        %v1718 = vld [vmem:[%s316 + $0x74] sm:$0xf]
        %v1719 = vld [vmem:[%s316 + $0x78] sm:$0xf]
        %v1720 = vld [vmem:[%s316 + $0x7c] sm:$0xf]
        %v1721 = vld [vmem:[%s3] sm:$0xf]
        %v1722 = vld [vmem:[%s3 + $0x4] sm:$0xf]
        %v1723 = vld [vmem:[%s3 + $0x8] sm:$0xf]
        %v1724 = vld [vmem:[%s3 + $0xc] sm:$0xf]
        %v1725 = vld [vmem:[%s3 + $0x10] sm:$0xf]
        %v1726 = vld [vmem:[%s3 + $0x14] sm:$0xf]
        %v1727 = vld [vmem:[%s3 + $0x18] sm:$0xf]
        %v1728 = vld [vmem:[%s3 + $0x1c] sm:$0xf]
        %v1729 = vld [vmem:[%s3 + $0x20] sm:$0xf]
        %v1730 = vld [vmem:[%s3 + $0x24] sm:$0xf]
        %v1731 = vld [vmem:[%s3 + $0x28] sm:$0xf]
        %v1732 = vld [vmem:[%s3 + $0x2c] sm:$0xf]
        %v1733 = vld [vmem:[%s3 + $0x30] sm:$0xf]
        %v1734 = vld [vmem:[%s3 + $0x34] sm:$0xf]
        %v1735 = vld [vmem:[%s3 + $0x38] sm:$0xf]
        %v1736 = vld [vmem:[%s3 + $0x3c] sm:$0xf]
        %v1769 = vunpack.c.l.b16 %v1689
        %v1770 = vunpack.c.l.b16 %v1690
        %v1771 = vunpack.c.l.b16 %v1691
        %v1772 = vunpack.c.l.b16 %v1692
        %v1773 = vunpack.c.l.b16 %v1693
        %v1774 = vunpack.c.l.b16 %v1694
        %v1775 = vunpack.c.l.b16 %v1695
        %v1776 = vunpack.c.l.b16 %v1696
        %v1777 = vunpack.c.l.b16 %v1697
        %v1778 = vunpack.c.l.b16 %v1698
        %v1779 = vunpack.c.l.b16 %v1699
        %v1780 = vunpack.c.l.b16 %v1700
        %v1781 = vunpack.c.l.b16 %v1701
        %v1782 = vunpack.c.l.b16 %v1702
        %v1783 = vunpack.c.l.b16 %v1703
        %v1784 = vunpack.c.l.b16 %v1704
        %v1785 = vunpack.c.l.b16 %v1705
        %v1786 = vunpack.c.l.b16 %v1706
        %v1787 = vunpack.c.l.b16 %v1707
        %v1788 = vunpack.c.l.b16 %v1708
        %v1789 = vunpack.c.l.b16 %v1709
        %v1790 = vunpack.c.l.b16 %v1710
        %v1791 = vunpack.c.l.b16 %v1711
        %v1792 = vunpack.c.l.b16 %v1712
        %v1793 = vunpack.c.l.b16 %v1713
        %v1794 = vunpack.c.l.b16 %v1714
        %v1795 = vunpack.c.l.b16 %v1715
        %v1796 = vunpack.c.l.b16 %v1716
        %v1797 = vunpack.c.l.b16 %v1717
        %v1798 = vunpack.c.l.b16 %v1718
        %v1799 = vunpack.c.l.b16 %v1719
        %v1800 = vunpack.c.l.b16 %v1720
        %v1801 = vpack.c.b16 %v1770, %v1769
        %v1802 = vpack.c.b16 %v1772, %v1771
        %v1803 = vpack.c.b16 %v1774, %v1773
        %v1804 = vpack.c.b16 %v1776, %v1775
        %v1805 = vpack.c.b16 %v1778, %v1777
        %v1806 = vpack.c.b16 %v1780, %v1779
        %v1807 = vpack.c.b16 %v1782, %v1781
        %v1808 = vpack.c.b16 %v1784, %v1783
        %v1809 = vpack.c.b16 %v1786, %v1785
        %v1810 = vpack.c.b16 %v1788, %v1787
        %v1811 = vpack.c.b16 %v1790, %v1789
        %v1812 = vpack.c.b16 %v1792, %v1791
        %v1813 = vpack.c.b16 %v1794, %v1793
        %v1814 = vpack.c.b16 %v1796, %v1795
        %v1815 = vpack.c.b16 %v1798, %v1797
        %v1816 = vpack.c.b16 %v1800, %v1799
        %v1849 = vunpack.c.l.b16 %v1721
        %v1850 = vunpack.c.l.b16 %v1722
        %v1851 = vunpack.c.l.b16 %v1723
        %v1852 = vunpack.c.l.b16 %v1724
        %v1853 = vunpack.c.l.b16 %v1725
        %v1854 = vunpack.c.l.b16 %v1726
        %v1855 = vunpack.c.l.b16 %v1727
        %v1856 = vunpack.c.l.b16 %v1728
        %v1857 = vunpack.c.l.b16 %v1729
        %v1858 = vunpack.c.l.b16 %v1730
        %v1859 = vunpack.c.l.b16 %v1731
        %v1860 = vunpack.c.l.b16 %v1732
        %v1861 = vunpack.c.l.b16 %v1733
        %v1862 = vunpack.c.l.b16 %v1734
        %v1863 = vunpack.c.l.b16 %v1735
        %v1864 = vunpack.c.l.b16 %v1736
        %v1865 = vpack.c.b16 %v1850, %v1849
        %v1866 = vpack.c.b16 %v1852, %v1851
        %v1867 = vpack.c.b16 %v1854, %v1853
        %v1868 = vpack.c.b16 %v1856, %v1855
        %v1869 = vpack.c.b16 %v1858, %v1857
        %v1870 = vpack.c.b16 %v1860, %v1859
        %v1871 = vpack.c.b16 %v1862, %v1861
        %v1872 = vpack.c.b16 %v1864, %v1863
        %1881 = vmatprep.subr.bf16.mxu0 0
        %1882 = vmatpush1.bf16.msra.mxu0 %v1865
        %1883 = vmatprep.subr.bf16.mxu0 0
        %1884 = vmatpush1.bf16.msra.mxu0 %v1866
        %1885 = vmatprep.subr.bf16.mxu0 0
        %1886 = vmatpush1.bf16.msra.mxu0 %v1867
        %1887 = vmatprep.subr.bf16.mxu0 0
        %1888 = vmatpush1.bf16.msra.mxu0 %v1868
        %1889 = vmatprep.subr.bf16.mxu0 0
        %1890 = vmatpush1.bf16.msra.mxu0 %v1869
        %1891 = vmatprep.subr.bf16.mxu0 0
        %1892 = vmatpush1.bf16.msra.mxu0 %v1870
        %1893 = vmatprep.subr.bf16.mxu0 0
        %1894 = vmatpush1.bf16.msra.mxu0 %v1871
        %1895 = vmatprep.subr.bf16.mxu0 0
        %1896 = vmatpush1.bf16.msra.mxu0 %v1872
        %1897 = vmatprep.subr.bf16.mxu0 0
        %1898 = vmatpush1.bf16.msra.mxu0 0
        %1899 = vmatprep.subr.bf16.mxu0 0
        %1900 = vmatpush1.bf16.msra.mxu0 0
        %1901 = vmatprep.subr.bf16.mxu0 0
        %1902 = vmatpush1.bf16.msra.mxu0 0
        %1903 = vmatprep.subr.bf16.mxu0 0
        %1904 = vmatpush1.bf16.msra.mxu0 0
        %1905 = vmatprep.subr.bf16.mxu0 0
        %1906 = vmatpush1.bf16.msra.mxu0 0
        %1907 = vmatprep.subr.bf16.mxu0 0
        %1908 = vmatpush1.bf16.msra.mxu0 0
        %1909 = vmatprep.subr.bf16.mxu0 0
        %1910 = vmatpush1.bf16.msra.mxu0 0
        %1911 = vmatprep.subr.bf16.mxu0 0
        %1912 = vmatpush1.bf16.msra.mxu0 0
        %1913 = vmatprep.mubr.bf16.mxu0 0
        %1914 = vmatmul.mubr.bf16.gmra.mrb[0].mxu0 %v1801
        %v1915 = vpop.f32.mrb[0].mxu0
        %v1916 = vadd.f32 0.0, %v1915
        %v1917 = vpop.f32.mrb[0].mxu0
        %v1918 = vpop.f32.mrb[0].mxu0
        %v1919 = vadd.f32 0.0, %v1918
        %v1920 = vpop.f32.mrb[0].mxu0
        %1921 = vmatprep.mubr.bf16.mxu0 0
        %1922 = vmatmul.mubr.bf16.gmra.mrb[0].mxu0 %v1802
        %v1923 = vpop.f32.mrb[0].mxu0
        %v1924 = vadd.f32 0.0, %v1923
        %v1925 = vpop.f32.mrb[0].mxu0
        %v1926 = vpop.f32.mrb[0].mxu0
        %v1927 = vadd.f32 0.0, %v1926
        %v1928 = vpop.f32.mrb[0].mxu0
        %1929 = vmatprep.mubr.bf16.mxu0 0
        %1930 = vmatmul.mubr.bf16.gmra.mrb[0].mxu0 %v1803
        %v1931 = vpop.f32.mrb[0].mxu0
        %v1932 = vadd.f32 0.0, %v1931
        %v1933 = vpop.f32.mrb[0].mxu0
        %v1934 = vpop.f32.mrb[0].mxu0
        %v1935 = vadd.f32 0.0, %v1934
        %v1936 = vpop.f32.mrb[0].mxu0
        %1937 = vmatprep.mubr.bf16.mxu0 0
        %1938 = vmatmul.mubr.bf16.gmra.mrb[0].mxu0 %v1804
        %v1939 = vpop.f32.mrb[0].mxu0
        %v1940 = vadd.f32 0.0, %v1939
        %v1941 = vpop.f32.mrb[0].mxu0
        %v1942 = vpop.f32.mrb[0].mxu0
        %v1943 = vadd.f32 0.0, %v1942
        %v1944 = vpop.f32.mrb[0].mxu0
        %1945 = vmatprep.mubr.bf16.mxu0 0
        %1946 = vmatmul.mubr.bf16.gmra.mrb[0].mxu0 %v1805
        %v1947 = vpop.f32.mrb[0].mxu0
        %v1948 = vadd.f32 0.0, %v1947
        %v1949 = vpop.f32.mrb[0].mxu0
        %v1950 = vpop.f32.mrb[0].mxu0
        %v1951 = vadd.f32 0.0, %v1950
        %v1952 = vpop.f32.mrb[0].mxu0
        %1953 = vmatprep.mubr.bf16.mxu0 0
        %1954 = vmatmul.mubr.bf16.gmra.mrb[0].mxu0 %v1806
        %v1955 = vpop.f32.mrb[0].mxu0
        %v1956 = vadd.f32 0.0, %v1955
        %v1957 = vpop.f32.mrb[0].mxu0
        %v1958 = vpop.f32.mrb[0].mxu0
        %v1959 = vadd.f32 0.0, %v1958
        %v1960 = vpop.f32.mrb[0].mxu0
        %1961 = vmatprep.mubr.bf16.mxu0 0
        %1962 = vmatmul.mubr.bf16.gmra.mrb[0].mxu0 %v1807
        %v1963 = vpop.f32.mrb[0].mxu0
        %v1964 = vadd.f32 0.0, %v1963
        %v1965 = vpop.f32.mrb[0].mxu0
        %v1966 = vpop.f32.mrb[0].mxu0
        %v1967 = vadd.f32 0.0, %v1966
        %v1968 = vpop.f32.mrb[0].mxu0
        %1969 = vmatprep.mubr.bf16.mxu0 0
        %1970 = vmatmul.mubr.bf16.gmra.mrb[0].mxu0 %v1808
        %v1971 = vpop.f32.mrb[0].mxu0
        %v1972 = vadd.f32 0.0, %v1971
        %v1973 = vpop.f32.mrb[0].mxu0
        %v1974 = vpop.f32.mrb[0].mxu0
        %v1975 = vadd.f32 0.0, %v1974
        %v1976 = vpop.f32.mrb[0].mxu0
        %1977 = vmatprep.mubr.bf16.mxu0 0
        %1978 = vmatmul.mubr.bf16.gmra.mrb[0].mxu0 %v1809
        %v1979 = vpop.f32.mrb[0].mxu0
        %v1980 = vadd.f32 0.0, %v1979
        %v1981 = vpop.f32.mrb[0].mxu0
        %v1982 = vpop.f32.mrb[0].mxu0
        %v1983 = vadd.f32 0.0, %v1982
        %v1984 = vpop.f32.mrb[0].mxu0
        %1985 = vmatprep.mubr.bf16.mxu0 0
        %1986 = vmatmul.mubr.bf16.gmra.mrb[0].mxu0 %v1810
        %v1987 = vpop.f32.mrb[0].mxu0
        %v1988 = vadd.f32 0.0, %v1987
        %v1989 = vpop.f32.mrb[0].mxu0
        %v1990 = vpop.f32.mrb[0].mxu0
        %v1991 = vadd.f32 0.0, %v1990
        %v1992 = vpop.f32.mrb[0].mxu0
        %1993 = vmatprep.mubr.bf16.mxu0 0
        %1994 = vmatmul.mubr.bf16.gmra.mrb[0].mxu0 %v1811
        %v1995 = vpop.f32.mrb[0].mxu0
        %v1996 = vadd.f32 0.0, %v1995
        %v1997 = vpop.f32.mrb[0].mxu0
        %v1998 = vpop.f32.mrb[0].mxu0
        %v1999 = vadd.f32 0.0, %v1998
        %v2000 = vpop.f32.mrb[0].mxu0
        %2001 = vmatprep.mubr.bf16.mxu0 0
        %2002 = vmatmul.mubr.bf16.gmra.mrb[0].mxu0 %v1812
        %v2003 = vpop.f32.mrb[0].mxu0
        %v2004 = vadd.f32 0.0, %v2003
        %v2005 = vpop.f32.mrb[0].mxu0
        %v2006 = vpop.f32.mrb[0].mxu0
        %v2007 = vadd.f32 0.0, %v2006
        %v2008 = vpop.f32.mrb[0].mxu0
        %2009 = vmatprep.mubr.bf16.mxu0 0
        %2010 = vmatmul.mubr.bf16.gmra.mrb[0].mxu0 %v1813
        %v2011 = vpop.f32.mrb[0].mxu0
        %v2012 = vadd.f32 0.0, %v2011
        %v2013 = vpop.f32.mrb[0].mxu0
        %v2014 = vpop.f32.mrb[0].mxu0
        %v2015 = vadd.f32 0.0, %v2014
        %v2016 = vpop.f32.mrb[0].mxu0
        %2017 = vmatprep.mubr.bf16.mxu0 0
        %2018 = vmatmul.mubr.bf16.gmra.mrb[0].mxu0 %v1814
        %v2019 = vpop.f32.mrb[0].mxu0
        %v2020 = vadd.f32 0.0, %v2019
        %v2021 = vpop.f32.mrb[0].mxu0
        %v2022 = vpop.f32.mrb[0].mxu0
        %v2023 = vadd.f32 0.0, %v2022
        %v2024 = vpop.f32.mrb[0].mxu0
        %2025 = vmatprep.mubr.bf16.mxu0 0
        %2026 = vmatmul.mubr.bf16.gmra.mrb[0].mxu0 %v1815
        %v2027 = vpop.f32.mrb[0].mxu0
        %v2028 = vadd.f32 0.0, %v2027
        %v2029 = vpop.f32.mrb[0].mxu0
        %v2030 = vpop.f32.mrb[0].mxu0
        %v2031 = vadd.f32 0.0, %v2030
        %v2032 = vpop.f32.mrb[0].mxu0
        %2033 = vmatprep.mubr.bf16.mxu0 0
        %2034 = vmatmul.mubr.bf16.gmra.mrb[0].mxu0 %v1816
        %v2035 = vpop.f32.mrb[0].mxu0
        %v2036 = vadd.f32 0.0, %v2035
        %v2037 = vpop.f32.mrb[0].mxu0
        %v2038 = vpop.f32.mrb[0].mxu0
        %v2039 = vadd.f32 0.0, %v2038
        %v2040 = vpop.f32.mrb[0].mxu0
        %2041 = vdwg.mxu0
        %v2042 = vadd.f32 %v1657, %v1916
        %v2043 = vadd.f32 %v1658, %v1919
        %v2044 = vadd.f32 %v1659, %v1924
        %v2045 = vadd.f32 %v1660, %v1927
        %v2046 = vadd.f32 %v1661, %v1932
        %v2047 = vadd.f32 %v1662, %v1935
        %v2048 = vadd.f32 %v1663, %v1940
        %v2049 = vadd.f32 %v1664, %v1943
        %v2050 = vadd.f32 %v1665, %v1948
        %v2051 = vadd.f32 %v1666, %v1951
        %v2052 = vadd.f32 %v1667, %v1956
        %v2053 = vadd.f32 %v1668, %v1959
        %v2054 = vadd.f32 %v1669, %v1964
        %v2055 = vadd.f32 %v1670, %v1967
        %v2056 = vadd.f32 %v1671, %v1972
        %v2057 = vadd.f32 %v1672, %v1975
        %v2058 = vadd.f32 %v1673, %v1980
        %v2059 = vadd.f32 %v1674, %v1983
        %v2060 = vadd.f32 %v1675, %v1988
        %v2061 = vadd.f32 %v1676, %v1991
        %v2062 = vadd.f32 %v1677, %v1996
        %v2063 = vadd.f32 %v1678, %v1999
        %v2064 = vadd.f32 %v1679, %v2004
        %v2065 = vadd.f32 %v1680, %v2007
        %v2066 = vadd.f32 %v1681, %v2012
        %v2067 = vadd.f32 %v1682, %v2015
        %v2068 = vadd.f32 %v1683, %v2020
        %v2069 = vadd.f32 %v1684, %v2023
        %v2070 = vadd.f32 %v1685, %v2028
        %v2071 = vadd.f32 %v1686, %v2031
        %v2072 = vadd.f32 %v1687, %v2036
        %v2073 = vadd.f32 %v1688, %v2039
        %v2074 = vld [vmem:[%s4] sm:$0x1]
        %v2076 = vlaneseq
        %v2077 = vshrl.u32 %v2076, 7
        %v2078 = vsub.s32 0, %v2077
        %v2079 = vrot.slane %v2074, %v2078
        %v2081 = vadd.f32 %v2042, %v2079
        %v2082 = vadd.f32 %v2043, %v2079
        %v2083 = vadd.f32 %v2044, %v2079
        %v2084 = vadd.f32 %v2045, %v2079
        %v2085 = vadd.f32 %v2046, %v2079
        %v2086 = vadd.f32 %v2047, %v2079
        %v2087 = vadd.f32 %v2048, %v2079
        %v2088 = vadd.f32 %v2049, %v2079
        %v2089 = vadd.f32 %v2050, %v2079
        %v2090 = vadd.f32 %v2051, %v2079
        %v2091 = vadd.f32 %v2052, %v2079
        %v2092 = vadd.f32 %v2053, %v2079
        %v2093 = vadd.f32 %v2054, %v2079
        %v2094 = vadd.f32 %v2055, %v2079
        %v2095 = vadd.f32 %v2056, %v2079
        %v2096 = vadd.f32 %v2057, %v2079
        %v2097 = vadd.f32 %v2058, %v2079
        %v2098 = vadd.f32 %v2059, %v2079
        %v2099 = vadd.f32 %v2060, %v2079
        %v2100 = vadd.f32 %v2061, %v2079
        %v2101 = vadd.f32 %v2062, %v2079
        %v2102 = vadd.f32 %v2063, %v2079
        %v2103 = vadd.f32 %v2064, %v2079
        %v2104 = vadd.f32 %v2065, %v2079
        %v2105 = vadd.f32 %v2066, %v2079
        %v2106 = vadd.f32 %v2067, %v2079
        %v2107 = vadd.f32 %v2068, %v2079
        %v2108 = vadd.f32 %v2069, %v2079
        %v2109 = vadd.f32 %v2070, %v2079
        %v2110 = vadd.f32 %v2071, %v2079
        %v2111 = vadd.f32 %v2072, %v2079
        %v2112 = vadd.f32 %v2073, %v2079
        %v2113 = vmax.f32 %v2081, 0.0
        %v2114 = vmax.f32 %v2082, 0.0
        %v2115 = vmax.f32 %v2083, 0.0
        %v2116 = vmax.f32 %v2084, 0.0
        %v2117 = vmax.f32 %v2085, 0.0
        %v2118 = vmax.f32 %v2086, 0.0
        %v2119 = vmax.f32 %v2087, 0.0
        %v2120 = vmax.f32 %v2088, 0.0
        %v2121 = vmax.f32 %v2089, 0.0
        %v2122 = vmax.f32 %v2090, 0.0
        %v2123 = vmax.f32 %v2091, 0.0
        %v2124 = vmax.f32 %v2092, 0.0
        %v2125 = vmax.f32 %v2093, 0.0
        %v2126 = vmax.f32 %v2094, 0.0
        %v2127 = vmax.f32 %v2095, 0.0
        %v2128 = vmax.f32 %v2096, 0.0
        %v2129 = vmax.f32 %v2097, 0.0
        %v2130 = vmax.f32 %v2098, 0.0
        %v2131 = vmax.f32 %v2099, 0.0
        %v2132 = vmax.f32 %v2100, 0.0
        %v2133 = vmax.f32 %v2101, 0.0
        %v2134 = vmax.f32 %v2102, 0.0
        %v2135 = vmax.f32 %v2103, 0.0
        %v2136 = vmax.f32 %v2104, 0.0
        %v2137 = vmax.f32 %v2105, 0.0
        %v2138 = vmax.f32 %v2106, 0.0
        %v2139 = vmax.f32 %v2107, 0.0
        %v2140 = vmax.f32 %v2108, 0.0
        %v2141 = vmax.f32 %v2109, 0.0
        %v2142 = vmax.f32 %v2110, 0.0
        %v2143 = vmax.f32 %v2111, 0.0
        %v2144 = vmax.f32 %v2112, 0.0
        %v2145 = vpack.c.bf16 %v2114, %v2113
        %v2146 = vpack.c.bf16 %v2116, %v2115
        %v2147 = vpack.c.bf16 %v2118, %v2117
        %v2148 = vpack.c.bf16 %v2120, %v2119
        %v2149 = vpack.c.bf16 %v2122, %v2121
        %v2150 = vpack.c.bf16 %v2124, %v2123
        %v2151 = vpack.c.bf16 %v2126, %v2125
        %v2152 = vpack.c.bf16 %v2128, %v2127
        %v2153 = vpack.c.bf16 %v2130, %v2129
        %v2154 = vpack.c.bf16 %v2132, %v2131
        %v2155 = vpack.c.bf16 %v2134, %v2133
        %v2156 = vpack.c.bf16 %v2136, %v2135
        %v2157 = vpack.c.bf16 %v2138, %v2137
        %v2158 = vpack.c.bf16 %v2140, %v2139
        %v2159 = vpack.c.bf16 %v2142, %v2141
        %v2160 = vpack.c.bf16 %v2144, %v2143
        %v2177 = vunpack.c.l.b16 %v2145
        %v2178 = vunpack.c.h.b16 %v2145
        %v2179 = vunpack.c.l.b16 %v2146
        %v2180 = vunpack.c.h.b16 %v2146
        %v2181 = vunpack.c.l.b16 %v2147
        %v2182 = vunpack.c.h.b16 %v2147
        %v2183 = vunpack.c.l.b16 %v2148
        %v2184 = vunpack.c.h.b16 %v2148
        %v2185 = vunpack.c.l.b16 %v2149
        %v2186 = vunpack.c.h.b16 %v2149
        %v2187 = vunpack.c.l.b16 %v2150
        %v2188 = vunpack.c.h.b16 %v2150
        %v2189 = vunpack.c.l.b16 %v2151
        %v2190 = vunpack.c.h.b16 %v2151
        %v2191 = vunpack.c.l.b16 %v2152
        %v2192 = vunpack.c.h.b16 %v2152
        %v2193 = vunpack.c.l.b16 %v2153
        %v2194 = vunpack.c.h.b16 %v2153
        %v2195 = vunpack.c.l.b16 %v2154
        %v2196 = vunpack.c.h.b16 %v2154
        %v2197 = vunpack.c.l.b16 %v2155
        %v2198 = vunpack.c.h.b16 %v2155
        %v2199 = vunpack.c.l.b16 %v2156
        %v2200 = vunpack.c.h.b16 %v2156
        %v2201 = vunpack.c.l.b16 %v2157
        %v2202 = vunpack.c.h.b16 %v2157
        %v2203 = vunpack.c.l.b16 %v2158
        %v2204 = vunpack.c.h.b16 %v2158
        %v2205 = vunpack.c.l.b16 %v2159
        %v2206 = vunpack.c.h.b16 %v2159
        %v2207 = vunpack.c.l.b16 %v2160
        %v2208 = vunpack.c.h.b16 %v2160
        %v2209 = vpack.c.b16 %v2177, %v2177
        %v2210 = vpack.c.b16 %v2178, %v2178
        %v2211 = vpack.c.b16 %v2179, %v2179
        %v2212 = vpack.c.b16 %v2180, %v2180
        %v2213 = vpack.c.b16 %v2181, %v2181
        %v2214 = vpack.c.b16 %v2182, %v2182
        %v2215 = vpack.c.b16 %v2183, %v2183
        %v2216 = vpack.c.b16 %v2184, %v2184
        %v2217 = vpack.c.b16 %v2185, %v2185
        %v2218 = vpack.c.b16 %v2186, %v2186
        %v2219 = vpack.c.b16 %v2187, %v2187
        %v2220 = vpack.c.b16 %v2188, %v2188
        %v2221 = vpack.c.b16 %v2189, %v2189
        %v2222 = vpack.c.b16 %v2190, %v2190
        %v2223 = vpack.c.b16 %v2191, %v2191
        %v2224 = vpack.c.b16 %v2192, %v2192
        %v2225 = vpack.c.b16 %v2193, %v2193
        %v2226 = vpack.c.b16 %v2194, %v2194
        %v2227 = vpack.c.b16 %v2195, %v2195
        %v2228 = vpack.c.b16 %v2196, %v2196
        %v2229 = vpack.c.b16 %v2197, %v2197
        %v2230 = vpack.c.b16 %v2198, %v2198
        %v2231 = vpack.c.b16 %v2199, %v2199
        %v2232 = vpack.c.b16 %v2200, %v2200
        %v2233 = vpack.c.b16 %v2201, %v2201
        %v2234 = vpack.c.b16 %v2202, %v2202
        %v2235 = vpack.c.b16 %v2203, %v2203
        %v2236 = vpack.c.b16 %v2204, %v2204
        %v2237 = vpack.c.b16 %v2205, %v2205
        %v2238 = vpack.c.b16 %v2206, %v2206
        %v2239 = vpack.c.b16 %v2207, %v2207
        %v2240 = vpack.c.b16 %v2208, %v2208
        %2273 = vst [vmem:[%s328] sm:$0xf] %v2209
        %2274 = vst [vmem:[%s328 + $0x4] sm:$0xf] %v2210
        %2275 = vst [vmem:[%s328 + $0x8] sm:$0xf] %v2211
        %2276 = vst [vmem:[%s328 + $0xc] sm:$0xf] %v2212
        %2277 = vst [vmem:[%s328 + $0x10] sm:$0xf] %v2213
        %2278 = vst [vmem:[%s328 + $0x14] sm:$0xf] %v2214
        %2279 = vst [vmem:[%s328 + $0x18] sm:$0xf] %v2215
        %2280 = vst [vmem:[%s328 + $0x1c] sm:$0xf] %v2216
        %2281 = vst [vmem:[%s328 + $0x20] sm:$0xf] %v2217
        %2282 = vst [vmem:[%s328 + $0x24] sm:$0xf] %v2218
        %2283 = vst [vmem:[%s328 + $0x28] sm:$0xf] %v2219
        %2284 = vst [vmem:[%s328 + $0x2c] sm:$0xf] %v2220
        %2285 = vst [vmem:[%s328 + $0x30] sm:$0xf] %v2221
        %2286 = vst [vmem:[%s328 + $0x34] sm:$0xf] %v2222
        %2287 = vst [vmem:[%s328 + $0x38] sm:$0xf] %v2223
        %2288 = vst [vmem:[%s328 + $0x3c] sm:$0xf] %v2224
        %2289 = vst [vmem:[%s328 + $0x40] sm:$0xf] %v2225
        %2290 = vst [vmem:[%s328 + $0x44] sm:$0xf] %v2226
        %2291 = vst [vmem:[%s328 + $0x48] sm:$0xf] %v2227
        %2292 = vst [vmem:[%s328 + $0x4c] sm:$0xf] %v2228
        %2293 = vst [vmem:[%s328 + $0x50] sm:$0xf] %v2229
        %2294 = vst [vmem:[%s328 + $0x54] sm:$0xf] %v2230
        %2295 = vst [vmem:[%s328 + $0x58] sm:$0xf] %v2231
        %2296 = vst [vmem:[%s328 + $0x5c] sm:$0xf] %v2232
        %2297 = vst [vmem:[%s328 + $0x60] sm:$0xf] %v2233
        %2298 = vst [vmem:[%s328 + $0x64] sm:$0xf] %v2234
        %2299 = vst [vmem:[%s328 + $0x68] sm:$0xf] %v2235
        %2300 = vst [vmem:[%s328 + $0x6c] sm:$0xf] %v2236
        %2301 = vst [vmem:[%s328 + $0x70] sm:$0xf] %v2237
        %2302 = vst [vmem:[%s328 + $0x74] sm:$0xf] %v2238
        %2303 = vst [vmem:[%s328 + $0x78] sm:$0xf] %v2239
        %2304 = vst [vmem:[%s328 + $0x7c] sm:$0xf] %v2240
      $region52: #{graphsage_forward.5} parent=43 // pred_fallthru
        _
      %s2305 = smul.u32 32, %s21
      %p2306 = scmp.lt.s32.totalorder %s2305, 63
      %s2307 = scalar_select %p2306, %s2305, 63
      %s2308 = smul.addr %s2307, 4
      %s2309 = scalar_lea.vmem %s6, %s2308
      // Predicated region
      $region53: #{graphsage_forward.5} parent=43 // pred_check
        %p2310 = pneg %p190
      $region54: #{graphsage_forward.5} parent=43 // pred_check_branch
        %2312 = sbr.rel (%p2310) target = $region56
      $region55: #{graphsage_forward.5} parent=43 // pred_region
        %s2313 = smul.u32 32, %s21
      $region56: #{graphsage_forward.5} parent=43 // pred_fallthru
        _
    $region44: #{graphsage_forward.5} parent=5 // pred_fallthru
      _
    %p2314 = scmp.le.s32.totalorder 2, %s12
    // Predicated region
    $region57: #{graphsage_forward.5} parent=5 // pred_check
      %p2315 = pneg %p2314
    $region58: #{graphsage_forward.5} parent=5 // pred_check_branch
      %2317 = sbr.rel (%p2315) target = $region60
    $region59: #{graphsage_forward.5} parent=5 // pred_region
      %s2318 = ssub.s32 %s12, 2
      // Predicated region
      $region61: #{graphsage_forward.5} parent=59 // pred_check
        %p2319 = pneg %p196
      $region62: #{graphsage_forward.5} parent=59 // pred_check_branch
        %2321 = sbr.rel (%p2319) target = $region64
      $region63: #{graphsage_forward.5} parent=59 // pred_region
        %s2322 = smul.u32 32, %s23
        %p2323 = scmp.lt.s32.totalorder %s2322, 63
        %s2324 = scalar_select %p2323, %s2322, 63
        %s2325 = smul.addr %s2324, 4
        %s2326 = scalar_lea.vmem %s6, %s2325
      $region64: #{graphsage_forward.5} parent=59 // pred_fallthru
        _
    $region60: #{graphsage_forward.5} parent=5 // pred_fallthru
      _
  $region6: #{graphsage_forward.5} parent=0 // loop_footer
    %s16 = sadd.s32 1, %s12
  $region7: #{graphsage_forward.5} parent=0 // loop_footer_branch
    %11 = sbr.rel target = $region3
  $region8: #{graphsage_forward.5} parent=0 // loop_exit
    _

// kernel: graphsage_forward.7
$region0: #{graphsage_forward.7}
  #allocation0 [shape = 'u32[]', space=smem, size = 0x4, offset = 0x4, fixed_abs, tag = 'smem constant byte address 0x4 - core index']
  #allocation1 [shape = 'u32[144,128]{1,0:T(1,128)}', space=vmem, size = 0x12000, scoped, tag = 'internal scratch']
  #allocation2 [shape = 'f32[256,128]{1,0:T(8,128)}', space=vmem, size = 0x20000, scoped, tag = 'scratch operand']
  %s0 = inlined_call_operand.vmem [shape: bf16[512,512], index: 0, kind: input, shape index: {}]
  %s1 = inlined_call_operand.vmem [shape: bf16[512,128], index: 1, kind: input, shape index: {}]
  %s2 = inlined_call_operand.vmem [shape: bf16[512,128], index: 2, kind: input, shape index: {}]
  %s3 = inlined_call_operand.vmem [shape: bf16[128,128], index: 3, kind: input, shape index: {}]
  %s4 = inlined_call_operand.vmem [shape: f32[1,128], index: 4, kind: input, shape index: {}]
  %s5 = inlined_call_operand.vmem [shape: f32[512,1], index: 5, kind: input, shape index: {}]
  %s6 = inlined_call_operand.vmem [shape: f32[512,128], index: 6, kind: output, shape index: {}]
  %s7 = sld [smem:[#allocation0]]
  $region65: #{graphsage_forward.7} parent=0
    _
  %s9 = ssub.s32 1, %s7
  %s10 = scalar_select 0, %s9, %s7
  loop: start=0, step=1, limit=4
  $region2: #{graphsage_forward.7} parent=0 // loop_pre_header
    _
  $region3: #{graphsage_forward.7} parent=0 // loop_header
    %s12 = sphi 0, %s16
    %p13 = scmp.ge.s32.totalorder %s12, 4
    %s19 = sphi 0, %s31
    %s20 = sphi 0, %s27
    %s21 = sphi 0, %s19
    %s22 = sphi 0, %s20
    %s23 = sphi 0, %s21
    %s24 = sphi 0, %s22
    %s36 = sphi 0, %s38
    %s39 = sphi 0, %s36
    %s40 = sphi 0, %s39
    %s56 = sphi 0, %s40
    %s60 = sphi 0, %s60
    %s62 = sphi 0, %s60
    %s63 = sphi 0, %s62
    %s77 = sphi 0, %s63
    %s83 = sphi 0, %s85
    %s86 = sphi 0, %s83
    %s87 = sphi 0, %s86
    %s103 = sphi 0, %s87
    %s107 = sphi 0, %s107
    %s109 = sphi 0, %s107
    %s110 = sphi 0, %s109
    %s124 = sphi 0, %s110
    %s128 = sphi 0, %s128
    %s130 = sphi 0, %s128
    %s131 = sphi 0, %s130
    %s145 = sphi 0, %s131
    %s151 = sphi 0, %s153
    %s154 = sphi 0, %s151
    %s155 = sphi 0, %s154
    %s171 = sphi 0, %s155
    %s177 = sphi 0, %s179
    %s180 = sphi 0, %s177
    %s181 = sphi 0, %s180
    %s197 = sphi 0, %s181
  $region4: #{graphsage_forward.7} parent=0 // loop_header_branch
    %15 = sbr.rel (%p13) target = $region8
  $region5: #{graphsage_forward.7} parent=0 // loop_body
    %s17 = ssub.s32 %s12, 1
    %s18 = ssub.s32 %s12, 2
    %s25 = sadd.s32 1, %s20
    %p26 = scmp.ge.s32.totalorder %s25, 1
    %s27 = scalar_select %p26, 0, %s25
    %s28 = sadd.s32 1, %s19
    %s29 = scalar_select %p26, %s28, %s19
    %p30 = scmp.ge.s32.totalorder %s29, 2
    %s31 = scalar_select %p30, 0, %s29
    %s32 = ssub.s32 %s19, %s31
    %s33 = ssub.s32 %s20, %s27
    %s34 = sor.u32 %s32, %s33
    %p35 = scmp.eq.s32.totalorder %s34, 0
    %s37 = sadd.s32 %s36, 1
    %s38 = scalar_select %p35, %s36, %s37
    %p41 = pneg %p35
    %p42 = scmp.eq.s32.totalorder %s12, 1
    %p43 = por %p41, %p42
    %p44 = scmp.ne.s32.totalorder %s36, %s39
    %p45 = scmp.eq.s32.totalorder %s12, 0
    %p46 = por %p44, %p45
    %p47 = scmp.ne.s32.totalorder %s36, %s39
    %p48 = scmp.eq.s32.totalorder %s17, 1
    %p49 = por %p47, %p48
    %p50 = scmp.ne.s32.totalorder %s39, %s40
    %p51 = scmp.eq.s32.totalorder %s17, 0
    %p52 = por %p50, %p51
    %p53 = scmp.ne.s32.totalorder %s39, %s40
    %p54 = scmp.eq.s32.totalorder %s18, 1
    %p55 = por %p53, %p54
    %p57 = scmp.ne.s32.totalorder %s40, %s56
    %p58 = scmp.eq.s32.totalorder %s18, 0
    %p59 = por %p57, %p58
    %s61 = sadd.s32 %s60, 1
    %p64 = scmp.eq.s32.totalorder %s12, 1
    %p65 = scmp.ne.s32.totalorder %s60, %s62
    %p66 = scmp.eq.s32.totalorder %s12, 0
    %p67 = por %p65, %p66
    %p68 = scmp.ne.s32.totalorder %s60, %s62
    %p69 = scmp.eq.s32.totalorder %s17, 1
    %p70 = por %p68, %p69
    %p71 = scmp.ne.s32.totalorder %s62, %s63
    %p72 = scmp.eq.s32.totalorder %s17, 0
    %p73 = por %p71, %p72
    %p74 = scmp.ne.s32.totalorder %s62, %s63
    %p75 = scmp.eq.s32.totalorder %s18, 1
    %p76 = por %p74, %p75
    %p78 = scmp.ne.s32.totalorder %s63, %s77
    %p79 = scmp.eq.s32.totalorder %s18, 0
    %p80 = por %p78, %p79
    %s81 = ssub.s32 %s19, %s31
    %p82 = scmp.eq.s32.totalorder %s81, 0
    %s84 = sadd.s32 %s83, 1
    %s85 = scalar_select %p82, %s83, %s84
    %p88 = pneg %p82
    %p89 = scmp.eq.s32.totalorder %s12, 1
    %p90 = por %p88, %p89
    %p91 = scmp.ne.s32.totalorder %s83, %s86
    %p92 = scmp.eq.s32.totalorder %s12, 0
    %p93 = por %p91, %p92
    %p94 = scmp.ne.s32.totalorder %s83, %s86
    %p95 = scmp.eq.s32.totalorder %s17, 1
    %p96 = por %p94, %p95
    %p97 = scmp.ne.s32.totalorder %s86, %s87
    %p98 = scmp.eq.s32.totalorder %s17, 0
    %p99 = por %p97, %p98
    %p100 = scmp.ne.s32.totalorder %s86, %s87
    %p101 = scmp.eq.s32.totalorder %s18, 1
    %p102 = por %p100, %p101
    %p104 = scmp.ne.s32.totalorder %s87, %s103
    %p105 = scmp.eq.s32.totalorder %s18, 0
    %p106 = por %p104, %p105
    %s108 = sadd.s32 %s107, 1
    %p111 = scmp.eq.s32.totalorder %s12, 1
    %p112 = scmp.ne.s32.totalorder %s107, %s109
    %p113 = scmp.eq.s32.totalorder %s12, 0
    %p114 = por %p112, %p113
    %p115 = scmp.ne.s32.totalorder %s107, %s109
    %p116 = scmp.eq.s32.totalorder %s17, 1
    %p117 = por %p115, %p116
    %p118 = scmp.ne.s32.totalorder %s109, %s110
    %p119 = scmp.eq.s32.totalorder %s17, 0
    %p120 = por %p118, %p119
    %p121 = scmp.ne.s32.totalorder %s109, %s110
    %p122 = scmp.eq.s32.totalorder %s18, 1
    %p123 = por %p121, %p122
    %p125 = scmp.ne.s32.totalorder %s110, %s124
    %p126 = scmp.eq.s32.totalorder %s18, 0
    %p127 = por %p125, %p126
    %s129 = sadd.s32 %s128, 1
    %p132 = scmp.eq.s32.totalorder %s12, 1
    %p133 = scmp.ne.s32.totalorder %s128, %s130
    %p134 = scmp.eq.s32.totalorder %s12, 0
    %p135 = por %p133, %p134
    %p136 = scmp.ne.s32.totalorder %s128, %s130
    %p137 = scmp.eq.s32.totalorder %s17, 1
    %p138 = por %p136, %p137
    %p139 = scmp.ne.s32.totalorder %s130, %s131
    %p140 = scmp.eq.s32.totalorder %s17, 0
    %p141 = por %p139, %p140
    %p142 = scmp.ne.s32.totalorder %s130, %s131
    %p143 = scmp.eq.s32.totalorder %s18, 1
    %p144 = por %p142, %p143
    %p146 = scmp.ne.s32.totalorder %s131, %s145
    %p147 = scmp.eq.s32.totalorder %s18, 0
    %p148 = por %p146, %p147
    %s149 = ssub.s32 %s19, %s31
    %p150 = scmp.eq.s32.totalorder %s149, 0
    %s152 = sadd.s32 %s151, 1
    %s153 = scalar_select %p150, %s151, %s152
    %p156 = pneg %p150
    %p157 = scmp.eq.s32.totalorder %s12, 1
    %p158 = por %p156, %p157
    %p159 = scmp.ne.s32.totalorder %s151, %s154
    %p160 = scmp.eq.s32.totalorder %s12, 0
    %p161 = por %p159, %p160
    %p162 = scmp.ne.s32.totalorder %s151, %s154
    %p163 = scmp.eq.s32.totalorder %s17, 1
    %p164 = por %p162, %p163
    %p165 = scmp.ne.s32.totalorder %s154, %s155
    %p166 = scmp.eq.s32.totalorder %s17, 0
    %p167 = por %p165, %p166
    %p168 = scmp.ne.s32.totalorder %s154, %s155
    %p169 = scmp.eq.s32.totalorder %s18, 1
    %p170 = por %p168, %p169
    %p172 = scmp.ne.s32.totalorder %s155, %s171
    %p173 = scmp.eq.s32.totalorder %s18, 0
    %p174 = por %p172, %p173
    %s175 = ssub.s32 %s19, %s31
    %p176 = scmp.eq.s32.totalorder %s175, 0
    %s178 = sadd.s32 %s177, 1
    %s179 = scalar_select %p176, %s177, %s178
    %p182 = pneg %p176
    %p183 = scmp.eq.s32.totalorder %s12, 1
    %p184 = por %p182, %p183
    %p185 = scmp.ne.s32.totalorder %s177, %s180
    %p186 = scmp.eq.s32.totalorder %s12, 0
    %p187 = por %p185, %p186
    %p188 = scmp.ne.s32.totalorder %s177, %s180
    %p189 = scmp.eq.s32.totalorder %s17, 1
    %p190 = por %p188, %p189
    %p191 = scmp.ne.s32.totalorder %s180, %s181
    %p192 = scmp.eq.s32.totalorder %s17, 0
    %p193 = por %p191, %p192
    %p194 = scmp.ne.s32.totalorder %s180, %s181
    %p195 = scmp.eq.s32.totalorder %s18, 1
    %p196 = por %p194, %p195
    %p198 = scmp.ne.s32.totalorder %s181, %s197
    %p199 = scmp.eq.s32.totalorder %s18, 0
    %p200 = por %p198, %p199
    %p201 = scmp.le.s32.totalorder 1, %s12
    %p202 = scmp.lt.s32.totalorder %s12, 3
    %p203 = pnand %p201, %p202
    %p204 = pneg %p203
    // Predicated region
    $region9: #{graphsage_forward.7} parent=5 // pred_check
      _
    $region10: #{graphsage_forward.7} parent=5 // pred_check_branch
      %206 = sbr.rel (%p203) target = $region12
    $region11: #{graphsage_forward.7} parent=5 // pred_region
      %s207 = ssub.s32 %s12, 1
      // Predicated region
      $region13: #{graphsage_forward.7} parent=11 // pred_check
        %p208 = pneg %p73
      $region14: #{graphsage_forward.7} parent=11 // pred_check_branch
        %210 = sbr.rel (%p208) target = $region16
      $region15: #{graphsage_forward.7} parent=11 // pred_region
        _
      $region16: #{graphsage_forward.7} parent=11 // pred_fallthru
        _
      // Predicated region
      $region17: #{graphsage_forward.7} parent=11 // pred_check
        %p211 = pneg %p120
      $region18: #{graphsage_forward.7} parent=11 // pred_check_branch
        %213 = sbr.rel (%p211) target = $region20
      $region19: #{graphsage_forward.7} parent=11 // pred_region
        _
      $region20: #{graphsage_forward.7} parent=11 // pred_fallthru
        _
      // Predicated region
      $region21: #{graphsage_forward.7} parent=11 // pred_check
        %p214 = pneg %p141
      $region22: #{graphsage_forward.7} parent=11 // pred_check_branch
        %216 = sbr.rel (%p214) target = $region24
      $region23: #{graphsage_forward.7} parent=11 // pred_region
        _
      $region24: #{graphsage_forward.7} parent=11 // pred_fallthru
        _
    $region12: #{graphsage_forward.7} parent=5 // pred_fallthru
      _
    %p217 = scmp.lt.s32.totalorder %s12, 2
    // Predicated region
    $region25: #{graphsage_forward.7} parent=5 // pred_check
      %p218 = pneg %p217
    $region26: #{graphsage_forward.7} parent=5 // pred_check_branch
      %220 = sbr.rel (%p218) target = $region28
    $region27: #{graphsage_forward.7} parent=5 // pred_region
      // Predicated region
      $region29: #{graphsage_forward.7} parent=27 // pred_check
        %p221 = pneg %p46
      $region30: #{graphsage_forward.7} parent=27 // pred_check_branch
        %223 = sbr.rel (%p221) target = $region32
      $region31: #{graphsage_forward.7} parent=27 // pred_region
        %s224 = smul.u32 32, %s19
        %s225 = smul.u32 4, %s20
        %p226 = scmp.lt.s32.totalorder %s224, 63
        %s227 = scalar_select %p226, %s224, 63
        %p228 = scmp.lt.s32.totalorder %s225, 3
        %s229 = scalar_select %p228, %s225, 3
        %s230 = smul.addr %s227, 4
        %s231 = sadd.s32 %s229, %s230
        %s232 = smul.addr %s231, 4
        %s233 = scalar_lea.vmem %s0, %s232
        %s234 = smul.u32 32, %s19
        %s235 = smul.u32 4, %s20
      $region32: #{graphsage_forward.7} parent=27 // pred_fallthru
        _
      // Predicated region
      $region33: #{graphsage_forward.7} parent=27 // pred_check
        %p236 = pneg %p93
      $region34: #{graphsage_forward.7} parent=27 // pred_check_branch
        %238 = sbr.rel (%p236) target = $region36
      $region35: #{graphsage_forward.7} parent=27 // pred_region
        %s239 = smul.u32 32, %s19
        %p240 = scmp.lt.s32.totalorder %s239, 63
        %s241 = scalar_select %p240, %s239, 63
        %s242 = smul.addr %s241, 4
        %s243 = scalar_lea.vmem %s2, %s242
        %s244 = smul.u32 32, %s19
      $region36: #{graphsage_forward.7} parent=27 // pred_fallthru
        _
      // Predicated region
      $region37: #{graphsage_forward.7} parent=27 // pred_check
        %p245 = pneg %p161
      $region38: #{graphsage_forward.7} parent=27 // pred_check_branch
        %247 = sbr.rel (%p245) target = $region40
      $region39: #{graphsage_forward.7} parent=27 // pred_region
        %s248 = smul.u32 32, %s19
        %p249 = scmp.lt.s32.totalorder %s248, 63
        %s250 = scalar_select %p249, %s248, 63
        %s251 = smul.addr %s250, 8
        %s252 = scalar_lea.vmem %s5, %s251
        %s253 = smul.u32 32, %s19
      $region40: #{graphsage_forward.7} parent=27 // pred_fallthru
        _
    $region28: #{graphsage_forward.7} parent=5 // pred_fallthru
      _
    %p254 = scmp.le.s32.totalorder 1, %s12
    %p255 = scmp.lt.s32.totalorder %s12, 3
    %p256 = pnand %p254, %p255
    %p257 = pneg %p256
    // Predicated region
    $region41: #{graphsage_forward.7} parent=5 // pred_check
      _
    $region42: #{graphsage_forward.7} parent=5 // pred_check_branch
      %259 = sbr.rel (%p256) target = $region44
    $region43: #{graphsage_forward.7} parent=5 // pred_region
      %s260 = ssub.s32 %s12, 1
      %s261 = smul.u32 32, %s21
      %s262 = smul.u32 4, %s22
      %p263 = scmp.lt.s32.totalorder %s261, 63
      %s264 = scalar_select %p263, %s261, 63
      %p265 = scmp.lt.s32.totalorder %s262, 3
      %s266 = scalar_select %p265, %s262, 3
      %s267 = smul.addr %s264, 4
      %s268 = sadd.s32 %s266, %s267
      %s269 = smul.addr %s268, 4
      %s270 = scalar_lea.vmem %s0, %s269
      %p271 = pneg %p52
      %p272 = pneg %p49
      %p273 = pneg %p73
      %p274 = pneg %p70
      %s275 = smul.u32 32, %s21
      %p276 = scmp.lt.s32.totalorder %s275, 63
      %s277 = scalar_select %p276, %s275, 63
      %s278 = smul.addr %s277, 4
      %s279 = scalar_lea.vmem %s2, %s278
      %p280 = pneg %p99
      %p281 = pneg %p96
      %p282 = pneg %p120
      %p283 = pneg %p117
      %p284 = pneg %p141
      %p285 = pneg %p138
      %s286 = smul.u32 32, %s21
      %p287 = scmp.lt.s32.totalorder %s286, 63
      %s288 = scalar_select %p287, %s286, 63
      %s289 = smul.addr %s288, 8
      %s290 = scalar_lea.vmem %s5, %s289
      %p291 = pneg %p167
      %p292 = pneg %p164
      %p293 = pneg %p193
      %p294 = pneg %p190
      %s295 = smul.u32 32, %s21
      %p296 = scmp.lt.s32.totalorder %s295, 63
      %s297 = scalar_select %p296, %s295, 63
      %s298 = smul.addr %s297, 8
      %s299 = scalar_lea.vmem %s6, %s298
      %s300 = smul.u32 32, %s21
      %s301 = smul.u32 4, %s22
      %p302 = scmp.lt.s32.totalorder %s300, 63
      %s303 = scalar_select %p302, %s300, 63
      %p304 = scmp.lt.s32.totalorder %s301, 3
      %s305 = scalar_select %p304, %s301, 3
      %s306 = smul.addr %s303, 4
      %s307 = sadd.s32 %s305, %s306
      %s308 = smul.addr %s307, 4
      %s309 = scalar_lea.vmem %s0, %s308
      %s310 = smul.u32 32, %s21
      %s311 = smul.u32 4, %s22
      %s312 = smul.u32 32, %s21
      %p313 = scmp.lt.s32.totalorder %s312, 63
      %s314 = scalar_select %p313, %s312, 63
      %s315 = smul.addr %s314, 4
      %s316 = scalar_lea.vmem %s2, %s315
      %s317 = smul.u32 32, %s21
      %s318 = smul.u32 32, %s21
      %p319 = scmp.lt.s32.totalorder %s318, 63
      %s320 = scalar_select %p319, %s318, 63
      %s321 = smul.addr %s320, 8
      %s322 = scalar_lea.vmem %s5, %s321
      %s323 = smul.u32 32, %s21
      %s324 = smul.u32 32, %s21
      %p325 = scmp.lt.s32.totalorder %s324, 63
      %s326 = scalar_select %p325, %s324, 63
      %s327 = smul.addr %s326, 8
      %s328 = scalar_lea.vmem %s6, %s327
      %s329 = smul.u32 32, %s21
      %p331 = scmp.eq.s32.totalorder %s22, 0
      // Predicated region
      $region45: #{graphsage_forward.7} parent=43 // pred_check
        %p332 = pneg %p331
      $region46: #{graphsage_forward.7} parent=43 // pred_check_branch
        %334 = sbr.rel (%p332) target = $region48
      $region47: #{graphsage_forward.7} parent=43 // pred_region
        %335 = vst [vmem:[#allocation2] sm:$0xff] 0.0
        %336 = vst [vmem:[#allocation2 + $0x8] sm:$0xff] 0.0
        %337 = vst [vmem:[#allocation2 + $0x10] sm:$0xff] 0.0
        %338 = vst [vmem:[#allocation2 + $0x18] sm:$0xff] 0.0
        %339 = vst [vmem:[#allocation2 + $0x20] sm:$0xff] 0.0
        %340 = vst [vmem:[#allocation2 + $0x28] sm:$0xff] 0.0
        %341 = vst [vmem:[#allocation2 + $0x30] sm:$0xff] 0.0
        %342 = vst [vmem:[#allocation2 + $0x38] sm:$0xff] 0.0
        %343 = vst [vmem:[#allocation2 + $0x40] sm:$0xff] 0.0
        %344 = vst [vmem:[#allocation2 + $0x48] sm:$0xff] 0.0
        %345 = vst [vmem:[#allocation2 + $0x50] sm:$0xff] 0.0
        %346 = vst [vmem:[#allocation2 + $0x58] sm:$0xff] 0.0
        %347 = vst [vmem:[#allocation2 + $0x60] sm:$0xff] 0.0
        %348 = vst [vmem:[#allocation2 + $0x68] sm:$0xff] 0.0
        %349 = vst [vmem:[#allocation2 + $0x70] sm:$0xff] 0.0
        %350 = vst [vmem:[#allocation2 + $0x78] sm:$0xff] 0.0
        %351 = vst [vmem:[#allocation2 + $0x80] sm:$0xff] 0.0
        %352 = vst [vmem:[#allocation2 + $0x88] sm:$0xff] 0.0
        %353 = vst [vmem:[#allocation2 + $0x90] sm:$0xff] 0.0
        %354 = vst [vmem:[#allocation2 + $0x98] sm:$0xff] 0.0
        %355 = vst [vmem:[#allocation2 + $0xa0] sm:$0xff] 0.0
        %356 = vst [vmem:[#allocation2 + $0xa8] sm:$0xff] 0.0
        %357 = vst [vmem:[#allocation2 + $0xb0] sm:$0xff] 0.0
        %358 = vst [vmem:[#allocation2 + $0xb8] sm:$0xff] 0.0
        %359 = vst [vmem:[#allocation2 + $0xc0] sm:$0xff] 0.0
        %360 = vst [vmem:[#allocation2 + $0xc8] sm:$0xff] 0.0
        %361 = vst [vmem:[#allocation2 + $0xd0] sm:$0xff] 0.0
        %362 = vst [vmem:[#allocation2 + $0xd8] sm:$0xff] 0.0
        %363 = vst [vmem:[#allocation2 + $0xe0] sm:$0xff] 0.0
        %364 = vst [vmem:[#allocation2 + $0xe8] sm:$0xff] 0.0
        %365 = vst [vmem:[#allocation2 + $0xf0] sm:$0xff] 0.0
        %366 = vst [vmem:[#allocation2 + $0xf8] sm:$0xff] 0.0
      $region48: #{graphsage_forward.7} parent=43 // pred_fallthru
        _
      %s367 = smul.u32 %s22, 512
      %s368 = sshra.s32 %s367, 3
      %s369 = sand.u32 %s367, 7
      %s370 = smul.addr %s368, 4
      %s371 = scalar_lea.vmem %s1, %s370
      %v372 = vld [vmem:[%s371] sm:$0xf]
      %v373 = vld [vmem:[%s371 + $0x4] sm:$0xf]
      %v374 = vld [vmem:[%s371 + $0x8] sm:$0xf]
      %v375 = vld [vmem:[%s371 + $0xc] sm:$0xf]
      %v376 = vld [vmem:[%s371 + $0x10] sm:$0xf]
      %v377 = vld [vmem:[%s371 + $0x14] sm:$0xf]
      %v378 = vld [vmem:[%s371 + $0x18] sm:$0xf]
      %v379 = vld [vmem:[%s371 + $0x1c] sm:$0xf]
      %v380 = vld [vmem:[%s371 + $0x20] sm:$0xf]
      %v381 = vld [vmem:[%s371 + $0x24] sm:$0xf]
      %v382 = vld [vmem:[%s371 + $0x28] sm:$0xf]
      %v383 = vld [vmem:[%s371 + $0x2c] sm:$0xf]
      %v384 = vld [vmem:[%s371 + $0x30] sm:$0xf]
      %v385 = vld [vmem:[%s371 + $0x34] sm:$0xf]
      %v386 = vld [vmem:[%s371 + $0x38] sm:$0xf]
      %v387 = vld [vmem:[%s371 + $0x3c] sm:$0xf]
      %v388 = vld [vmem:[%s371 + $0x40] sm:$0xf]
      %v389 = vld [vmem:[%s371 + $0x44] sm:$0xf]
      %v390 = vld [vmem:[%s371 + $0x48] sm:$0xf]
      %v391 = vld [vmem:[%s371 + $0x4c] sm:$0xf]
      %v392 = vld [vmem:[%s371 + $0x50] sm:$0xf]
      %v393 = vld [vmem:[%s371 + $0x54] sm:$0xf]
      %v394 = vld [vmem:[%s371 + $0x58] sm:$0xf]
      %v395 = vld [vmem:[%s371 + $0x5c] sm:$0xf]
      %v396 = vld [vmem:[%s371 + $0x60] sm:$0xf]
      %v397 = vld [vmem:[%s371 + $0x64] sm:$0xf]
      %v398 = vld [vmem:[%s371 + $0x68] sm:$0xf]
      %v399 = vld [vmem:[%s371 + $0x6c] sm:$0xf]
      %v400 = vld [vmem:[%s371 + $0x70] sm:$0xf]
      %v401 = vld [vmem:[%s371 + $0x74] sm:$0xf]
      %v402 = vld [vmem:[%s371 + $0x78] sm:$0xf]
      %v403 = vld [vmem:[%s371 + $0x7c] sm:$0xf]
      %v404 = vld [vmem:[%s371 + $0x80] sm:$0xf]
      %v405 = vld [vmem:[%s371 + $0x84] sm:$0xf]
      %v406 = vld [vmem:[%s371 + $0x88] sm:$0xf]
      %v407 = vld [vmem:[%s371 + $0x8c] sm:$0xf]
      %v408 = vld [vmem:[%s371 + $0x90] sm:$0xf]
      %v409 = vld [vmem:[%s371 + $0x94] sm:$0xf]
      %v410 = vld [vmem:[%s371 + $0x98] sm:$0xf]
      %v411 = vld [vmem:[%s371 + $0x9c] sm:$0xf]
      %v412 = vld [vmem:[%s371 + $0xa0] sm:$0xf]
      %v413 = vld [vmem:[%s371 + $0xa4] sm:$0xf]
      %v414 = vld [vmem:[%s371 + $0xa8] sm:$0xf]
      %v415 = vld [vmem:[%s371 + $0xac] sm:$0xf]
      %v416 = vld [vmem:[%s371 + $0xb0] sm:$0xf]
      %v417 = vld [vmem:[%s371 + $0xb4] sm:$0xf]
      %v418 = vld [vmem:[%s371 + $0xb8] sm:$0xf]
      %v419 = vld [vmem:[%s371 + $0xbc] sm:$0xf]
      %v420 = vld [vmem:[%s371 + $0xc0] sm:$0xf]
      %v421 = vld [vmem:[%s371 + $0xc4] sm:$0xf]
      %v422 = vld [vmem:[%s371 + $0xc8] sm:$0xf]
      %v423 = vld [vmem:[%s371 + $0xcc] sm:$0xf]
      %v424 = vld [vmem:[%s371 + $0xd0] sm:$0xf]
      %v425 = vld [vmem:[%s371 + $0xd4] sm:$0xf]
      %v426 = vld [vmem:[%s371 + $0xd8] sm:$0xf]
      %v427 = vld [vmem:[%s371 + $0xdc] sm:$0xf]
      %v428 = vld [vmem:[%s371 + $0xe0] sm:$0xf]
      %v429 = vld [vmem:[%s371 + $0xe4] sm:$0xf]
      %v430 = vld [vmem:[%s371 + $0xe8] sm:$0xf]
      %v431 = vld [vmem:[%s371 + $0xec] sm:$0xf]
      %v432 = vld [vmem:[%s371 + $0xf0] sm:$0xf]
      %v433 = vld [vmem:[%s371 + $0xf4] sm:$0xf]
      %v434 = vld [vmem:[%s371 + $0xf8] sm:$0xf]
      %v435 = vld [vmem:[%s371 + $0xfc] sm:$0xf]
      %v436 = vld [vmem:[#allocation2] sm:$0xff]
      %v437 = vld [vmem:[#allocation2 + $0x8] sm:$0xff]
      %v438 = vld [vmem:[#allocation2 + $0x10] sm:$0xff]
      %v439 = vld [vmem:[#allocation2 + $0x18] sm:$0xff]
      %v440 = vld [vmem:[#allocation2 + $0x20] sm:$0xff]
      %v441 = vld [vmem:[#allocation2 + $0x28] sm:$0xff]
      %v442 = vld [vmem:[#allocation2 + $0x30] sm:$0xff]
      %v443 = vld [vmem:[#allocation2 + $0x38] sm:$0xff]
      %v444 = vld [vmem:[#allocation2 + $0x40] sm:$0xff]
      %v445 = vld [vmem:[#allocation2 + $0x48] sm:$0xff]
      %v446 = vld [vmem:[#allocation2 + $0x50] sm:$0xff]
      %v447 = vld [vmem:[#allocation2 + $0x58] sm:$0xff]
      %v448 = vld [vmem:[#allocation2 + $0x60] sm:$0xff]
      %v449 = vld [vmem:[#allocation2 + $0x68] sm:$0xff]
      %v450 = vld [vmem:[#allocation2 + $0x70] sm:$0xff]
      %v451 = vld [vmem:[#allocation2 + $0x78] sm:$0xff]
      %v452 = vld [vmem:[#allocation2 + $0x80] sm:$0xff]
      %v453 = vld [vmem:[#allocation2 + $0x88] sm:$0xff]
      %v454 = vld [vmem:[#allocation2 + $0x90] sm:$0xff]
      %v455 = vld [vmem:[#allocation2 + $0x98] sm:$0xff]
      %v456 = vld [vmem:[#allocation2 + $0xa0] sm:$0xff]
      %v457 = vld [vmem:[#allocation2 + $0xa8] sm:$0xff]
      %v458 = vld [vmem:[#allocation2 + $0xb0] sm:$0xff]
      %v459 = vld [vmem:[#allocation2 + $0xb8] sm:$0xff]
      %v460 = vld [vmem:[#allocation2 + $0xc0] sm:$0xff]
      %v461 = vld [vmem:[#allocation2 + $0xc8] sm:$0xff]
      %v462 = vld [vmem:[#allocation2 + $0xd0] sm:$0xff]
      %v463 = vld [vmem:[#allocation2 + $0xd8] sm:$0xff]
      %v464 = vld [vmem:[#allocation2 + $0xe0] sm:$0xff]
      %v465 = vld [vmem:[#allocation2 + $0xe8] sm:$0xff]
      %v466 = vld [vmem:[#allocation2 + $0xf0] sm:$0xff]
      %v467 = vld [vmem:[#allocation2 + $0xf8] sm:$0xff]
      %v468 = vld [vmem:[%s309] sm:$0xff]
      %v469 = vld [vmem:[%s309 + $0x8] sm:$0xff]
      %v470 = vld [vmem:[%s309 + $0x10] sm:$0xff]
      %v471 = vld [vmem:[%s309 + $0x18] sm:$0xff]
      %v472 = vld [vmem:[%s309 + $0x20] sm:$0xff]
      %v473 = vld [vmem:[%s309 + $0x28] sm:$0xff]
      %v474 = vld [vmem:[%s309 + $0x30] sm:$0xff]
      %v475 = vld [vmem:[%s309 + $0x38] sm:$0xff]
      %v476 = vld [vmem:[%s309 + $0x40] sm:$0xff]
      %v477 = vld [vmem:[%s309 + $0x48] sm:$0xff]
      %v478 = vld [vmem:[%s309 + $0x50] sm:$0xff]
      %v479 = vld [vmem:[%s309 + $0x58] sm:$0xff]
      %v480 = vld [vmem:[%s309 + $0x60] sm:$0xff]
      %v481 = vld [vmem:[%s309 + $0x68] sm:$0xff]
      %v482 = vld [vmem:[%s309 + $0x70] sm:$0xff]
      %v483 = vld [vmem:[%s309 + $0x78] sm:$0xff]
      %v484 = vld [vmem:[%s309 + $0x80] sm:$0xff]
      %v485 = vld [vmem:[%s309 + $0x88] sm:$0xff]
      %v486 = vld [vmem:[%s309 + $0x90] sm:$0xff]
      %v487 = vld [vmem:[%s309 + $0x98] sm:$0xff]
      %v488 = vld [vmem:[%s309 + $0xa0] sm:$0xff]
      %v489 = vld [vmem:[%s309 + $0xa8] sm:$0xff]
      %v490 = vld [vmem:[%s309 + $0xb0] sm:$0xff]
      %v491 = vld [vmem:[%s309 + $0xb8] sm:$0xff]
      %v492 = vld [vmem:[%s309 + $0xc0] sm:$0xff]
      %v493 = vld [vmem:[%s309 + $0xc8] sm:$0xff]
      %v494 = vld [vmem:[%s309 + $0xd0] sm:$0xff]
      %v495 = vld [vmem:[%s309 + $0xd8] sm:$0xff]
      %v496 = vld [vmem:[%s309 + $0xe0] sm:$0xff]
      %v497 = vld [vmem:[%s309 + $0xe8] sm:$0xff]
      %v498 = vld [vmem:[%s309 + $0xf0] sm:$0xff]
      %v499 = vld [vmem:[%s309 + $0xf8] sm:$0xff]
      %v500 = vld [vmem:[%s309 + $0x100] sm:$0xff]
      %v501 = vld [vmem:[%s309 + $0x108] sm:$0xff]
      %v502 = vld [vmem:[%s309 + $0x110] sm:$0xff]
      %v503 = vld [vmem:[%s309 + $0x118] sm:$0xff]
      %v504 = vld [vmem:[%s309 + $0x120] sm:$0xff]
      %v505 = vld [vmem:[%s309 + $0x128] sm:$0xff]
      %v506 = vld [vmem:[%s309 + $0x130] sm:$0xff]
      %v507 = vld [vmem:[%s309 + $0x138] sm:$0xff]
      %v508 = vld [vmem:[%s309 + $0x140] sm:$0xff]
      %v509 = vld [vmem:[%s309 + $0x148] sm:$0xff]
      %v510 = vld [vmem:[%s309 + $0x150] sm:$0xff]
      %v511 = vld [vmem:[%s309 + $0x158] sm:$0xff]
      %v512 = vld [vmem:[%s309 + $0x160] sm:$0xff]
      %v513 = vld [vmem:[%s309 + $0x168] sm:$0xff]
      %v514 = vld [vmem:[%s309 + $0x170] sm:$0xff]
      %v515 = vld [vmem:[%s309 + $0x178] sm:$0xff]
      %v516 = vld [vmem:[%s309 + $0x180] sm:$0xff]
      %v517 = vld [vmem:[%s309 + $0x188] sm:$0xff]
      %v518 = vld [vmem:[%s309 + $0x190] sm:$0xff]
      %v519 = vld [vmem:[%s309 + $0x198] sm:$0xff]
      %v520 = vld [vmem:[%s309 + $0x1a0] sm:$0xff]
      %v521 = vld [vmem:[%s309 + $0x1a8] sm:$0xff]
      %v522 = vld [vmem:[%s309 + $0x1b0] sm:$0xff]
      %v523 = vld [vmem:[%s309 + $0x1b8] sm:$0xff]
      %v524 = vld [vmem:[%s309 + $0x1c0] sm:$0xff]
      %v525 = vld [vmem:[%s309 + $0x1c8] sm:$0xff]
      %v526 = vld [vmem:[%s309 + $0x1d0] sm:$0xff]
      %v527 = vld [vmem:[%s309 + $0x1d8] sm:$0xff]
      %v528 = vld [vmem:[%s309 + $0x1e0] sm:$0xff]
      %v529 = vld [vmem:[%s309 + $0x1e8] sm:$0xff]
      %v530 = vld [vmem:[%s309 + $0x1f0] sm:$0xff]
      %v531 = vld [vmem:[%s309 + $0x1f8] sm:$0xff]
      %v596 = vunpack.c.l.b16 %v468
      %v597 = vunpack.c.h.b16 %v468
      %v598 = vunpack.c.l.b16 %v469
      %v599 = vunpack.c.h.b16 %v469
      %v600 = vunpack.c.l.b16 %v470
      %v601 = vunpack.c.h.b16 %v470
      %v602 = vunpack.c.l.b16 %v471
      %v603 = vunpack.c.h.b16 %v471
      %v604 = vunpack.c.l.b16 %v472
      %v605 = vunpack.c.h.b16 %v472
      %v606 = vunpack.c.l.b16 %v473
      %v607 = vunpack.c.h.b16 %v473
      %v608 = vunpack.c.l.b16 %v474
      %v609 = vunpack.c.h.b16 %v474
      %v610 = vunpack.c.l.b16 %v475
      %v611 = vunpack.c.h.b16 %v475
      %v612 = vunpack.c.l.b16 %v476
      %v613 = vunpack.c.h.b16 %v476
      %v614 = vunpack.c.l.b16 %v477
      %v615 = vunpack.c.h.b16 %v477
      %v616 = vunpack.c.l.b16 %v478
      %v617 = vunpack.c.h.b16 %v478
      %v618 = vunpack.c.l.b16 %v479
      %v619 = vunpack.c.h.b16 %v479
      %v620 = vunpack.c.l.b16 %v480
      %v621 = vunpack.c.h.b16 %v480
      %v622 = vunpack.c.l.b16 %v481
      %v623 = vunpack.c.h.b16 %v481
      %v624 = vunpack.c.l.b16 %v482
      %v625 = vunpack.c.h.b16 %v482
      %v626 = vunpack.c.l.b16 %v483
      %v627 = vunpack.c.h.b16 %v483
      %v628 = vunpack.c.l.b16 %v484
      %v629 = vunpack.c.h.b16 %v484
      %v630 = vunpack.c.l.b16 %v485
      %v631 = vunpack.c.h.b16 %v485
      %v632 = vunpack.c.l.b16 %v486
      %v633 = vunpack.c.h.b16 %v486
      %v634 = vunpack.c.l.b16 %v487
      %v635 = vunpack.c.h.b16 %v487
      %v636 = vunpack.c.l.b16 %v488
      %v637 = vunpack.c.h.b16 %v488
      %v638 = vunpack.c.l.b16 %v489
      %v639 = vunpack.c.h.b16 %v489
      %v640 = vunpack.c.l.b16 %v490
      %v641 = vunpack.c.h.b16 %v490
      %v642 = vunpack.c.l.b16 %v491
      %v643 = vunpack.c.h.b16 %v491
      %v644 = vunpack.c.l.b16 %v492
      %v645 = vunpack.c.h.b16 %v492
      %v646 = vunpack.c.l.b16 %v493
      %v647 = vunpack.c.h.b16 %v493
      %v648 = vunpack.c.l.b16 %v494
      %v649 = vunpack.c.h.b16 %v494
      %v650 = vunpack.c.l.b16 %v495
      %v651 = vunpack.c.h.b16 %v495
      %v652 = vunpack.c.l.b16 %v496
      %v653 = vunpack.c.h.b16 %v496
      %v654 = vunpack.c.l.b16 %v497
      %v655 = vunpack.c.h.b16 %v497
      %v656 = vunpack.c.l.b16 %v498
      %v657 = vunpack.c.h.b16 %v498
      %v658 = vunpack.c.l.b16 %v499
      %v659 = vunpack.c.h.b16 %v499
      %v660 = vunpack.c.l.b16 %v500
      %v661 = vunpack.c.h.b16 %v500
      %v662 = vunpack.c.l.b16 %v501
      %v663 = vunpack.c.h.b16 %v501
      %v664 = vunpack.c.l.b16 %v502
      %v665 = vunpack.c.h.b16 %v502
      %v666 = vunpack.c.l.b16 %v503
      %v667 = vunpack.c.h.b16 %v503
      %v668 = vunpack.c.l.b16 %v504
      %v669 = vunpack.c.h.b16 %v504
      %v670 = vunpack.c.l.b16 %v505
      %v671 = vunpack.c.h.b16 %v505
      %v672 = vunpack.c.l.b16 %v506
      %v673 = vunpack.c.h.b16 %v506
      %v674 = vunpack.c.l.b16 %v507
      %v675 = vunpack.c.h.b16 %v507
      %v676 = vunpack.c.l.b16 %v508
      %v677 = vunpack.c.h.b16 %v508
      %v678 = vunpack.c.l.b16 %v509
      %v679 = vunpack.c.h.b16 %v509
      %v680 = vunpack.c.l.b16 %v510
      %v681 = vunpack.c.h.b16 %v510
      %v682 = vunpack.c.l.b16 %v511
      %v683 = vunpack.c.h.b16 %v511
      %v684 = vunpack.c.l.b16 %v512
      %v685 = vunpack.c.h.b16 %v512
      %v686 = vunpack.c.l.b16 %v513
      %v687 = vunpack.c.h.b16 %v513
      %v688 = vunpack.c.l.b16 %v514
      %v689 = vunpack.c.h.b16 %v514
      %v690 = vunpack.c.l.b16 %v515
      %v691 = vunpack.c.h.b16 %v515
      %v692 = vunpack.c.l.b16 %v516
      %v693 = vunpack.c.h.b16 %v516
      %v694 = vunpack.c.l.b16 %v517
      %v695 = vunpack.c.h.b16 %v517
      %v696 = vunpack.c.l.b16 %v518
      %v697 = vunpack.c.h.b16 %v518
      %v698 = vunpack.c.l.b16 %v519
      %v699 = vunpack.c.h.b16 %v519
      %v700 = vunpack.c.l.b16 %v520
      %v701 = vunpack.c.h.b16 %v520
      %v702 = vunpack.c.l.b16 %v521
      %v703 = vunpack.c.h.b16 %v521
      %v704 = vunpack.c.l.b16 %v522
      %v705 = vunpack.c.h.b16 %v522
      %v706 = vunpack.c.l.b16 %v523
      %v707 = vunpack.c.h.b16 %v523
      %v708 = vunpack.c.l.b16 %v524
      %v709 = vunpack.c.h.b16 %v524
      %v710 = vunpack.c.l.b16 %v525
      %v711 = vunpack.c.h.b16 %v525
      %v712 = vunpack.c.l.b16 %v526
      %v713 = vunpack.c.h.b16 %v526
      %v714 = vunpack.c.l.b16 %v527
      %v715 = vunpack.c.h.b16 %v527
      %v716 = vunpack.c.l.b16 %v528
      %v717 = vunpack.c.h.b16 %v528
      %v718 = vunpack.c.l.b16 %v529
      %v719 = vunpack.c.h.b16 %v529
      %v720 = vunpack.c.l.b16 %v530
      %v721 = vunpack.c.h.b16 %v530
      %v722 = vunpack.c.l.b16 %v531
      %v723 = vunpack.c.h.b16 %v531
      %v724 = vpack.c.b16 %v600, %v596
      %v725 = vpack.c.b16 %v601, %v597
      %v726 = vpack.c.b16 %v602, %v598
      %v727 = vpack.c.b16 %v603, %v599
      %v728 = vpack.c.b16 %v608, %v604
      %v729 = vpack.c.b16 %v609, %v605
      %v730 = vpack.c.b16 %v610, %v606
      %v731 = vpack.c.b16 %v611, %v607
      %v732 = vpack.c.b16 %v616, %v612
      %v733 = vpack.c.b16 %v617, %v613
      %v734 = vpack.c.b16 %v618, %v614
      %v735 = vpack.c.b16 %v619, %v615
      %v736 = vpack.c.b16 %v624, %v620
      %v737 = vpack.c.b16 %v625, %v621
      %v738 = vpack.c.b16 %v626, %v622
      %v739 = vpack.c.b16 %v627, %v623
      %v740 = vpack.c.b16 %v632, %v628
      %v741 = vpack.c.b16 %v633, %v629
      %v742 = vpack.c.b16 %v634, %v630
      %v743 = vpack.c.b16 %v635, %v631
      %v744 = vpack.c.b16 %v640, %v636
      %v745 = vpack.c.b16 %v641, %v637
      %v746 = vpack.c.b16 %v642, %v638
      %v747 = vpack.c.b16 %v643, %v639
      %v748 = vpack.c.b16 %v648, %v644
      %v749 = vpack.c.b16 %v649, %v645
      %v750 = vpack.c.b16 %v650, %v646
      %v751 = vpack.c.b16 %v651, %v647
      %v752 = vpack.c.b16 %v656, %v652
      %v753 = vpack.c.b16 %v657, %v653
      %v754 = vpack.c.b16 %v658, %v654
      %v755 = vpack.c.b16 %v659, %v655
      %v756 = vpack.c.b16 %v664, %v660
      %v757 = vpack.c.b16 %v665, %v661
      %v758 = vpack.c.b16 %v666, %v662
      %v759 = vpack.c.b16 %v667, %v663
      %v760 = vpack.c.b16 %v672, %v668
      %v761 = vpack.c.b16 %v673, %v669
      %v762 = vpack.c.b16 %v674, %v670
      %v763 = vpack.c.b16 %v675, %v671
      %v764 = vpack.c.b16 %v680, %v676
      %v765 = vpack.c.b16 %v681, %v677
      %v766 = vpack.c.b16 %v682, %v678
      %v767 = vpack.c.b16 %v683, %v679
      %v768 = vpack.c.b16 %v688, %v684
      %v769 = vpack.c.b16 %v689, %v685
      %v770 = vpack.c.b16 %v690, %v686
      %v771 = vpack.c.b16 %v691, %v687
      %v772 = vpack.c.b16 %v696, %v692
      %v773 = vpack.c.b16 %v697, %v693
      %v774 = vpack.c.b16 %v698, %v694
      %v775 = vpack.c.b16 %v699, %v695
      %v776 = vpack.c.b16 %v704, %v700
      %v777 = vpack.c.b16 %v705, %v701
      %v778 = vpack.c.b16 %v706, %v702
      %v779 = vpack.c.b16 %v707, %v703
      %v780 = vpack.c.b16 %v712, %v708
      %v781 = vpack.c.b16 %v713, %v709
      %v782 = vpack.c.b16 %v714, %v710
      %v783 = vpack.c.b16 %v715, %v711
      %v784 = vpack.c.b16 %v720, %v716
      %v785 = vpack.c.b16 %v721, %v717
      %v786 = vpack.c.b16 %v722, %v718
      %v787 = vpack.c.b16 %v723, %v719
      %v916 = vunpack.c.l.b16 %v372
      %v917 = vunpack.c.l.b16 %v373
      %v918 = vunpack.c.l.b16 %v374
      %v919 = vunpack.c.l.b16 %v375
      %v920 = vunpack.c.l.b16 %v376
      %v921 = vunpack.c.l.b16 %v377
      %v922 = vunpack.c.l.b16 %v378
      %v923 = vunpack.c.l.b16 %v379
      %v924 = vunpack.c.l.b16 %v380
      %v925 = vunpack.c.l.b16 %v381
      %v926 = vunpack.c.l.b16 %v382
      %v927 = vunpack.c.l.b16 %v383
      %v928 = vunpack.c.l.b16 %v384
      %v929 = vunpack.c.l.b16 %v385
      %v930 = vunpack.c.l.b16 %v386
      %v931 = vunpack.c.l.b16 %v387
      %v932 = vunpack.c.l.b16 %v388
      %v933 = vunpack.c.l.b16 %v389
      %v934 = vunpack.c.l.b16 %v390
      %v935 = vunpack.c.l.b16 %v391
      %v936 = vunpack.c.l.b16 %v392
      %v937 = vunpack.c.l.b16 %v393
      %v938 = vunpack.c.l.b16 %v394
      %v939 = vunpack.c.l.b16 %v395
      %v940 = vunpack.c.l.b16 %v396
      %v941 = vunpack.c.l.b16 %v397
      %v942 = vunpack.c.l.b16 %v398
      %v943 = vunpack.c.l.b16 %v399
      %v944 = vunpack.c.l.b16 %v400
      %v945 = vunpack.c.l.b16 %v401
      %v946 = vunpack.c.l.b16 %v402
      %v947 = vunpack.c.l.b16 %v403
      %v948 = vunpack.c.l.b16 %v404
      %v949 = vunpack.c.l.b16 %v405
      %v950 = vunpack.c.l.b16 %v406
      %v951 = vunpack.c.l.b16 %v407
      %v952 = vunpack.c.l.b16 %v408
      %v953 = vunpack.c.l.b16 %v409
      %v954 = vunpack.c.l.b16 %v410
      %v955 = vunpack.c.l.b16 %v411
      %v956 = vunpack.c.l.b16 %v412
      %v957 = vunpack.c.l.b16 %v413
      %v958 = vunpack.c.l.b16 %v414
      %v959 = vunpack.c.l.b16 %v415
      %v960 = vunpack.c.l.b16 %v416
      %v961 = vunpack.c.l.b16 %v417
      %v962 = vunpack.c.l.b16 %v418
      %v963 = vunpack.c.l.b16 %v419
      %v964 = vunpack.c.l.b16 %v420
      %v965 = vunpack.c.l.b16 %v421
      %v966 = vunpack.c.l.b16 %v422
      %v967 = vunpack.c.l.b16 %v423
      %v968 = vunpack.c.l.b16 %v424
      %v969 = vunpack.c.l.b16 %v425
      %v970 = vunpack.c.l.b16 %v426
      %v971 = vunpack.c.l.b16 %v427
      %v972 = vunpack.c.l.b16 %v428
      %v973 = vunpack.c.l.b16 %v429
      %v974 = vunpack.c.l.b16 %v430
      %v975 = vunpack.c.l.b16 %v431
      %v976 = vunpack.c.l.b16 %v432
      %v977 = vunpack.c.l.b16 %v433
      %v978 = vunpack.c.l.b16 %v434
      %v979 = vunpack.c.l.b16 %v435
      %v980 = vpack.c.b16 %v917, %v916
      %v981 = vpack.c.b16 %v919, %v918
      %v982 = vpack.c.b16 %v921, %v920
      %v983 = vpack.c.b16 %v923, %v922
      %v984 = vpack.c.b16 %v925, %v924
      %v985 = vpack.c.b16 %v927, %v926
      %v986 = vpack.c.b16 %v929, %v928
      %v987 = vpack.c.b16 %v931, %v930
      %v988 = vpack.c.b16 %v933, %v932
      %v989 = vpack.c.b16 %v935, %v934
      %v990 = vpack.c.b16 %v937, %v936
      %v991 = vpack.c.b16 %v939, %v938
      %v992 = vpack.c.b16 %v941, %v940
      %v993 = vpack.c.b16 %v943, %v942
      %v994 = vpack.c.b16 %v945, %v944
      %v995 = vpack.c.b16 %v947, %v946
      %v996 = vpack.c.b16 %v949, %v948
      %v997 = vpack.c.b16 %v951, %v950
      %v998 = vpack.c.b16 %v953, %v952
      %v999 = vpack.c.b16 %v955, %v954
      %v1000 = vpack.c.b16 %v957, %v956
      %v1001 = vpack.c.b16 %v959, %v958
      %v1002 = vpack.c.b16 %v961, %v960
      %v1003 = vpack.c.b16 %v963, %v962
      %v1004 = vpack.c.b16 %v965, %v964
      %v1005 = vpack.c.b16 %v967, %v966
      %v1006 = vpack.c.b16 %v969, %v968
      %v1007 = vpack.c.b16 %v971, %v970
      %v1008 = vpack.c.b16 %v973, %v972
      %v1009 = vpack.c.b16 %v975, %v974
      %v1010 = vpack.c.b16 %v977, %v976
      %v1011 = vpack.c.b16 %v979, %v978
      %1044 = vmatprep.subr.bf16.mxu0 0
      %1045 = vmatpush1.bf16.msra.mxu0 %v980
      %1046 = vmatprep.subr.bf16.mxu0 0
      %1047 = vmatpush1.bf16.msra.mxu0 %v981
      %1048 = vmatprep.subr.bf16.mxu0 0
      %1049 = vmatpush1.bf16.msra.mxu0 %v982
      %1050 = vmatprep.subr.bf16.mxu0 0
      %1051 = vmatpush1.bf16.msra.mxu0 %v983
      %1052 = vmatprep.subr.bf16.mxu0 0
      %1053 = vmatpush1.bf16.msra.mxu0 %v984
      %1054 = vmatprep.subr.bf16.mxu0 0
      %1055 = vmatpush1.bf16.msra.mxu0 %v985
      %1056 = vmatprep.subr.bf16.mxu0 0
      %1057 = vmatpush1.bf16.msra.mxu0 %v986
      %1058 = vmatprep.subr.bf16.mxu0 0
      %1059 = vmatpush1.bf16.msra.mxu0 %v987
      %1060 = vmatprep.subr.bf16.mxu0 0
      %1061 = vmatpush1.bf16.msra.mxu0 %v988
      %1062 = vmatprep.subr.bf16.mxu0 0
      %1063 = vmatpush1.bf16.msra.mxu0 %v989
      %1064 = vmatprep.subr.bf16.mxu0 0
      %1065 = vmatpush1.bf16.msra.mxu0 %v990
      %1066 = vmatprep.subr.bf16.mxu0 0
      %1067 = vmatpush1.bf16.msra.mxu0 %v991
      %1068 = vmatprep.subr.bf16.mxu0 0
      %1069 = vmatpush1.bf16.msra.mxu0 %v992
      %1070 = vmatprep.subr.bf16.mxu0 0
      %1071 = vmatpush1.bf16.msra.mxu0 %v993
      %1072 = vmatprep.subr.bf16.mxu0 0
      %1073 = vmatpush1.bf16.msra.mxu0 %v994
      %1074 = vmatprep.subr.bf16.mxu0 0
      %1075 = vmatpush1.bf16.msra.mxu0 %v995
      %1076 = vmatprep.mubr.bf16.mxu0 %v725
      %1077 = vmatmul.mubr.bf16.gmra.mrb[0].mxu0 %v724
      %v1078 = vpop.f32.mrb[0].mxu0
      %v1079 = vadd.f32 0.0, %v1078
      %v1080 = vpop.f32.mrb[0].mxu0
      %v1081 = vpop.f32.mrb[0].mxu0
      %v1082 = vadd.f32 0.0, %v1081
      %v1083 = vpop.f32.mrb[0].mxu0
      %1084 = vmatprep.mubr.bf16.mxu0 %v729
      %1085 = vmatmul.mubr.bf16.gmra.mrb[0].mxu0 %v728
      %v1086 = vpop.f32.mrb[0].mxu0
      %v1087 = vadd.f32 0.0, %v1086
      %v1088 = vpop.f32.mrb[0].mxu0
      %v1089 = vpop.f32.mrb[0].mxu0
      %v1090 = vadd.f32 0.0, %v1089
      %v1091 = vpop.f32.mrb[0].mxu0
      %1092 = vmatprep.mubr.bf16.mxu0 %v733
      %1093 = vmatmul.mubr.bf16.gmra.mrb[0].mxu0 %v732
      %v1094 = vpop.f32.mrb[0].mxu0
      %v1095 = vadd.f32 0.0, %v1094
      %v1096 = vpop.f32.mrb[0].mxu0
      %v1097 = vpop.f32.mrb[0].mxu0
      %v1098 = vadd.f32 0.0, %v1097
      %v1099 = vpop.f32.mrb[0].mxu0
      %1100 = vmatprep.mubr.bf16.mxu0 %v737
      %1101 = vmatmul.mubr.bf16.gmra.mrb[0].mxu0 %v736
      %v1102 = vpop.f32.mrb[0].mxu0
      %v1103 = vadd.f32 0.0, %v1102
      %v1104 = vpop.f32.mrb[0].mxu0
      %v1105 = vpop.f32.mrb[0].mxu0
      %v1106 = vadd.f32 0.0, %v1105
      %v1107 = vpop.f32.mrb[0].mxu0
      %1108 = vmatprep.mubr.bf16.mxu0 %v741
      %1109 = vmatmul.mubr.bf16.gmra.mrb[0].mxu0 %v740
      %v1110 = vpop.f32.mrb[0].mxu0
      %v1111 = vadd.f32 0.0, %v1110
      %v1112 = vpop.f32.mrb[0].mxu0
      %v1113 = vpop.f32.mrb[0].mxu0
      %v1114 = vadd.f32 0.0, %v1113
      %v1115 = vpop.f32.mrb[0].mxu0
      %1116 = vmatprep.mubr.bf16.mxu0 %v745
      %1117 = vmatmul.mubr.bf16.gmra.mrb[0].mxu0 %v744
      %v1118 = vpop.f32.mrb[0].mxu0
      %v1119 = vadd.f32 0.0, %v1118
      %v1120 = vpop.f32.mrb[0].mxu0
      %v1121 = vpop.f32.mrb[0].mxu0
      %v1122 = vadd.f32 0.0, %v1121
      %v1123 = vpop.f32.mrb[0].mxu0
      %1124 = vmatprep.mubr.bf16.mxu0 %v749
      %1125 = vmatmul.mubr.bf16.gmra.mrb[0].mxu0 %v748
      %v1126 = vpop.f32.mrb[0].mxu0
      %v1127 = vadd.f32 0.0, %v1126
      %v1128 = vpop.f32.mrb[0].mxu0
      %v1129 = vpop.f32.mrb[0].mxu0
      %v1130 = vadd.f32 0.0, %v1129
      %v1131 = vpop.f32.mrb[0].mxu0
      %1132 = vmatprep.mubr.bf16.mxu0 %v753
      %1133 = vmatmul.mubr.bf16.gmra.mrb[0].mxu0 %v752
      %v1134 = vpop.f32.mrb[0].mxu0
      %v1135 = vadd.f32 0.0, %v1134
      %v1136 = vpop.f32.mrb[0].mxu0
      %v1137 = vpop.f32.mrb[0].mxu0
      %v1138 = vadd.f32 0.0, %v1137
      %v1139 = vpop.f32.mrb[0].mxu0
      %1140 = vmatprep.mubr.bf16.mxu0 %v757
      %1141 = vmatmul.mubr.bf16.gmra.mrb[0].mxu0 %v756
      %v1142 = vpop.f32.mrb[0].mxu0
      %v1143 = vadd.f32 0.0, %v1142
      %v1144 = vpop.f32.mrb[0].mxu0
      %v1145 = vpop.f32.mrb[0].mxu0
      %v1146 = vadd.f32 0.0, %v1145
      %v1147 = vpop.f32.mrb[0].mxu0
      %1148 = vmatprep.mubr.bf16.mxu0 %v761
      %1149 = vmatmul.mubr.bf16.gmra.mrb[0].mxu0 %v760
      %v1150 = vpop.f32.mrb[0].mxu0
      %v1151 = vadd.f32 0.0, %v1150
      %v1152 = vpop.f32.mrb[0].mxu0
      %v1153 = vpop.f32.mrb[0].mxu0
      %v1154 = vadd.f32 0.0, %v1153
      %v1155 = vpop.f32.mrb[0].mxu0
      %1156 = vmatprep.mubr.bf16.mxu0 %v765
      %1157 = vmatmul.mubr.bf16.gmra.mrb[0].mxu0 %v764
      %v1158 = vpop.f32.mrb[0].mxu0
      %v1159 = vadd.f32 0.0, %v1158
      %v1160 = vpop.f32.mrb[0].mxu0
      %v1161 = vpop.f32.mrb[0].mxu0
      %v1162 = vadd.f32 0.0, %v1161
      %v1163 = vpop.f32.mrb[0].mxu0
      %1164 = vmatprep.mubr.bf16.mxu0 %v769
      %1165 = vmatmul.mubr.bf16.gmra.mrb[0].mxu0 %v768
      %v1166 = vpop.f32.mrb[0].mxu0
      %v1167 = vadd.f32 0.0, %v1166
      %v1168 = vpop.f32.mrb[0].mxu0
      %v1169 = vpop.f32.mrb[0].mxu0
      %v1170 = vadd.f32 0.0, %v1169
      %v1171 = vpop.f32.mrb[0].mxu0
      %1172 = vmatprep.mubr.bf16.mxu0 %v773
      %1173 = vmatmul.mubr.bf16.gmra.mrb[0].mxu0 %v772
      %v1174 = vpop.f32.mrb[0].mxu0
      %v1175 = vadd.f32 0.0, %v1174
      %v1176 = vpop.f32.mrb[0].mxu0
      %v1177 = vpop.f32.mrb[0].mxu0
      %v1178 = vadd.f32 0.0, %v1177
      %v1179 = vpop.f32.mrb[0].mxu0
      %1180 = vmatprep.mubr.bf16.mxu0 %v777
      %1181 = vmatmul.mubr.bf16.gmra.mrb[0].mxu0 %v776
      %v1182 = vpop.f32.mrb[0].mxu0
      %v1183 = vadd.f32 0.0, %v1182
      %v1184 = vpop.f32.mrb[0].mxu0
      %v1185 = vpop.f32.mrb[0].mxu0
      %v1186 = vadd.f32 0.0, %v1185
      %v1187 = vpop.f32.mrb[0].mxu0
      %1188 = vmatprep.mubr.bf16.mxu0 %v781
      %1189 = vmatmul.mubr.bf16.gmra.mrb[0].mxu0 %v780
      %v1190 = vpop.f32.mrb[0].mxu0
      %v1191 = vadd.f32 0.0, %v1190
      %v1192 = vpop.f32.mrb[0].mxu0
      %v1193 = vpop.f32.mrb[0].mxu0
      %v1194 = vadd.f32 0.0, %v1193
      %v1195 = vpop.f32.mrb[0].mxu0
      %1196 = vmatprep.mubr.bf16.mxu0 %v785
      %1197 = vmatmul.mubr.bf16.gmra.mrb[0].mxu0 %v784
      %v1198 = vpop.f32.mrb[0].mxu0
      %v1199 = vadd.f32 0.0, %v1198
      %v1200 = vpop.f32.mrb[0].mxu0
      %v1201 = vpop.f32.mrb[0].mxu0
      %v1202 = vadd.f32 0.0, %v1201
      %v1203 = vpop.f32.mrb[0].mxu0
      %1204 = vdwg.mxu0
      %1205 = vmatprep.subr.bf16.mxu0 0
      %1206 = vmatpush1.bf16.msra.mxu0 %v996
      %1207 = vmatprep.subr.bf16.mxu0 0
      %1208 = vmatpush1.bf16.msra.mxu0 %v997
      %1209 = vmatprep.subr.bf16.mxu0 0
      %1210 = vmatpush1.bf16.msra.mxu0 %v998
      %1211 = vmatprep.subr.bf16.mxu0 0
      %1212 = vmatpush1.bf16.msra.mxu0 %v999
      %1213 = vmatprep.subr.bf16.mxu0 0
      %1214 = vmatpush1.bf16.msra.mxu0 %v1000
      %1215 = vmatprep.subr.bf16.mxu0 0
      %1216 = vmatpush1.bf16.msra.mxu0 %v1001
      %1217 = vmatprep.subr.bf16.mxu0 0
      %1218 = vmatpush1.bf16.msra.mxu0 %v1002
      %1219 = vmatprep.subr.bf16.mxu0 0
      %1220 = vmatpush1.bf16.msra.mxu0 %v1003
      %1221 = vmatprep.subr.bf16.mxu0 0
      %1222 = vmatpush1.bf16.msra.mxu0 %v1004
      %1223 = vmatprep.subr.bf16.mxu0 0
      %1224 = vmatpush1.bf16.msra.mxu0 %v1005
      %1225 = vmatprep.subr.bf16.mxu0 0
      %1226 = vmatpush1.bf16.msra.mxu0 %v1006
      %1227 = vmatprep.subr.bf16.mxu0 0
      %1228 = vmatpush1.bf16.msra.mxu0 %v1007
      %1229 = vmatprep.subr.bf16.mxu0 0
      %1230 = vmatpush1.bf16.msra.mxu0 %v1008
      %1231 = vmatprep.subr.bf16.mxu0 0
      %1232 = vmatpush1.bf16.msra.mxu0 %v1009
      %1233 = vmatprep.subr.bf16.mxu0 0
      %1234 = vmatpush1.bf16.msra.mxu0 %v1010
      %1235 = vmatprep.subr.bf16.mxu0 0
      %1236 = vmatpush1.bf16.msra.mxu0 %v1011
      %1237 = vmatprep.mubr.bf16.mxu0 %v727
      %1238 = vmatmul.mubr.bf16.gmra.mrb[0].mxu0 %v726
      %v1239 = vpop.f32.mrb[0].mxu0
      %v1240 = vadd.f32 %v1079, %v1239
      %v1241 = vpop.f32.mrb[0].mxu0
      %v1242 = vpop.f32.mrb[0].mxu0
      %v1243 = vadd.f32 %v1082, %v1242
      %v1244 = vpop.f32.mrb[0].mxu0
      %1245 = vmatprep.mubr.bf16.mxu0 %v731
      %1246 = vmatmul.mubr.bf16.gmra.mrb[0].mxu0 %v730
      %v1247 = vpop.f32.mrb[0].mxu0
      %v1248 = vadd.f32 %v1087, %v1247
      %v1249 = vpop.f32.mrb[0].mxu0
      %v1250 = vpop.f32.mrb[0].mxu0
      %v1251 = vadd.f32 %v1090, %v1250
      %v1252 = vpop.f32.mrb[0].mxu0
      %1253 = vmatprep.mubr.bf16.mxu0 %v735
      %1254 = vmatmul.mubr.bf16.gmra.mrb[0].mxu0 %v734
      %v1255 = vpop.f32.mrb[0].mxu0
      %v1256 = vadd.f32 %v1095, %v1255
      %v1257 = vpop.f32.mrb[0].mxu0
      %v1258 = vpop.f32.mrb[0].mxu0
      %v1259 = vadd.f32 %v1098, %v1258
      %v1260 = vpop.f32.mrb[0].mxu0
      %1261 = vmatprep.mubr.bf16.mxu0 %v739
      %1262 = vmatmul.mubr.bf16.gmra.mrb[0].mxu0 %v738
      %v1263 = vpop.f32.mrb[0].mxu0
      %v1264 = vadd.f32 %v1103, %v1263
      %v1265 = vpop.f32.mrb[0].mxu0
      %v1266 = vpop.f32.mrb[0].mxu0
      %v1267 = vadd.f32 %v1106, %v1266
      %v1268 = vpop.f32.mrb[0].mxu0
      %1269 = vmatprep.mubr.bf16.mxu0 %v743
      %1270 = vmatmul.mubr.bf16.gmra.mrb[0].mxu0 %v742
      %v1271 = vpop.f32.mrb[0].mxu0
      %v1272 = vadd.f32 %v1111, %v1271
      %v1273 = vpop.f32.mrb[0].mxu0
      %v1274 = vpop.f32.mrb[0].mxu0
      %v1275 = vadd.f32 %v1114, %v1274
      %v1276 = vpop.f32.mrb[0].mxu0
      %1277 = vmatprep.mubr.bf16.mxu0 %v747
      %1278 = vmatmul.mubr.bf16.gmra.mrb[0].mxu0 %v746
      %v1279 = vpop.f32.mrb[0].mxu0
      %v1280 = vadd.f32 %v1119, %v1279
      %v1281 = vpop.f32.mrb[0].mxu0
      %v1282 = vpop.f32.mrb[0].mxu0
      %v1283 = vadd.f32 %v1122, %v1282
      %v1284 = vpop.f32.mrb[0].mxu0
      %1285 = vmatprep.mubr.bf16.mxu0 %v751
      %1286 = vmatmul.mubr.bf16.gmra.mrb[0].mxu0 %v750
      %v1287 = vpop.f32.mrb[0].mxu0
      %v1288 = vadd.f32 %v1127, %v1287
      %v1289 = vpop.f32.mrb[0].mxu0
      %v1290 = vpop.f32.mrb[0].mxu0
      %v1291 = vadd.f32 %v1130, %v1290
      %v1292 = vpop.f32.mrb[0].mxu0
      %1293 = vmatprep.mubr.bf16.mxu0 %v755
      %1294 = vmatmul.mubr.bf16.gmra.mrb[0].mxu0 %v754
      %v1295 = vpop.f32.mrb[0].mxu0
      %v1296 = vadd.f32 %v1135, %v1295
      %v1297 = vpop.f32.mrb[0].mxu0
      %v1298 = vpop.f32.mrb[0].mxu0
      %v1299 = vadd.f32 %v1138, %v1298
      %v1300 = vpop.f32.mrb[0].mxu0
      %1301 = vmatprep.mubr.bf16.mxu0 %v759
      %1302 = vmatmul.mubr.bf16.gmra.mrb[0].mxu0 %v758
      %v1303 = vpop.f32.mrb[0].mxu0
      %v1304 = vadd.f32 %v1143, %v1303
      %v1305 = vpop.f32.mrb[0].mxu0
      %v1306 = vpop.f32.mrb[0].mxu0
      %v1307 = vadd.f32 %v1146, %v1306
      %v1308 = vpop.f32.mrb[0].mxu0
      %1309 = vmatprep.mubr.bf16.mxu0 %v763
      %1310 = vmatmul.mubr.bf16.gmra.mrb[0].mxu0 %v762
      %v1311 = vpop.f32.mrb[0].mxu0
      %v1312 = vadd.f32 %v1151, %v1311
      %v1313 = vpop.f32.mrb[0].mxu0
      %v1314 = vpop.f32.mrb[0].mxu0
      %v1315 = vadd.f32 %v1154, %v1314
      %v1316 = vpop.f32.mrb[0].mxu0
      %1317 = vmatprep.mubr.bf16.mxu0 %v767
      %1318 = vmatmul.mubr.bf16.gmra.mrb[0].mxu0 %v766
      %v1319 = vpop.f32.mrb[0].mxu0
      %v1320 = vadd.f32 %v1159, %v1319
      %v1321 = vpop.f32.mrb[0].mxu0
      %v1322 = vpop.f32.mrb[0].mxu0
      %v1323 = vadd.f32 %v1162, %v1322
      %v1324 = vpop.f32.mrb[0].mxu0
      %1325 = vmatprep.mubr.bf16.mxu0 %v771
      %1326 = vmatmul.mubr.bf16.gmra.mrb[0].mxu0 %v770
      %v1327 = vpop.f32.mrb[0].mxu0
      %v1328 = vadd.f32 %v1167, %v1327
      %v1329 = vpop.f32.mrb[0].mxu0
      %v1330 = vpop.f32.mrb[0].mxu0
      %v1331 = vadd.f32 %v1170, %v1330
      %v1332 = vpop.f32.mrb[0].mxu0
      %1333 = vmatprep.mubr.bf16.mxu0 %v775
      %1334 = vmatmul.mubr.bf16.gmra.mrb[0].mxu0 %v774
      %v1335 = vpop.f32.mrb[0].mxu0
      %v1336 = vadd.f32 %v1175, %v1335
      %v1337 = vpop.f32.mrb[0].mxu0
      %v1338 = vpop.f32.mrb[0].mxu0
      %v1339 = vadd.f32 %v1178, %v1338
      %v1340 = vpop.f32.mrb[0].mxu0
      %1341 = vmatprep.mubr.bf16.mxu0 %v779
      %1342 = vmatmul.mubr.bf16.gmra.mrb[0].mxu0 %v778
      %v1343 = vpop.f32.mrb[0].mxu0
      %v1344 = vadd.f32 %v1183, %v1343
      %v1345 = vpop.f32.mrb[0].mxu0
      %v1346 = vpop.f32.mrb[0].mxu0
      %v1347 = vadd.f32 %v1186, %v1346
      %v1348 = vpop.f32.mrb[0].mxu0
      %1349 = vmatprep.mubr.bf16.mxu0 %v783
      %1350 = vmatmul.mubr.bf16.gmra.mrb[0].mxu0 %v782
      %v1351 = vpop.f32.mrb[0].mxu0
      %v1352 = vadd.f32 %v1191, %v1351
      %v1353 = vpop.f32.mrb[0].mxu0
      %v1354 = vpop.f32.mrb[0].mxu0
      %v1355 = vadd.f32 %v1194, %v1354
      %v1356 = vpop.f32.mrb[0].mxu0
      %1357 = vmatprep.mubr.bf16.mxu0 %v787
      %1358 = vmatmul.mubr.bf16.gmra.mrb[0].mxu0 %v786
      %v1359 = vpop.f32.mrb[0].mxu0
      %v1360 = vadd.f32 %v1199, %v1359
      %v1361 = vpop.f32.mrb[0].mxu0
      %v1362 = vpop.f32.mrb[0].mxu0
      %v1363 = vadd.f32 %v1202, %v1362
      %v1364 = vpop.f32.mrb[0].mxu0
      %1365 = vdwg.mxu0
      %v1366 = vadd.f32 %v436, %v1240
      %v1367 = vadd.f32 %v437, %v1243
      %v1368 = vadd.f32 %v438, %v1248
      %v1369 = vadd.f32 %v439, %v1251
      %v1370 = vadd.f32 %v440, %v1256
      %v1371 = vadd.f32 %v441, %v1259
      %v1372 = vadd.f32 %v442, %v1264
      %v1373 = vadd.f32 %v443, %v1267
      %v1374 = vadd.f32 %v444, %v1272
      %v1375 = vadd.f32 %v445, %v1275
      %v1376 = vadd.f32 %v446, %v1280
      %v1377 = vadd.f32 %v447, %v1283
      %v1378 = vadd.f32 %v448, %v1288
      %v1379 = vadd.f32 %v449, %v1291
      %v1380 = vadd.f32 %v450, %v1296
      %v1381 = vadd.f32 %v451, %v1299
      %v1382 = vadd.f32 %v452, %v1304
      %v1383 = vadd.f32 %v453, %v1307
      %v1384 = vadd.f32 %v454, %v1312
      %v1385 = vadd.f32 %v455, %v1315
      %v1386 = vadd.f32 %v456, %v1320
      %v1387 = vadd.f32 %v457, %v1323
      %v1388 = vadd.f32 %v458, %v1328
      %v1389 = vadd.f32 %v459, %v1331
      %v1390 = vadd.f32 %v460, %v1336
      %v1391 = vadd.f32 %v461, %v1339
      %v1392 = vadd.f32 %v462, %v1344
      %v1393 = vadd.f32 %v463, %v1347
      %v1394 = vadd.f32 %v464, %v1352
      %v1395 = vadd.f32 %v465, %v1355
      %v1396 = vadd.f32 %v466, %v1360
      %v1397 = vadd.f32 %v467, %v1363
      %1398 = vst [vmem:[#allocation2] sm:$0xff] %v1366
      %1399 = vst [vmem:[#allocation2 + $0x8] sm:$0xff] %v1367
      %1400 = vst [vmem:[#allocation2 + $0x10] sm:$0xff] %v1368
      %1401 = vst [vmem:[#allocation2 + $0x18] sm:$0xff] %v1369
      %1402 = vst [vmem:[#allocation2 + $0x20] sm:$0xff] %v1370
      %1403 = vst [vmem:[#allocation2 + $0x28] sm:$0xff] %v1371
      %1404 = vst [vmem:[#allocation2 + $0x30] sm:$0xff] %v1372
      %1405 = vst [vmem:[#allocation2 + $0x38] sm:$0xff] %v1373
      %1406 = vst [vmem:[#allocation2 + $0x40] sm:$0xff] %v1374
      %1407 = vst [vmem:[#allocation2 + $0x48] sm:$0xff] %v1375
      %1408 = vst [vmem:[#allocation2 + $0x50] sm:$0xff] %v1376
      %1409 = vst [vmem:[#allocation2 + $0x58] sm:$0xff] %v1377
      %1410 = vst [vmem:[#allocation2 + $0x60] sm:$0xff] %v1378
      %1411 = vst [vmem:[#allocation2 + $0x68] sm:$0xff] %v1379
      %1412 = vst [vmem:[#allocation2 + $0x70] sm:$0xff] %v1380
      %1413 = vst [vmem:[#allocation2 + $0x78] sm:$0xff] %v1381
      %1414 = vst [vmem:[#allocation2 + $0x80] sm:$0xff] %v1382
      %1415 = vst [vmem:[#allocation2 + $0x88] sm:$0xff] %v1383
      %1416 = vst [vmem:[#allocation2 + $0x90] sm:$0xff] %v1384
      %1417 = vst [vmem:[#allocation2 + $0x98] sm:$0xff] %v1385
      %1418 = vst [vmem:[#allocation2 + $0xa0] sm:$0xff] %v1386
      %1419 = vst [vmem:[#allocation2 + $0xa8] sm:$0xff] %v1387
      %1420 = vst [vmem:[#allocation2 + $0xb0] sm:$0xff] %v1388
      %1421 = vst [vmem:[#allocation2 + $0xb8] sm:$0xff] %v1389
      %1422 = vst [vmem:[#allocation2 + $0xc0] sm:$0xff] %v1390
      %1423 = vst [vmem:[#allocation2 + $0xc8] sm:$0xff] %v1391
      %1424 = vst [vmem:[#allocation2 + $0xd0] sm:$0xff] %v1392
      %1425 = vst [vmem:[#allocation2 + $0xd8] sm:$0xff] %v1393
      %1426 = vst [vmem:[#allocation2 + $0xe0] sm:$0xff] %v1394
      %1427 = vst [vmem:[#allocation2 + $0xe8] sm:$0xff] %v1395
      %1428 = vst [vmem:[#allocation2 + $0xf0] sm:$0xff] %v1396
      %1429 = vst [vmem:[#allocation2 + $0xf8] sm:$0xff] %v1397
      // Predicated region
      $region49: #{graphsage_forward.7} parent=43 // pred_check
        %p1430 = pneg %p331
      $region50: #{graphsage_forward.7} parent=43 // pred_check_branch
        %1432 = sbr.rel (%p1430) target = $region52
      $region51: #{graphsage_forward.7} parent=43 // pred_region
        %v1433 = vld [vmem:[#allocation2] sm:$0xff]
        %v1434 = vld [vmem:[#allocation2 + $0x8] sm:$0xff]
        %v1435 = vld [vmem:[#allocation2 + $0x10] sm:$0xff]
        %v1436 = vld [vmem:[#allocation2 + $0x18] sm:$0xff]
        %v1437 = vld [vmem:[#allocation2 + $0x20] sm:$0xff]
        %v1438 = vld [vmem:[#allocation2 + $0x28] sm:$0xff]
        %v1439 = vld [vmem:[#allocation2 + $0x30] sm:$0xff]
        %v1440 = vld [vmem:[#allocation2 + $0x38] sm:$0xff]
        %v1441 = vld [vmem:[#allocation2 + $0x40] sm:$0xff]
        %v1442 = vld [vmem:[#allocation2 + $0x48] sm:$0xff]
        %v1443 = vld [vmem:[#allocation2 + $0x50] sm:$0xff]
        %v1444 = vld [vmem:[#allocation2 + $0x58] sm:$0xff]
        %v1445 = vld [vmem:[#allocation2 + $0x60] sm:$0xff]
        %v1446 = vld [vmem:[#allocation2 + $0x68] sm:$0xff]
        %v1447 = vld [vmem:[#allocation2 + $0x70] sm:$0xff]
        %v1448 = vld [vmem:[#allocation2 + $0x78] sm:$0xff]
        %v1449 = vld [vmem:[#allocation2 + $0x80] sm:$0xff]
        %v1450 = vld [vmem:[#allocation2 + $0x88] sm:$0xff]
        %v1451 = vld [vmem:[#allocation2 + $0x90] sm:$0xff]
        %v1452 = vld [vmem:[#allocation2 + $0x98] sm:$0xff]
        %v1453 = vld [vmem:[#allocation2 + $0xa0] sm:$0xff]
        %v1454 = vld [vmem:[#allocation2 + $0xa8] sm:$0xff]
        %v1455 = vld [vmem:[#allocation2 + $0xb0] sm:$0xff]
        %v1456 = vld [vmem:[#allocation2 + $0xb8] sm:$0xff]
        %v1457 = vld [vmem:[#allocation2 + $0xc0] sm:$0xff]
        %v1458 = vld [vmem:[#allocation2 + $0xc8] sm:$0xff]
        %v1459 = vld [vmem:[#allocation2 + $0xd0] sm:$0xff]
        %v1460 = vld [vmem:[#allocation2 + $0xd8] sm:$0xff]
        %v1461 = vld [vmem:[#allocation2 + $0xe0] sm:$0xff]
        %v1462 = vld [vmem:[#allocation2 + $0xe8] sm:$0xff]
        %v1463 = vld [vmem:[#allocation2 + $0xf0] sm:$0xff]
        %v1464 = vld [vmem:[#allocation2 + $0xf8] sm:$0xff]
        %v1465 = vld [vmem:[%s322] sm:$0xff]
        %v1466 = vld [vmem:[%s322 + $0x8] sm:$0xff]
        %v1467 = vld [vmem:[%s322 + $0x10] sm:$0xff]
        %v1468 = vld [vmem:[%s322 + $0x18] sm:$0xff]
        %v1469 = vld [vmem:[%s322 + $0x20] sm:$0xff]
        %v1470 = vld [vmem:[%s322 + $0x28] sm:$0xff]
        %v1471 = vld [vmem:[%s322 + $0x30] sm:$0xff]
        %v1472 = vld [vmem:[%s322 + $0x38] sm:$0xff]
        %v1473 = vld [vmem:[%s322 + $0x40] sm:$0xff]
        %v1474 = vld [vmem:[%s322 + $0x48] sm:$0xff]
        %v1475 = vld [vmem:[%s322 + $0x50] sm:$0xff]
        %v1476 = vld [vmem:[%s322 + $0x58] sm:$0xff]
        %v1477 = vld [vmem:[%s322 + $0x60] sm:$0xff]
        %v1478 = vld [vmem:[%s322 + $0x68] sm:$0xff]
        %v1479 = vld [vmem:[%s322 + $0x70] sm:$0xff]
        %v1480 = vld [vmem:[%s322 + $0x78] sm:$0xff]
        %v1481 = vld [vmem:[%s322 + $0x80] sm:$0xff]
        %v1482 = vld [vmem:[%s322 + $0x88] sm:$0xff]
        %v1483 = vld [vmem:[%s322 + $0x90] sm:$0xff]
        %v1484 = vld [vmem:[%s322 + $0x98] sm:$0xff]
        %v1485 = vld [vmem:[%s322 + $0xa0] sm:$0xff]
        %v1486 = vld [vmem:[%s322 + $0xa8] sm:$0xff]
        %v1487 = vld [vmem:[%s322 + $0xb0] sm:$0xff]
        %v1488 = vld [vmem:[%s322 + $0xb8] sm:$0xff]
        %v1489 = vld [vmem:[%s322 + $0xc0] sm:$0xff]
        %v1490 = vld [vmem:[%s322 + $0xc8] sm:$0xff]
        %v1491 = vld [vmem:[%s322 + $0xd0] sm:$0xff]
        %v1492 = vld [vmem:[%s322 + $0xd8] sm:$0xff]
        %v1493 = vld [vmem:[%s322 + $0xe0] sm:$0xff]
        %v1494 = vld [vmem:[%s322 + $0xe8] sm:$0xff]
        %v1495 = vld [vmem:[%s322 + $0xf0] sm:$0xff]
        %v1496 = vld [vmem:[%s322 + $0xf8] sm:$0xff]
        %1498 = vset.pattern.permute.xlu0 0
        %1499 = vperm.xlu0 %1498, %v1465
        %v1500 = vpop.permute.xlu0 %1499
        %1503 = vset.pattern.permute.xlu0 0
        %1504 = vperm.xlu0 %1503, %v1466
        %v1505 = vpop.permute.xlu0 %1504
        %1508 = vset.pattern.permute.xlu0 0
        %1509 = vperm.xlu0 %1508, %v1467
        %v1510 = vpop.permute.xlu0 %1509
        %1513 = vset.pattern.permute.xlu0 0
        %1514 = vperm.xlu0 %1513, %v1468
        %v1515 = vpop.permute.xlu0 %1514
        %1518 = vset.pattern.permute.xlu0 0
        %1519 = vperm.xlu0 %1518, %v1469
        %v1520 = vpop.permute.xlu0 %1519
        %1523 = vset.pattern.permute.xlu0 0
        %1524 = vperm.xlu0 %1523, %v1470
        %v1525 = vpop.permute.xlu0 %1524
        %1528 = vset.pattern.permute.xlu0 0
        %1529 = vperm.xlu0 %1528, %v1471
        %v1530 = vpop.permute.xlu0 %1529
        %1533 = vset.pattern.permute.xlu0 0
        %1534 = vperm.xlu0 %1533, %v1472
        %v1535 = vpop.permute.xlu0 %1534
        %1538 = vset.pattern.permute.xlu0 0
        %1539 = vperm.xlu0 %1538, %v1473
        %v1540 = vpop.permute.xlu0 %1539
        %1543 = vset.pattern.permute.xlu0 0
        %1544 = vperm.xlu0 %1543, %v1474
        %v1545 = vpop.permute.xlu0 %1544
        %1548 = vset.pattern.permute.xlu0 0
        %1549 = vperm.xlu0 %1548, %v1475
        %v1550 = vpop.permute.xlu0 %1549
        %1553 = vset.pattern.permute.xlu0 0
        %1554 = vperm.xlu0 %1553, %v1476
        %v1555 = vpop.permute.xlu0 %1554
        %1558 = vset.pattern.permute.xlu0 0
        %1559 = vperm.xlu0 %1558, %v1477
        %v1560 = vpop.permute.xlu0 %1559
        %1563 = vset.pattern.permute.xlu0 0
        %1564 = vperm.xlu0 %1563, %v1478
        %v1565 = vpop.permute.xlu0 %1564
        %1568 = vset.pattern.permute.xlu0 0
        %1569 = vperm.xlu0 %1568, %v1479
        %v1570 = vpop.permute.xlu0 %1569
        %1573 = vset.pattern.permute.xlu0 0
        %1574 = vperm.xlu0 %1573, %v1480
        %v1575 = vpop.permute.xlu0 %1574
        %1578 = vset.pattern.permute.xlu0 0
        %1579 = vperm.xlu0 %1578, %v1481
        %v1580 = vpop.permute.xlu0 %1579
        %1583 = vset.pattern.permute.xlu0 0
        %1584 = vperm.xlu0 %1583, %v1482
        %v1585 = vpop.permute.xlu0 %1584
        %1588 = vset.pattern.permute.xlu0 0
        %1589 = vperm.xlu0 %1588, %v1483
        %v1590 = vpop.permute.xlu0 %1589
        %1593 = vset.pattern.permute.xlu0 0
        %1594 = vperm.xlu0 %1593, %v1484
        %v1595 = vpop.permute.xlu0 %1594
        %1598 = vset.pattern.permute.xlu0 0
        %1599 = vperm.xlu0 %1598, %v1485
        %v1600 = vpop.permute.xlu0 %1599
        %1603 = vset.pattern.permute.xlu0 0
        %1604 = vperm.xlu0 %1603, %v1486
        %v1605 = vpop.permute.xlu0 %1604
        %1608 = vset.pattern.permute.xlu0 0
        %1609 = vperm.xlu0 %1608, %v1487
        %v1610 = vpop.permute.xlu0 %1609
        %1613 = vset.pattern.permute.xlu0 0
        %1614 = vperm.xlu0 %1613, %v1488
        %v1615 = vpop.permute.xlu0 %1614
        %1618 = vset.pattern.permute.xlu0 0
        %1619 = vperm.xlu0 %1618, %v1489
        %v1620 = vpop.permute.xlu0 %1619
        %1623 = vset.pattern.permute.xlu0 0
        %1624 = vperm.xlu0 %1623, %v1490
        %v1625 = vpop.permute.xlu0 %1624
        %1628 = vset.pattern.permute.xlu0 0
        %1629 = vperm.xlu0 %1628, %v1491
        %v1630 = vpop.permute.xlu0 %1629
        %1633 = vset.pattern.permute.xlu0 0
        %1634 = vperm.xlu0 %1633, %v1492
        %v1635 = vpop.permute.xlu0 %1634
        %1638 = vset.pattern.permute.xlu0 0
        %1639 = vperm.xlu0 %1638, %v1493
        %v1640 = vpop.permute.xlu0 %1639
        %1643 = vset.pattern.permute.xlu0 0
        %1644 = vperm.xlu0 %1643, %v1494
        %v1645 = vpop.permute.xlu0 %1644
        %1648 = vset.pattern.permute.xlu0 0
        %1649 = vperm.xlu0 %1648, %v1495
        %v1650 = vpop.permute.xlu0 %1649
        %1653 = vset.pattern.permute.xlu0 0
        %1654 = vperm.xlu0 %1653, %v1496
        %v1655 = vpop.permute.xlu0 %1654
        %v1657 = vmul.f32 %v1433, %v1500
        %v1658 = vmul.f32 %v1434, %v1505
        %v1659 = vmul.f32 %v1435, %v1510
        %v1660 = vmul.f32 %v1436, %v1515
        %v1661 = vmul.f32 %v1437, %v1520
        %v1662 = vmul.f32 %v1438, %v1525
        %v1663 = vmul.f32 %v1439, %v1530
        %v1664 = vmul.f32 %v1440, %v1535
        %v1665 = vmul.f32 %v1441, %v1540
        %v1666 = vmul.f32 %v1442, %v1545
        %v1667 = vmul.f32 %v1443, %v1550
        %v1668 = vmul.f32 %v1444, %v1555
        %v1669 = vmul.f32 %v1445, %v1560
        %v1670 = vmul.f32 %v1446, %v1565
        %v1671 = vmul.f32 %v1447, %v1570
        %v1672 = vmul.f32 %v1448, %v1575
        %v1673 = vmul.f32 %v1449, %v1580
        %v1674 = vmul.f32 %v1450, %v1585
        %v1675 = vmul.f32 %v1451, %v1590
        %v1676 = vmul.f32 %v1452, %v1595
        %v1677 = vmul.f32 %v1453, %v1600
        %v1678 = vmul.f32 %v1454, %v1605
        %v1679 = vmul.f32 %v1455, %v1610
        %v1680 = vmul.f32 %v1456, %v1615
        %v1681 = vmul.f32 %v1457, %v1620
        %v1682 = vmul.f32 %v1458, %v1625
        %v1683 = vmul.f32 %v1459, %v1630
        %v1684 = vmul.f32 %v1460, %v1635
        %v1685 = vmul.f32 %v1461, %v1640
        %v1686 = vmul.f32 %v1462, %v1645
        %v1687 = vmul.f32 %v1463, %v1650
        %v1688 = vmul.f32 %v1464, %v1655
        %v1689 = vld [vmem:[%s316] sm:$0xf]
        %v1690 = vld [vmem:[%s316 + $0x4] sm:$0xf]
        %v1691 = vld [vmem:[%s316 + $0x8] sm:$0xf]
        %v1692 = vld [vmem:[%s316 + $0xc] sm:$0xf]
        %v1693 = vld [vmem:[%s316 + $0x10] sm:$0xf]
        %v1694 = vld [vmem:[%s316 + $0x14] sm:$0xf]
        %v1695 = vld [vmem:[%s316 + $0x18] sm:$0xf]
        %v1696 = vld [vmem:[%s316 + $0x1c] sm:$0xf]
        %v1697 = vld [vmem:[%s316 + $0x20] sm:$0xf]
        %v1698 = vld [vmem:[%s316 + $0x24] sm:$0xf]
        %v1699 = vld [vmem:[%s316 + $0x28] sm:$0xf]
        %v1700 = vld [vmem:[%s316 + $0x2c] sm:$0xf]
        %v1701 = vld [vmem:[%s316 + $0x30] sm:$0xf]
        %v1702 = vld [vmem:[%s316 + $0x34] sm:$0xf]
        %v1703 = vld [vmem:[%s316 + $0x38] sm:$0xf]
        %v1704 = vld [vmem:[%s316 + $0x3c] sm:$0xf]
        %v1705 = vld [vmem:[%s316 + $0x40] sm:$0xf]
        %v1706 = vld [vmem:[%s316 + $0x44] sm:$0xf]
        %v1707 = vld [vmem:[%s316 + $0x48] sm:$0xf]
        %v1708 = vld [vmem:[%s316 + $0x4c] sm:$0xf]
        %v1709 = vld [vmem:[%s316 + $0x50] sm:$0xf]
        %v1710 = vld [vmem:[%s316 + $0x54] sm:$0xf]
        %v1711 = vld [vmem:[%s316 + $0x58] sm:$0xf]
        %v1712 = vld [vmem:[%s316 + $0x5c] sm:$0xf]
        %v1713 = vld [vmem:[%s316 + $0x60] sm:$0xf]
        %v1714 = vld [vmem:[%s316 + $0x64] sm:$0xf]
        %v1715 = vld [vmem:[%s316 + $0x68] sm:$0xf]
        %v1716 = vld [vmem:[%s316 + $0x6c] sm:$0xf]
        %v1717 = vld [vmem:[%s316 + $0x70] sm:$0xf]
        %v1718 = vld [vmem:[%s316 + $0x74] sm:$0xf]
        %v1719 = vld [vmem:[%s316 + $0x78] sm:$0xf]
        %v1720 = vld [vmem:[%s316 + $0x7c] sm:$0xf]
        %v1721 = vld [vmem:[%s3] sm:$0xf]
        %v1722 = vld [vmem:[%s3 + $0x4] sm:$0xf]
        %v1723 = vld [vmem:[%s3 + $0x8] sm:$0xf]
        %v1724 = vld [vmem:[%s3 + $0xc] sm:$0xf]
        %v1725 = vld [vmem:[%s3 + $0x10] sm:$0xf]
        %v1726 = vld [vmem:[%s3 + $0x14] sm:$0xf]
        %v1727 = vld [vmem:[%s3 + $0x18] sm:$0xf]
        %v1728 = vld [vmem:[%s3 + $0x1c] sm:$0xf]
        %v1729 = vld [vmem:[%s3 + $0x20] sm:$0xf]
        %v1730 = vld [vmem:[%s3 + $0x24] sm:$0xf]
        %v1731 = vld [vmem:[%s3 + $0x28] sm:$0xf]
        %v1732 = vld [vmem:[%s3 + $0x2c] sm:$0xf]
        %v1733 = vld [vmem:[%s3 + $0x30] sm:$0xf]
        %v1734 = vld [vmem:[%s3 + $0x34] sm:$0xf]
        %v1735 = vld [vmem:[%s3 + $0x38] sm:$0xf]
        %v1736 = vld [vmem:[%s3 + $0x3c] sm:$0xf]
        %v1769 = vunpack.c.l.b16 %v1689
        %v1770 = vunpack.c.l.b16 %v1690
        %v1771 = vunpack.c.l.b16 %v1691
        %v1772 = vunpack.c.l.b16 %v1692
        %v1773 = vunpack.c.l.b16 %v1693
        %v1774 = vunpack.c.l.b16 %v1694
        %v1775 = vunpack.c.l.b16 %v1695
        %v1776 = vunpack.c.l.b16 %v1696
        %v1777 = vunpack.c.l.b16 %v1697
        %v1778 = vunpack.c.l.b16 %v1698
        %v1779 = vunpack.c.l.b16 %v1699
        %v1780 = vunpack.c.l.b16 %v1700
        %v1781 = vunpack.c.l.b16 %v1701
        %v1782 = vunpack.c.l.b16 %v1702
        %v1783 = vunpack.c.l.b16 %v1703
        %v1784 = vunpack.c.l.b16 %v1704
        %v1785 = vunpack.c.l.b16 %v1705
        %v1786 = vunpack.c.l.b16 %v1706
        %v1787 = vunpack.c.l.b16 %v1707
        %v1788 = vunpack.c.l.b16 %v1708
        %v1789 = vunpack.c.l.b16 %v1709
        %v1790 = vunpack.c.l.b16 %v1710
        %v1791 = vunpack.c.l.b16 %v1711
        %v1792 = vunpack.c.l.b16 %v1712
        %v1793 = vunpack.c.l.b16 %v1713
        %v1794 = vunpack.c.l.b16 %v1714
        %v1795 = vunpack.c.l.b16 %v1715
        %v1796 = vunpack.c.l.b16 %v1716
        %v1797 = vunpack.c.l.b16 %v1717
        %v1798 = vunpack.c.l.b16 %v1718
        %v1799 = vunpack.c.l.b16 %v1719
        %v1800 = vunpack.c.l.b16 %v1720
        %v1801 = vpack.c.b16 %v1770, %v1769
        %v1802 = vpack.c.b16 %v1772, %v1771
        %v1803 = vpack.c.b16 %v1774, %v1773
        %v1804 = vpack.c.b16 %v1776, %v1775
        %v1805 = vpack.c.b16 %v1778, %v1777
        %v1806 = vpack.c.b16 %v1780, %v1779
        %v1807 = vpack.c.b16 %v1782, %v1781
        %v1808 = vpack.c.b16 %v1784, %v1783
        %v1809 = vpack.c.b16 %v1786, %v1785
        %v1810 = vpack.c.b16 %v1788, %v1787
        %v1811 = vpack.c.b16 %v1790, %v1789
        %v1812 = vpack.c.b16 %v1792, %v1791
        %v1813 = vpack.c.b16 %v1794, %v1793
        %v1814 = vpack.c.b16 %v1796, %v1795
        %v1815 = vpack.c.b16 %v1798, %v1797
        %v1816 = vpack.c.b16 %v1800, %v1799
        %v1849 = vunpack.c.l.b16 %v1721
        %v1850 = vunpack.c.l.b16 %v1722
        %v1851 = vunpack.c.l.b16 %v1723
        %v1852 = vunpack.c.l.b16 %v1724
        %v1853 = vunpack.c.l.b16 %v1725
        %v1854 = vunpack.c.l.b16 %v1726
        %v1855 = vunpack.c.l.b16 %v1727
        %v1856 = vunpack.c.l.b16 %v1728
        %v1857 = vunpack.c.l.b16 %v1729
        %v1858 = vunpack.c.l.b16 %v1730
        %v1859 = vunpack.c.l.b16 %v1731
        %v1860 = vunpack.c.l.b16 %v1732
        %v1861 = vunpack.c.l.b16 %v1733
        %v1862 = vunpack.c.l.b16 %v1734
        %v1863 = vunpack.c.l.b16 %v1735
        %v1864 = vunpack.c.l.b16 %v1736
        %v1865 = vpack.c.b16 %v1850, %v1849
        %v1866 = vpack.c.b16 %v1852, %v1851
        %v1867 = vpack.c.b16 %v1854, %v1853
        %v1868 = vpack.c.b16 %v1856, %v1855
        %v1869 = vpack.c.b16 %v1858, %v1857
        %v1870 = vpack.c.b16 %v1860, %v1859
        %v1871 = vpack.c.b16 %v1862, %v1861
        %v1872 = vpack.c.b16 %v1864, %v1863
        %1881 = vmatprep.subr.bf16.mxu0 0
        %1882 = vmatpush1.bf16.msra.mxu0 %v1865
        %1883 = vmatprep.subr.bf16.mxu0 0
        %1884 = vmatpush1.bf16.msra.mxu0 %v1866
        %1885 = vmatprep.subr.bf16.mxu0 0
        %1886 = vmatpush1.bf16.msra.mxu0 %v1867
        %1887 = vmatprep.subr.bf16.mxu0 0
        %1888 = vmatpush1.bf16.msra.mxu0 %v1868
        %1889 = vmatprep.subr.bf16.mxu0 0
        %1890 = vmatpush1.bf16.msra.mxu0 %v1869
        %1891 = vmatprep.subr.bf16.mxu0 0
        %1892 = vmatpush1.bf16.msra.mxu0 %v1870
        %1893 = vmatprep.subr.bf16.mxu0 0
        %1894 = vmatpush1.bf16.msra.mxu0 %v1871
        %1895 = vmatprep.subr.bf16.mxu0 0
        %1896 = vmatpush1.bf16.msra.mxu0 %v1872
        %1897 = vmatprep.subr.bf16.mxu0 0
        %1898 = vmatpush1.bf16.msra.mxu0 0
        %1899 = vmatprep.subr.bf16.mxu0 0
        %1900 = vmatpush1.bf16.msra.mxu0 0
        %1901 = vmatprep.subr.bf16.mxu0 0
        %1902 = vmatpush1.bf16.msra.mxu0 0
        %1903 = vmatprep.subr.bf16.mxu0 0
        %1904 = vmatpush1.bf16.msra.mxu0 0
        %1905 = vmatprep.subr.bf16.mxu0 0
        %1906 = vmatpush1.bf16.msra.mxu0 0
        %1907 = vmatprep.subr.bf16.mxu0 0
        %1908 = vmatpush1.bf16.msra.mxu0 0
        %1909 = vmatprep.subr.bf16.mxu0 0
        %1910 = vmatpush1.bf16.msra.mxu0 0
        %1911 = vmatprep.subr.bf16.mxu0 0
        %1912 = vmatpush1.bf16.msra.mxu0 0
        %1913 = vmatprep.mubr.bf16.mxu0 0
        %1914 = vmatmul.mubr.bf16.gmra.mrb[0].mxu0 %v1801
        %v1915 = vpop.f32.mrb[0].mxu0
        %v1916 = vadd.f32 0.0, %v1915
        %v1917 = vpop.f32.mrb[0].mxu0
        %v1918 = vpop.f32.mrb[0].mxu0
        %v1919 = vadd.f32 0.0, %v1918
        %v1920 = vpop.f32.mrb[0].mxu0
        %1921 = vmatprep.mubr.bf16.mxu0 0
        %1922 = vmatmul.mubr.bf16.gmra.mrb[0].mxu0 %v1802
        %v1923 = vpop.f32.mrb[0].mxu0
        %v1924 = vadd.f32 0.0, %v1923
        %v1925 = vpop.f32.mrb[0].mxu0
        %v1926 = vpop.f32.mrb[0].mxu0
        %v1927 = vadd.f32 0.0, %v1926
        %v1928 = vpop.f32.mrb[0].mxu0
        %1929 = vmatprep.mubr.bf16.mxu0 0
        %1930 = vmatmul.mubr.bf16.gmra.mrb[0].mxu0 %v1803
        %v1931 = vpop.f32.mrb[0].mxu0
        %v1932 = vadd.f32 0.0, %v1931
        %v1933 = vpop.f32.mrb[0].mxu0
        %v1934 = vpop.f32.mrb[0].mxu0
        %v1935 = vadd.f32 0.0, %v1934
        %v1936 = vpop.f32.mrb[0].mxu0
        %1937 = vmatprep.mubr.bf16.mxu0 0
        %1938 = vmatmul.mubr.bf16.gmra.mrb[0].mxu0 %v1804
        %v1939 = vpop.f32.mrb[0].mxu0
        %v1940 = vadd.f32 0.0, %v1939
        %v1941 = vpop.f32.mrb[0].mxu0
        %v1942 = vpop.f32.mrb[0].mxu0
        %v1943 = vadd.f32 0.0, %v1942
        %v1944 = vpop.f32.mrb[0].mxu0
        %1945 = vmatprep.mubr.bf16.mxu0 0
        %1946 = vmatmul.mubr.bf16.gmra.mrb[0].mxu0 %v1805
        %v1947 = vpop.f32.mrb[0].mxu0
        %v1948 = vadd.f32 0.0, %v1947
        %v1949 = vpop.f32.mrb[0].mxu0
        %v1950 = vpop.f32.mrb[0].mxu0
        %v1951 = vadd.f32 0.0, %v1950
        %v1952 = vpop.f32.mrb[0].mxu0
        %1953 = vmatprep.mubr.bf16.mxu0 0
        %1954 = vmatmul.mubr.bf16.gmra.mrb[0].mxu0 %v1806
        %v1955 = vpop.f32.mrb[0].mxu0
        %v1956 = vadd.f32 0.0, %v1955
        %v1957 = vpop.f32.mrb[0].mxu0
        %v1958 = vpop.f32.mrb[0].mxu0
        %v1959 = vadd.f32 0.0, %v1958
        %v1960 = vpop.f32.mrb[0].mxu0
        %1961 = vmatprep.mubr.bf16.mxu0 0
        %1962 = vmatmul.mubr.bf16.gmra.mrb[0].mxu0 %v1807
        %v1963 = vpop.f32.mrb[0].mxu0
        %v1964 = vadd.f32 0.0, %v1963
        %v1965 = vpop.f32.mrb[0].mxu0
        %v1966 = vpop.f32.mrb[0].mxu0
        %v1967 = vadd.f32 0.0, %v1966
        %v1968 = vpop.f32.mrb[0].mxu0
        %1969 = vmatprep.mubr.bf16.mxu0 0
        %1970 = vmatmul.mubr.bf16.gmra.mrb[0].mxu0 %v1808
        %v1971 = vpop.f32.mrb[0].mxu0
        %v1972 = vadd.f32 0.0, %v1971
        %v1973 = vpop.f32.mrb[0].mxu0
        %v1974 = vpop.f32.mrb[0].mxu0
        %v1975 = vadd.f32 0.0, %v1974
        %v1976 = vpop.f32.mrb[0].mxu0
        %1977 = vmatprep.mubr.bf16.mxu0 0
        %1978 = vmatmul.mubr.bf16.gmra.mrb[0].mxu0 %v1809
        %v1979 = vpop.f32.mrb[0].mxu0
        %v1980 = vadd.f32 0.0, %v1979
        %v1981 = vpop.f32.mrb[0].mxu0
        %v1982 = vpop.f32.mrb[0].mxu0
        %v1983 = vadd.f32 0.0, %v1982
        %v1984 = vpop.f32.mrb[0].mxu0
        %1985 = vmatprep.mubr.bf16.mxu0 0
        %1986 = vmatmul.mubr.bf16.gmra.mrb[0].mxu0 %v1810
        %v1987 = vpop.f32.mrb[0].mxu0
        %v1988 = vadd.f32 0.0, %v1987
        %v1989 = vpop.f32.mrb[0].mxu0
        %v1990 = vpop.f32.mrb[0].mxu0
        %v1991 = vadd.f32 0.0, %v1990
        %v1992 = vpop.f32.mrb[0].mxu0
        %1993 = vmatprep.mubr.bf16.mxu0 0
        %1994 = vmatmul.mubr.bf16.gmra.mrb[0].mxu0 %v1811
        %v1995 = vpop.f32.mrb[0].mxu0
        %v1996 = vadd.f32 0.0, %v1995
        %v1997 = vpop.f32.mrb[0].mxu0
        %v1998 = vpop.f32.mrb[0].mxu0
        %v1999 = vadd.f32 0.0, %v1998
        %v2000 = vpop.f32.mrb[0].mxu0
        %2001 = vmatprep.mubr.bf16.mxu0 0
        %2002 = vmatmul.mubr.bf16.gmra.mrb[0].mxu0 %v1812
        %v2003 = vpop.f32.mrb[0].mxu0
        %v2004 = vadd.f32 0.0, %v2003
        %v2005 = vpop.f32.mrb[0].mxu0
        %v2006 = vpop.f32.mrb[0].mxu0
        %v2007 = vadd.f32 0.0, %v2006
        %v2008 = vpop.f32.mrb[0].mxu0
        %2009 = vmatprep.mubr.bf16.mxu0 0
        %2010 = vmatmul.mubr.bf16.gmra.mrb[0].mxu0 %v1813
        %v2011 = vpop.f32.mrb[0].mxu0
        %v2012 = vadd.f32 0.0, %v2011
        %v2013 = vpop.f32.mrb[0].mxu0
        %v2014 = vpop.f32.mrb[0].mxu0
        %v2015 = vadd.f32 0.0, %v2014
        %v2016 = vpop.f32.mrb[0].mxu0
        %2017 = vmatprep.mubr.bf16.mxu0 0
        %2018 = vmatmul.mubr.bf16.gmra.mrb[0].mxu0 %v1814
        %v2019 = vpop.f32.mrb[0].mxu0
        %v2020 = vadd.f32 0.0, %v2019
        %v2021 = vpop.f32.mrb[0].mxu0
        %v2022 = vpop.f32.mrb[0].mxu0
        %v2023 = vadd.f32 0.0, %v2022
        %v2024 = vpop.f32.mrb[0].mxu0
        %2025 = vmatprep.mubr.bf16.mxu0 0
        %2026 = vmatmul.mubr.bf16.gmra.mrb[0].mxu0 %v1815
        %v2027 = vpop.f32.mrb[0].mxu0
        %v2028 = vadd.f32 0.0, %v2027
        %v2029 = vpop.f32.mrb[0].mxu0
        %v2030 = vpop.f32.mrb[0].mxu0
        %v2031 = vadd.f32 0.0, %v2030
        %v2032 = vpop.f32.mrb[0].mxu0
        %2033 = vmatprep.mubr.bf16.mxu0 0
        %2034 = vmatmul.mubr.bf16.gmra.mrb[0].mxu0 %v1816
        %v2035 = vpop.f32.mrb[0].mxu0
        %v2036 = vadd.f32 0.0, %v2035
        %v2037 = vpop.f32.mrb[0].mxu0
        %v2038 = vpop.f32.mrb[0].mxu0
        %v2039 = vadd.f32 0.0, %v2038
        %v2040 = vpop.f32.mrb[0].mxu0
        %2041 = vdwg.mxu0
        %v2042 = vadd.f32 %v1657, %v1916
        %v2043 = vadd.f32 %v1658, %v1919
        %v2044 = vadd.f32 %v1659, %v1924
        %v2045 = vadd.f32 %v1660, %v1927
        %v2046 = vadd.f32 %v1661, %v1932
        %v2047 = vadd.f32 %v1662, %v1935
        %v2048 = vadd.f32 %v1663, %v1940
        %v2049 = vadd.f32 %v1664, %v1943
        %v2050 = vadd.f32 %v1665, %v1948
        %v2051 = vadd.f32 %v1666, %v1951
        %v2052 = vadd.f32 %v1667, %v1956
        %v2053 = vadd.f32 %v1668, %v1959
        %v2054 = vadd.f32 %v1669, %v1964
        %v2055 = vadd.f32 %v1670, %v1967
        %v2056 = vadd.f32 %v1671, %v1972
        %v2057 = vadd.f32 %v1672, %v1975
        %v2058 = vadd.f32 %v1673, %v1980
        %v2059 = vadd.f32 %v1674, %v1983
        %v2060 = vadd.f32 %v1675, %v1988
        %v2061 = vadd.f32 %v1676, %v1991
        %v2062 = vadd.f32 %v1677, %v1996
        %v2063 = vadd.f32 %v1678, %v1999
        %v2064 = vadd.f32 %v1679, %v2004
        %v2065 = vadd.f32 %v1680, %v2007
        %v2066 = vadd.f32 %v1681, %v2012
        %v2067 = vadd.f32 %v1682, %v2015
        %v2068 = vadd.f32 %v1683, %v2020
        %v2069 = vadd.f32 %v1684, %v2023
        %v2070 = vadd.f32 %v1685, %v2028
        %v2071 = vadd.f32 %v1686, %v2031
        %v2072 = vadd.f32 %v1687, %v2036
        %v2073 = vadd.f32 %v1688, %v2039
        %v2074 = vld [vmem:[%s4] sm:$0x1]
        %v2076 = vlaneseq
        %v2077 = vshrl.u32 %v2076, 7
        %v2078 = vsub.s32 0, %v2077
        %v2079 = vrot.slane %v2074, %v2078
        %v2081 = vadd.f32 %v2042, %v2079
        %v2082 = vadd.f32 %v2043, %v2079
        %v2083 = vadd.f32 %v2044, %v2079
        %v2084 = vadd.f32 %v2045, %v2079
        %v2085 = vadd.f32 %v2046, %v2079
        %v2086 = vadd.f32 %v2047, %v2079
        %v2087 = vadd.f32 %v2048, %v2079
        %v2088 = vadd.f32 %v2049, %v2079
        %v2089 = vadd.f32 %v2050, %v2079
        %v2090 = vadd.f32 %v2051, %v2079
        %v2091 = vadd.f32 %v2052, %v2079
        %v2092 = vadd.f32 %v2053, %v2079
        %v2093 = vadd.f32 %v2054, %v2079
        %v2094 = vadd.f32 %v2055, %v2079
        %v2095 = vadd.f32 %v2056, %v2079
        %v2096 = vadd.f32 %v2057, %v2079
        %v2097 = vadd.f32 %v2058, %v2079
        %v2098 = vadd.f32 %v2059, %v2079
        %v2099 = vadd.f32 %v2060, %v2079
        %v2100 = vadd.f32 %v2061, %v2079
        %v2101 = vadd.f32 %v2062, %v2079
        %v2102 = vadd.f32 %v2063, %v2079
        %v2103 = vadd.f32 %v2064, %v2079
        %v2104 = vadd.f32 %v2065, %v2079
        %v2105 = vadd.f32 %v2066, %v2079
        %v2106 = vadd.f32 %v2067, %v2079
        %v2107 = vadd.f32 %v2068, %v2079
        %v2108 = vadd.f32 %v2069, %v2079
        %v2109 = vadd.f32 %v2070, %v2079
        %v2110 = vadd.f32 %v2071, %v2079
        %v2111 = vadd.f32 %v2072, %v2079
        %v2112 = vadd.f32 %v2073, %v2079
        %v2113 = vlaneseq
        %v2114 = vand.u32 %v2113, 127
        %vm2115 = vcmp.lt.s32.totalorder %v2114, 4
        %v2116 = vsel %vm2115, %v2081, -1e+30
        %v2117 = vsel %vm2115, %v2082, -1e+30
        %v2118 = vsel %vm2115, %v2083, -1e+30
        %v2119 = vsel %vm2115, %v2084, -1e+30
        %v2120 = vsel %vm2115, %v2085, -1e+30
        %v2121 = vsel %vm2115, %v2086, -1e+30
        %v2122 = vsel %vm2115, %v2087, -1e+30
        %v2123 = vsel %vm2115, %v2088, -1e+30
        %v2124 = vsel %vm2115, %v2089, -1e+30
        %v2125 = vsel %vm2115, %v2090, -1e+30
        %v2126 = vsel %vm2115, %v2091, -1e+30
        %v2127 = vsel %vm2115, %v2092, -1e+30
        %v2128 = vsel %vm2115, %v2093, -1e+30
        %v2129 = vsel %vm2115, %v2094, -1e+30
        %v2130 = vsel %vm2115, %v2095, -1e+30
        %v2131 = vsel %vm2115, %v2096, -1e+30
        %v2132 = vsel %vm2115, %v2097, -1e+30
        %v2133 = vsel %vm2115, %v2098, -1e+30
        %v2134 = vsel %vm2115, %v2099, -1e+30
        %v2135 = vsel %vm2115, %v2100, -1e+30
        %v2136 = vsel %vm2115, %v2101, -1e+30
        %v2137 = vsel %vm2115, %v2102, -1e+30
        %v2138 = vsel %vm2115, %v2103, -1e+30
        %v2139 = vsel %vm2115, %v2104, -1e+30
        %v2140 = vsel %vm2115, %v2105, -1e+30
        %v2141 = vsel %vm2115, %v2106, -1e+30
        %v2142 = vsel %vm2115, %v2107, -1e+30
        %v2143 = vsel %vm2115, %v2108, -1e+30
        %v2144 = vsel %vm2115, %v2109, -1e+30
        %v2145 = vsel %vm2115, %v2110, -1e+30
        %v2146 = vsel %vm2115, %v2111, -1e+30
        %v2147 = vsel %vm2115, %v2112, -1e+30
        %2148 = vmax.xlane.f32.xlu0 %v2116
        %v2149 = vpop.xlane.xlu0 %2148
        %2150 = vmax.xlane.f32.xlu0 %v2117
        %v2151 = vpop.xlane.xlu0 %2150
        %2152 = vmax.xlane.f32.xlu0 %v2118
        %v2153 = vpop.xlane.xlu0 %2152
        %2154 = vmax.xlane.f32.xlu0 %v2119
        %v2155 = vpop.xlane.xlu0 %2154
        %2156 = vmax.xlane.f32.xlu0 %v2120
        %v2157 = vpop.xlane.xlu0 %2156
        %2158 = vmax.xlane.f32.xlu0 %v2121
        %v2159 = vpop.xlane.xlu0 %2158
        %2160 = vmax.xlane.f32.xlu0 %v2122
        %v2161 = vpop.xlane.xlu0 %2160
        %2162 = vmax.xlane.f32.xlu0 %v2123
        %v2163 = vpop.xlane.xlu0 %2162
        %2164 = vmax.xlane.f32.xlu0 %v2124
        %v2165 = vpop.xlane.xlu0 %2164
        %2166 = vmax.xlane.f32.xlu0 %v2125
        %v2167 = vpop.xlane.xlu0 %2166
        %2168 = vmax.xlane.f32.xlu0 %v2126
        %v2169 = vpop.xlane.xlu0 %2168
        %2170 = vmax.xlane.f32.xlu0 %v2127
        %v2171 = vpop.xlane.xlu0 %2170
        %2172 = vmax.xlane.f32.xlu0 %v2128
        %v2173 = vpop.xlane.xlu0 %2172
        %2174 = vmax.xlane.f32.xlu0 %v2129
        %v2175 = vpop.xlane.xlu0 %2174
        %2176 = vmax.xlane.f32.xlu0 %v2130
        %v2177 = vpop.xlane.xlu0 %2176
        %2178 = vmax.xlane.f32.xlu0 %v2131
        %v2179 = vpop.xlane.xlu0 %2178
        %2180 = vmax.xlane.f32.xlu0 %v2132
        %v2181 = vpop.xlane.xlu0 %2180
        %2182 = vmax.xlane.f32.xlu0 %v2133
        %v2183 = vpop.xlane.xlu0 %2182
        %2184 = vmax.xlane.f32.xlu0 %v2134
        %v2185 = vpop.xlane.xlu0 %2184
        %2186 = vmax.xlane.f32.xlu0 %v2135
        %v2187 = vpop.xlane.xlu0 %2186
        %2188 = vmax.xlane.f32.xlu0 %v2136
        %v2189 = vpop.xlane.xlu0 %2188
        %2190 = vmax.xlane.f32.xlu0 %v2137
        %v2191 = vpop.xlane.xlu0 %2190
        %2192 = vmax.xlane.f32.xlu0 %v2138
        %v2193 = vpop.xlane.xlu0 %2192
        %2194 = vmax.xlane.f32.xlu0 %v2139
        %v2195 = vpop.xlane.xlu0 %2194
        %2196 = vmax.xlane.f32.xlu0 %v2140
        %v2197 = vpop.xlane.xlu0 %2196
        %2198 = vmax.xlane.f32.xlu0 %v2141
        %v2199 = vpop.xlane.xlu0 %2198
        %2200 = vmax.xlane.f32.xlu0 %v2142
        %v2201 = vpop.xlane.xlu0 %2200
        %2202 = vmax.xlane.f32.xlu0 %v2143
        %v2203 = vpop.xlane.xlu0 %2202
        %2204 = vmax.xlane.f32.xlu0 %v2144
        %v2205 = vpop.xlane.xlu0 %2204
        %2206 = vmax.xlane.f32.xlu0 %v2145
        %v2207 = vpop.xlane.xlu0 %2206
        %2208 = vmax.xlane.f32.xlu0 %v2146
        %v2209 = vpop.xlane.xlu0 %2208
        %2210 = vmax.xlane.f32.xlu0 %v2147
        %v2211 = vpop.xlane.xlu0 %2210
        %v2212 = vsub.f32 %v2116, %v2149
        %v2213 = vsub.f32 %v2117, %v2151
        %v2214 = vsub.f32 %v2118, %v2153
        %v2215 = vsub.f32 %v2119, %v2155
        %v2216 = vsub.f32 %v2120, %v2157
        %v2217 = vsub.f32 %v2121, %v2159
        %v2218 = vsub.f32 %v2122, %v2161
        %v2219 = vsub.f32 %v2123, %v2163
        %v2220 = vsub.f32 %v2124, %v2165
        %v2221 = vsub.f32 %v2125, %v2167
        %v2222 = vsub.f32 %v2126, %v2169
        %v2223 = vsub.f32 %v2127, %v2171
        %v2224 = vsub.f32 %v2128, %v2173
        %v2225 = vsub.f32 %v2129, %v2175
        %v2226 = vsub.f32 %v2130, %v2177
        %v2227 = vsub.f32 %v2131, %v2179
        %v2228 = vsub.f32 %v2132, %v2181
        %v2229 = vsub.f32 %v2133, %v2183
        %v2230 = vsub.f32 %v2134, %v2185
        %v2231 = vsub.f32 %v2135, %v2187
        %v2232 = vsub.f32 %v2136, %v2189
        %v2233 = vsub.f32 %v2137, %v2191
        %v2234 = vsub.f32 %v2138, %v2193
        %v2235 = vsub.f32 %v2139, %v2195
        %v2236 = vsub.f32 %v2140, %v2197
        %v2237 = vsub.f32 %v2141, %v2199
        %v2238 = vsub.f32 %v2142, %v2201
        %v2239 = vsub.f32 %v2143, %v2203
        %v2240 = vsub.f32 %v2144, %v2205
        %v2241 = vsub.f32 %v2145, %v2207
        %v2242 = vsub.f32 %v2146, %v2209
        %v2243 = vsub.f32 %v2147, %v2211
        %v2244 = vmul.f32 %v2212, 1.442695
        %v2245 = vpow.pop %v2244
        %v2246 = vmul.f32 %v2213, 1.442695
        %v2247 = vpow.pop %v2246
        %v2248 = vmul.f32 %v2214, 1.442695
        %v2249 = vpow.pop %v2248
        %v2250 = vmul.f32 %v2215, 1.442695
        %v2251 = vpow.pop %v2250
        %v2252 = vmul.f32 %v2216, 1.442695
        %v2253 = vpow.pop %v2252
        %v2254 = vmul.f32 %v2217, 1.442695
        %v2255 = vpow.pop %v2254
        %v2256 = vmul.f32 %v2218, 1.442695
        %v2257 = vpow.pop %v2256
        %v2258 = vmul.f32 %v2219, 1.442695
        %v2259 = vpow.pop %v2258
        %v2260 = vmul.f32 %v2220, 1.442695
        %v2261 = vpow.pop %v2260
        %v2262 = vmul.f32 %v2221, 1.442695
        %v2263 = vpow.pop %v2262
        %v2264 = vmul.f32 %v2222, 1.442695
        %v2265 = vpow.pop %v2264
        %v2266 = vmul.f32 %v2223, 1.442695
        %v2267 = vpow.pop %v2266
        %v2268 = vmul.f32 %v2224, 1.442695
        %v2269 = vpow.pop %v2268
        %v2270 = vmul.f32 %v2225, 1.442695
        %v2271 = vpow.pop %v2270
        %v2272 = vmul.f32 %v2226, 1.442695
        %v2273 = vpow.pop %v2272
        %v2274 = vmul.f32 %v2227, 1.442695
        %v2275 = vpow.pop %v2274
        %v2276 = vmul.f32 %v2228, 1.442695
        %v2277 = vpow.pop %v2276
        %v2278 = vmul.f32 %v2229, 1.442695
        %v2279 = vpow.pop %v2278
        %v2280 = vmul.f32 %v2230, 1.442695
        %v2281 = vpow.pop %v2280
        %v2282 = vmul.f32 %v2231, 1.442695
        %v2283 = vpow.pop %v2282
        %v2284 = vmul.f32 %v2232, 1.442695
        %v2285 = vpow.pop %v2284
        %v2286 = vmul.f32 %v2233, 1.442695
        %v2287 = vpow.pop %v2286
        %v2288 = vmul.f32 %v2234, 1.442695
        %v2289 = vpow.pop %v2288
        %v2290 = vmul.f32 %v2235, 1.442695
        %v2291 = vpow.pop %v2290
        %v2292 = vmul.f32 %v2236, 1.442695
        %v2293 = vpow.pop %v2292
        %v2294 = vmul.f32 %v2237, 1.442695
        %v2295 = vpow.pop %v2294
        %v2296 = vmul.f32 %v2238, 1.442695
        %v2297 = vpow.pop %v2296
        %v2298 = vmul.f32 %v2239, 1.442695
        %v2299 = vpow.pop %v2298
        %v2300 = vmul.f32 %v2240, 1.442695
        %v2301 = vpow.pop %v2300
        %v2302 = vmul.f32 %v2241, 1.442695
        %v2303 = vpow.pop %v2302
        %v2304 = vmul.f32 %v2242, 1.442695
        %v2305 = vpow.pop %v2304
        %v2306 = vmul.f32 %v2243, 1.442695
        %v2307 = vpow.pop %v2306
        %2308 = vadd.xlane.f32.xlu0 %v2245
        %v2309 = vpop.xlane.xlu0 %2308
        %2310 = vadd.xlane.f32.xlu0 %v2247
        %v2311 = vpop.xlane.xlu0 %2310
        %2312 = vadd.xlane.f32.xlu0 %v2249
        %v2313 = vpop.xlane.xlu0 %2312
        %2314 = vadd.xlane.f32.xlu0 %v2251
        %v2315 = vpop.xlane.xlu0 %2314
        %2316 = vadd.xlane.f32.xlu0 %v2253
        %v2317 = vpop.xlane.xlu0 %2316
        %2318 = vadd.xlane.f32.xlu0 %v2255
        %v2319 = vpop.xlane.xlu0 %2318
        %2320 = vadd.xlane.f32.xlu0 %v2257
        %v2321 = vpop.xlane.xlu0 %2320
        %2322 = vadd.xlane.f32.xlu0 %v2259
        %v2323 = vpop.xlane.xlu0 %2322
        %2324 = vadd.xlane.f32.xlu0 %v2261
        %v2325 = vpop.xlane.xlu0 %2324
        %2326 = vadd.xlane.f32.xlu0 %v2263
        %v2327 = vpop.xlane.xlu0 %2326
        %2328 = vadd.xlane.f32.xlu0 %v2265
        %v2329 = vpop.xlane.xlu0 %2328
        %2330 = vadd.xlane.f32.xlu0 %v2267
        %v2331 = vpop.xlane.xlu0 %2330
        %2332 = vadd.xlane.f32.xlu0 %v2269
        %v2333 = vpop.xlane.xlu0 %2332
        %2334 = vadd.xlane.f32.xlu0 %v2271
        %v2335 = vpop.xlane.xlu0 %2334
        %2336 = vadd.xlane.f32.xlu0 %v2273
        %v2337 = vpop.xlane.xlu0 %2336
        %2338 = vadd.xlane.f32.xlu0 %v2275
        %v2339 = vpop.xlane.xlu0 %2338
        %2340 = vadd.xlane.f32.xlu0 %v2277
        %v2341 = vpop.xlane.xlu0 %2340
        %2342 = vadd.xlane.f32.xlu0 %v2279
        %v2343 = vpop.xlane.xlu0 %2342
        %2344 = vadd.xlane.f32.xlu0 %v2281
        %v2345 = vpop.xlane.xlu0 %2344
        %2346 = vadd.xlane.f32.xlu0 %v2283
        %v2347 = vpop.xlane.xlu0 %2346
        %2348 = vadd.xlane.f32.xlu0 %v2285
        %v2349 = vpop.xlane.xlu0 %2348
        %2350 = vadd.xlane.f32.xlu0 %v2287
        %v2351 = vpop.xlane.xlu0 %2350
        %2352 = vadd.xlane.f32.xlu0 %v2289
        %v2353 = vpop.xlane.xlu0 %2352
        %2354 = vadd.xlane.f32.xlu0 %v2291
        %v2355 = vpop.xlane.xlu0 %2354
        %2356 = vadd.xlane.f32.xlu0 %v2293
        %v2357 = vpop.xlane.xlu0 %2356
        %2358 = vadd.xlane.f32.xlu0 %v2295
        %v2359 = vpop.xlane.xlu0 %2358
        %2360 = vadd.xlane.f32.xlu0 %v2297
        %v2361 = vpop.xlane.xlu0 %2360
        %2362 = vadd.xlane.f32.xlu0 %v2299
        %v2363 = vpop.xlane.xlu0 %2362
        %2364 = vadd.xlane.f32.xlu0 %v2301
        %v2365 = vpop.xlane.xlu0 %2364
        %2366 = vadd.xlane.f32.xlu0 %v2303
        %v2367 = vpop.xlane.xlu0 %2366
        %2368 = vadd.xlane.f32.xlu0 %v2305
        %v2369 = vpop.xlane.xlu0 %2368
        %2370 = vadd.xlane.f32.xlu0 %v2307
        %v2371 = vpop.xlane.xlu0 %2370
        %v2372 = vlog2.pop %v2309
        %v2373 = vmul.f32 %v2372, 0.6931472
        %v2374 = vlog2.pop %v2311
        %v2375 = vmul.f32 %v2374, 0.6931472
        %v2376 = vlog2.pop %v2313
        %v2377 = vmul.f32 %v2376, 0.6931472
        %v2378 = vlog2.pop %v2315
        %v2379 = vmul.f32 %v2378, 0.6931472
        %v2380 = vlog2.pop %v2317
        %v2381 = vmul.f32 %v2380, 0.6931472
        %v2382 = vlog2.pop %v2319
        %v2383 = vmul.f32 %v2382, 0.6931472
        %v2384 = vlog2.pop %v2321
        %v2385 = vmul.f32 %v2384, 0.6931472
        %v2386 = vlog2.pop %v2323
        %v2387 = vmul.f32 %v2386, 0.6931472
        %v2388 = vlog2.pop %v2325
        %v2389 = vmul.f32 %v2388, 0.6931472
        %v2390 = vlog2.pop %v2327
        %v2391 = vmul.f32 %v2390, 0.6931472
        %v2392 = vlog2.pop %v2329
        %v2393 = vmul.f32 %v2392, 0.6931472
        %v2394 = vlog2.pop %v2331
        %v2395 = vmul.f32 %v2394, 0.6931472
        %v2396 = vlog2.pop %v2333
        %v2397 = vmul.f32 %v2396, 0.6931472
        %v2398 = vlog2.pop %v2335
        %v2399 = vmul.f32 %v2398, 0.6931472
        %v2400 = vlog2.pop %v2337
        %v2401 = vmul.f32 %v2400, 0.6931472
        %v2402 = vlog2.pop %v2339
        %v2403 = vmul.f32 %v2402, 0.6931472
        %v2404 = vlog2.pop %v2341
        %v2405 = vmul.f32 %v2404, 0.6931472
        %v2406 = vlog2.pop %v2343
        %v2407 = vmul.f32 %v2406, 0.6931472
        %v2408 = vlog2.pop %v2345
        %v2409 = vmul.f32 %v2408, 0.6931472
        %v2410 = vlog2.pop %v2347
        %v2411 = vmul.f32 %v2410, 0.6931472
        %v2412 = vlog2.pop %v2349
        %v2413 = vmul.f32 %v2412, 0.6931472
        %v2414 = vlog2.pop %v2351
        %v2415 = vmul.f32 %v2414, 0.6931472
        %v2416 = vlog2.pop %v2353
        %v2417 = vmul.f32 %v2416, 0.6931472
        %v2418 = vlog2.pop %v2355
        %v2419 = vmul.f32 %v2418, 0.6931472
        %v2420 = vlog2.pop %v2357
        %v2421 = vmul.f32 %v2420, 0.6931472
        %v2422 = vlog2.pop %v2359
        %v2423 = vmul.f32 %v2422, 0.6931472
        %v2424 = vlog2.pop %v2361
        %v2425 = vmul.f32 %v2424, 0.6931472
        %v2426 = vlog2.pop %v2363
        %v2427 = vmul.f32 %v2426, 0.6931472
        %v2428 = vlog2.pop %v2365
        %v2429 = vmul.f32 %v2428, 0.6931472
        %v2430 = vlog2.pop %v2367
        %v2431 = vmul.f32 %v2430, 0.6931472
        %v2432 = vlog2.pop %v2369
        %v2433 = vmul.f32 %v2432, 0.6931472
        %v2434 = vlog2.pop %v2371
        %v2435 = vmul.f32 %v2434, 0.6931472
        %v2436 = vadd.f32 %v2149, %v2373
        %v2437 = vadd.f32 %v2151, %v2375
        %v2438 = vadd.f32 %v2153, %v2377
        %v2439 = vadd.f32 %v2155, %v2379
        %v2440 = vadd.f32 %v2157, %v2381
        %v2441 = vadd.f32 %v2159, %v2383
        %v2442 = vadd.f32 %v2161, %v2385
        %v2443 = vadd.f32 %v2163, %v2387
        %v2444 = vadd.f32 %v2165, %v2389
        %v2445 = vadd.f32 %v2167, %v2391
        %v2446 = vadd.f32 %v2169, %v2393
        %v2447 = vadd.f32 %v2171, %v2395
        %v2448 = vadd.f32 %v2173, %v2397
        %v2449 = vadd.f32 %v2175, %v2399
        %v2450 = vadd.f32 %v2177, %v2401
        %v2451 = vadd.f32 %v2179, %v2403
        %v2452 = vadd.f32 %v2181, %v2405
        %v2453 = vadd.f32 %v2183, %v2407
        %v2454 = vadd.f32 %v2185, %v2409
        %v2455 = vadd.f32 %v2187, %v2411
        %v2456 = vadd.f32 %v2189, %v2413
        %v2457 = vadd.f32 %v2191, %v2415
        %v2458 = vadd.f32 %v2193, %v2417
        %v2459 = vadd.f32 %v2195, %v2419
        %v2460 = vadd.f32 %v2197, %v2421
        %v2461 = vadd.f32 %v2199, %v2423
        %v2462 = vadd.f32 %v2201, %v2425
        %v2463 = vadd.f32 %v2203, %v2427
        %v2464 = vadd.f32 %v2205, %v2429
        %v2465 = vadd.f32 %v2207, %v2431
        %v2466 = vadd.f32 %v2209, %v2433
        %v2467 = vadd.f32 %v2211, %v2435
        %v2468 = vsub.f32 %v2081, %v2436
        %v2469 = vsub.f32 %v2082, %v2437
        %v2470 = vsub.f32 %v2083, %v2438
        %v2471 = vsub.f32 %v2084, %v2439
        %v2472 = vsub.f32 %v2085, %v2440
        %v2473 = vsub.f32 %v2086, %v2441
        %v2474 = vsub.f32 %v2087, %v2442
        %v2475 = vsub.f32 %v2088, %v2443
        %v2476 = vsub.f32 %v2089, %v2444
        %v2477 = vsub.f32 %v2090, %v2445
        %v2478 = vsub.f32 %v2091, %v2446
        %v2479 = vsub.f32 %v2092, %v2447
        %v2480 = vsub.f32 %v2093, %v2448
        %v2481 = vsub.f32 %v2094, %v2449
        %v2482 = vsub.f32 %v2095, %v2450
        %v2483 = vsub.f32 %v2096, %v2451
        %v2484 = vsub.f32 %v2097, %v2452
        %v2485 = vsub.f32 %v2098, %v2453
        %v2486 = vsub.f32 %v2099, %v2454
        %v2487 = vsub.f32 %v2100, %v2455
        %v2488 = vsub.f32 %v2101, %v2456
        %v2489 = vsub.f32 %v2102, %v2457
        %v2490 = vsub.f32 %v2103, %v2458
        %v2491 = vsub.f32 %v2104, %v2459
        %v2492 = vsub.f32 %v2105, %v2460
        %v2493 = vsub.f32 %v2106, %v2461
        %v2494 = vsub.f32 %v2107, %v2462
        %v2495 = vsub.f32 %v2108, %v2463
        %v2496 = vsub.f32 %v2109, %v2464
        %v2497 = vsub.f32 %v2110, %v2465
        %v2498 = vsub.f32 %v2111, %v2466
        %v2499 = vsub.f32 %v2112, %v2467
        %2500 = vst [vmem:[%s328] sm:$0xff] %v2468
        %2501 = vst [vmem:[%s328 + $0x8] sm:$0xff] %v2469
        %2502 = vst [vmem:[%s328 + $0x10] sm:$0xff] %v2470
        %2503 = vst [vmem:[%s328 + $0x18] sm:$0xff] %v2471
        %2504 = vst [vmem:[%s328 + $0x20] sm:$0xff] %v2472
        %2505 = vst [vmem:[%s328 + $0x28] sm:$0xff] %v2473
        %2506 = vst [vmem:[%s328 + $0x30] sm:$0xff] %v2474
        %2507 = vst [vmem:[%s328 + $0x38] sm:$0xff] %v2475
        %2508 = vst [vmem:[%s328 + $0x40] sm:$0xff] %v2476
        %2509 = vst [vmem:[%s328 + $0x48] sm:$0xff] %v2477
        %2510 = vst [vmem:[%s328 + $0x50] sm:$0xff] %v2478
        %2511 = vst [vmem:[%s328 + $0x58] sm:$0xff] %v2479
        %2512 = vst [vmem:[%s328 + $0x60] sm:$0xff] %v2480
        %2513 = vst [vmem:[%s328 + $0x68] sm:$0xff] %v2481
        %2514 = vst [vmem:[%s328 + $0x70] sm:$0xff] %v2482
        %2515 = vst [vmem:[%s328 + $0x78] sm:$0xff] %v2483
        %2516 = vst [vmem:[%s328 + $0x80] sm:$0xff] %v2484
        %2517 = vst [vmem:[%s328 + $0x88] sm:$0xff] %v2485
        %2518 = vst [vmem:[%s328 + $0x90] sm:$0xff] %v2486
        %2519 = vst [vmem:[%s328 + $0x98] sm:$0xff] %v2487
        %2520 = vst [vmem:[%s328 + $0xa0] sm:$0xff] %v2488
        %2521 = vst [vmem:[%s328 + $0xa8] sm:$0xff] %v2489
        %2522 = vst [vmem:[%s328 + $0xb0] sm:$0xff] %v2490
        %2523 = vst [vmem:[%s328 + $0xb8] sm:$0xff] %v2491
        %2524 = vst [vmem:[%s328 + $0xc0] sm:$0xff] %v2492
        %2525 = vst [vmem:[%s328 + $0xc8] sm:$0xff] %v2493
        %2526 = vst [vmem:[%s328 + $0xd0] sm:$0xff] %v2494
        %2527 = vst [vmem:[%s328 + $0xd8] sm:$0xff] %v2495
        %2528 = vst [vmem:[%s328 + $0xe0] sm:$0xff] %v2496
        %2529 = vst [vmem:[%s328 + $0xe8] sm:$0xff] %v2497
        %2530 = vst [vmem:[%s328 + $0xf0] sm:$0xff] %v2498
        %2531 = vst [vmem:[%s328 + $0xf8] sm:$0xff] %v2499
      $region52: #{graphsage_forward.7} parent=43 // pred_fallthru
        _
      %s2532 = smul.u32 32, %s21
      %p2533 = scmp.lt.s32.totalorder %s2532, 63
      %s2534 = scalar_select %p2533, %s2532, 63
      %s2535 = smul.addr %s2534, 8
      %s2536 = scalar_lea.vmem %s6, %s2535
      // Predicated region
      $region53: #{graphsage_forward.7} parent=43 // pred_check
        %p2537 = pneg %p190
      $region54: #{graphsage_forward.7} parent=43 // pred_check_branch
        %2539 = sbr.rel (%p2537) target = $region56
      $region55: #{graphsage_forward.7} parent=43 // pred_region
        %s2540 = smul.u32 32, %s21
      $region56: #{graphsage_forward.7} parent=43 // pred_fallthru
        _
    $region44: #{graphsage_forward.7} parent=5 // pred_fallthru
      _
    %p2541 = scmp.le.s32.totalorder 2, %s12
    // Predicated region
    $region57: #{graphsage_forward.7} parent=5 // pred_check
      %p2542 = pneg %p2541
    $region58: #{graphsage_forward.7} parent=5 // pred_check_branch
      %2544 = sbr.rel (%p2542) target = $region60
    $region59: #{graphsage_forward.7} parent=5 // pred_region
      %s2545 = ssub.s32 %s12, 2
      // Predicated region
      $region61: #{graphsage_forward.7} parent=59 // pred_check
        %p2546 = pneg %p196
      $region62: #{graphsage_forward.7} parent=59 // pred_check_branch
        %2548 = sbr.rel (%p2546) target = $region64
      $region63: #{graphsage_forward.7} parent=59 // pred_region
        %s2549 = smul.u32 32, %s23
        %p2550 = scmp.lt.s32.totalorder %s2549, 63
        %s2551 = scalar_select %p2550, %s2549, 63
        %s2552 = smul.addr %s2551, 8
        %s2553 = scalar_lea.vmem %s6, %s2552
      $region64: #{graphsage_forward.7} parent=59 // pred_fallthru
        _
    $region60: #{graphsage_forward.7} parent=5 // pred_fallthru
      _
  $region6: #{graphsage_forward.7} parent=0 // loop_footer
    %s16 = sadd.s32 1, %s12
  $region7: #{graphsage_forward.7} parent=0 // loop_footer_branch
    %11 = sbr.rel target = $region3
  $region8: #{graphsage_forward.7} parent=0 // loop_exit
    _

</llo_original>
